<compile_context>
chip_gen: v6e
topology: v6e:2x2x1
jax: 0.10.0
libtpu: 0.0.40
codegen_flags: <defaults>
</compile_context>

<pallas_src>
import numpy as np

import jax
import jax.numpy as jnp
from jax import lax
from jax.experimental import pallas as pl
from jax.experimental.pallas import tpu as pltpu

NEG_SLOPE = 0.2


# ----------------------------------------------------------------------------
# Fused kernel: one grid step == one image's full forward pass.
#   refs = (x_ref, [G_i, W_i] * n_layers, w_final_ref, out_ref)
#     x_ref : (1, H0*W0, C0)        bf16  flattened NHWC input image
#     G_i   : (k*k*HWo_i, HWin_i)   bf16  0/1 patch-gather matrix (pad -> 0 row)
#     W_i   : (k*k, Cin_i, Cout_i)  bf16  conv weights, kernel-tap major
#     w_fin : (16, Cfin)            f32   final 4x4 conv folded to a dot-product
#     out   : (1, 1, 1)             f32
# ----------------------------------------------------------------------------
def _critic_fused_kernel(x_ref, *refs):
    out_ref = refs[-1]
    wfin_ref = refs[-2]
    gw = refs[:-2]
    n_layers = len(gw) // 2

    x = x_ref[0]                                         # (HW_in, Cin) bf16
    acc = None
    for li in range(n_layers):
        g = gw[2 * li][...]                              # (kk*HW_out, HW_in) bf16
        w = gw[2 * li + 1][...]                          # (kk, Cin, Cout)    bf16
        kk, _cin, _cout = w.shape
        hw_out = g.shape[0] // kk

        # In-kernel im2col on the MXU: row t*HW_out + p of `sel` is the input
        # value under kernel tap t at output position p (0 where padded).
        sel = jnp.dot(g, x, preferred_element_type=jnp.float32)
        sel = sel.astype(jnp.bfloat16)                   # (kk*HW_out, Cin)

        # Accumulate the conv over the kk kernel taps in f32 (sublane-aligned
        # static slices; all matmuls bf16 -> f32 on the MXU).
        acc = jnp.dot(sel[0:hw_out, :], w[0],
                      preferred_element_type=jnp.float32)
        for t in range(1, kk):
            acc = acc + jnp.dot(sel[t * hw_out:(t + 1) * hw_out, :], w[t],
                                preferred_element_type=jnp.float32)

        acc = jnp.where(acc >= 0.0, acc, NEG_SLOPE * acc)   # LeakyReLU(0.2)
        x = acc.astype(jnp.bfloat16)                     # next layer's input

    # Final conv: 4x4, stride 1, pad 0, Cout=1 on a 4x4 map == dot product of
    # the (16, Cfin) activation with the (16, Cfin) reshaped weight (f32).
    prod = acc * wfin_ref[...]                           # (16, Cfin) f32
    r = jnp.sum(prod, axis=1, keepdims=True)             # (16, 1)
    r = jnp.sum(r, axis=0, keepdims=True)                # (1, 1)
    out_ref[0] = r


# ----------------------------------------------------------------------------
# Host-side builders (run once): parameters, gather matrices, packed weights.
# ----------------------------------------------------------------------------
def _gather_matrix(H, W, k, s, p):
    """G[t*Ho*Wo + oh*Wo + ow, ih*W + iw] = 1 for kernel tap t = kh*k + kw
    hitting input (ih, iw); rows of padded taps stay all-zero (zero padding)."""
    Ho = (H + 2 * p - k) // s + 1
    Wo = (W + 2 * p - k) // s + 1
    G = np.zeros((k * k * Ho * Wo, H * W), np.float32)
    for kh in range(k):
        for kw in range(k):
            t = kh * k + kw
            for oh in range(Ho):
                ih = s * oh + kh - p
                if not (0 <= ih < H):
                    continue
                for ow in range(Wo):
                    iw = s * ow + kw - p
                    if 0 <= iw < W:
                        G[t * Ho * Wo + oh * Wo + ow, ih * W + iw] = 1.0
    return G


def build_critic2d_params(key, isize=16, im_chan=1, ndf=8, n_extra_layers=0):
    assert isize % 16 == 0, "isize has to be a multiple of 16"
    keys = iter(jax.random.split(key, 32))

    def init(shape):
        return 0.05 * jax.random.normal(next(keys), shape, jnp.float32)

    layers = []  # (w_hwio, k, stride, pad, input_spatial)
    layers.append((init((4, 4, im_chan, ndf)), 4, 2, 1, isize))
    csize, cndf = isize // 2, ndf
    for _ in range(n_extra_layers):
        layers.append((init((3, 3, cndf, cndf)), 3, 1, 1, csize))
    while csize > 4:
        layers.append((init((4, 4, cndf, cndf * 2)), 4, 2, 1, csize))
        cndf *= 2
        csize //= 2
    assert csize == 4
    w_final = init((4, 4, cndf, 1))   # k4 s1 p0: 4x4xCfin -> 1x1x1
    return layers, w_final


def build_fused_operands(layers, w_final):
    """Pre-reshape / pre-cast everything once (bf16 MXU operands)."""
    gs, ws = [], []
    for (w, k, s, p, hin) in layers:
        _, _, cin, cout = w.shape
        gs.append(jnp.asarray(_gather_matrix(hin, hin, k, s, p), jnp.bfloat16))
        ws.append(w.reshape(k * k, cin, cout).astype(jnp.bfloat16))
    cfin = w_final.shape[2]
    wfin = w_final.reshape(4 * 4, cfin).astype(jnp.float32)
    return gs, ws, wfin


# ----------------------------------------------------------------------------
# Forward wrapper: one pallas_call, grid over batch.
# ----------------------------------------------------------------------------
def critic2d_forward(image_nchw, gs, ws, wfin):
    n, c, h, w = image_nchw.shape
    # Layout plumbing once at the boundary: NCHW -> flattened NHWC, bf16.
    x = jnp.transpose(image_nchw, (0, 2, 3, 1)).reshape(n, h * w, c)
    x = x.astype(jnp.bfloat16)

    operands = [x]
    in_specs = [pl.BlockSpec((1, h * w, c), lambda b: (b, 0, 0))]
    for g, wt in zip(gs, ws):
        operands.append(g)
        in_specs.append(pl.BlockSpec(g.shape, lambda b: (0, 0)))
        operands.append(wt)
        in_specs.append(pl.BlockSpec(wt.shape, lambda b: (0, 0, 0)))
    operands.append(wfin)
    in_specs.append(pl.BlockSpec(wfin.shape, lambda b: (0, 0)))

    out = pl.pallas_call(
        _critic_fused_kernel,
        out_shape=jax.ShapeDtypeStruct((n, 1, 1), jnp.float32),
        grid=(n,),
        in_specs=in_specs,
        out_specs=pl.BlockSpec((1, 1, 1), lambda b: (b, 0, 0)),
        compiler_params=pltpu.CompilerParams(
            dimension_semantics=("parallel",)),
    )(*operands)
    return out.reshape(n, 1)


# Pure-JAX reference (lax conv, f32) used only as an in-script correctness check.
def critic2d_ref(image_nchw, layers, w_final):
    x = jnp.transpose(image_nchw, (0, 2, 3, 1)).astype(jnp.float32)
    for (w, _k, s, p, _hin) in layers:
        x = lax.conv_general_dilated(
            x, w, (s, s), [(p, p), (p, p)],
            dimension_numbers=("NHWC", "HWIO", "NHWC"))
        x = jnp.where(x >= 0, x, NEG_SLOPE * x)
    x = lax.conv_general_dilated(
        x, w_final, (1, 1), [(0, 0), (0, 0)],
        dimension_numbers=("NHWC", "HWIO", "NHWC"))
    n = x.shape[0]
    return jnp.transpose(x, (0, 3, 1, 2)).reshape(n, -1)


if __name__ == "__main__":
    key = jax.random.PRNGKey(0)
    k_img, k_par = jax.random.split(key)

    batch, im_chan, isize, ndf = 2, 1, 16, 8
    image = jax.random.normal(k_img, (batch, im_chan, isize, isize), jnp.float32)

    layers, w_final = build_critic2d_params(
        k_par, isize=isize, im_chan=im_chan, ndf=ndf, n_extra_layers=0)
    gs, ws, wfin = build_fused_operands(layers, w_final)

    out = critic2d_forward(image, gs, ws, wfin)
    out = jax.block_until_ready(out)

    ref = critic2d_ref(image, layers, w_final)
    assert out.shape == (batch, 1), out.shape
    # bf16 MXU operands (f32 accumulate) -> widened tolerance vs f32 reference.
    assert jnp.allclose(out, ref, atol=2e-2, rtol=2e-2), (out, ref)

    print("KERNEL_OK")
</pallas_src>

<mosaic_0001>
module attributes {stable_mosaic.version = 11 : i64} {
  func.func @_critic_fused_kernel(%arg0: i32, %arg1: memref<1x256x1xbf16, #tpu.memory_space<vmem>>, %arg2: memref<1024x256xbf16, #tpu.memory_space<vmem>>, %arg3: memref<16x1x8xbf16, #tpu.memory_space<vmem>>, %arg4: memref<256x64xbf16, #tpu.memory_space<vmem>>, %arg5: memref<16x8x16xbf16, #tpu.memory_space<vmem>>, %arg6: memref<16x16xf32, #tpu.memory_space<vmem>>, %arg7: memref<1x1x1xf32, #tpu.memory_space<vmem>>) attributes {dimension_semantics = [#tpu.dimension_semantics<parallel>], iteration_bounds = array<i64: 2>, scalar_prefetch = 0 : i64, scratch_operands = 0 : i64, tpu.core_type = #tpu.core_type<tc>, window_params = [{transform_indices = @transform_0, window_bounds = array<i64: 1, 256, 1>}, {pipeline_mode = #tpu.pipeline_mode<synchronous>, transform_indices = @transform_1, window_bounds = array<i64: 1024, 256>}, {pipeline_mode = #tpu.pipeline_mode<synchronous>, transform_indices = @transform_2, window_bounds = array<i64: 16, 1, 8>}, {pipeline_mode = #tpu.pipeline_mode<synchronous>, transform_indices = @transform_3, window_bounds = array<i64: 256, 64>}, {pipeline_mode = #tpu.pipeline_mode<synchronous>, transform_indices = @transform_4, window_bounds = array<i64: 16, 8, 16>}, {pipeline_mode = #tpu.pipeline_mode<synchronous>, transform_indices = @transform_5, window_bounds = array<i64: 16, 16>}, {transform_indices = @transform_6, window_bounds = array<i64: 1, 1, 1>}]} {
    %c0 = arith.constant 0 : index
    %c0_0 = arith.constant 0 : index
    %c0_1 = arith.constant 0 : index
    %0 = vector.load %arg1[%c0, %c0_0, %c0_1] : memref<1x256x1xbf16, #tpu.memory_space<vmem>>, vector<1x256x1xbf16>
    %1 = vector.shape_cast %0 : vector<1x256x1xbf16> to vector<256x1xbf16>
    %c0_2 = arith.constant 0 : index
    %c0_3 = arith.constant 0 : index
    %2 = vector.load %arg2[%c0_2, %c0_3] : memref<1024x256xbf16, #tpu.memory_space<vmem>>, vector<1024x256xbf16>
    %c0_4 = arith.constant 0 : index
    %c0_5 = arith.constant 0 : index
    %c0_6 = arith.constant 0 : index
    %3 = vector.load %arg3[%c0_4, %c0_5, %c0_6] : memref<16x1x8xbf16, #tpu.memory_space<vmem>>, vector<16x1x8xbf16>
    %cst = arith.constant dense<0.000000e+00> : vector<1024x1xf32>
    %4 = tpu.matmul %2, %1, %cst {dimension_numbers = #tpu.dot_dimension_numbers<[1], [0], [0], [1], [0, 0, 1, 1], [], []>} : vector<1024x256xbf16>, vector<256x1xbf16>, vector<1024x1xf32> -> vector<1024x1xf32>
    %5 = arith.truncf %4 : vector<1024x1xf32> to vector<1024x1xbf16>
    %6 = vector.extract_strided_slice %5 {offsets = [0, 0], sizes = [64, 1], strides = [1, 1]} : vector<1024x1xbf16> to vector<64x1xbf16>
    %7 = vector.extract_strided_slice %3 {offsets = [0, 0, 0], sizes = [1, 1, 8], strides = [1, 1, 1]} : vector<16x1x8xbf16> to vector<1x1x8xbf16>
    %8 = vector.shape_cast %7 : vector<1x1x8xbf16> to vector<1x8xbf16>
    %cst_7 = arith.constant dense<0.000000e+00> : vector<64x8xf32>
    %9 = tpu.matmul %6, %8, %cst_7 {dimension_numbers = #tpu.dot_dimension_numbers<[1], [0], [0], [1], [0, 0, 1, 1], [], []>} : vector<64x1xbf16>, vector<1x8xbf16>, vector<64x8xf32> -> vector<64x8xf32>
    %10 = vector.extract_strided_slice %5 {offsets = [64, 0], sizes = [64, 1], strides = [1, 1]} : vector<1024x1xbf16> to vector<64x1xbf16>
    %11 = vector.extract_strided_slice %3 {offsets = [1, 0, 0], sizes = [1, 1, 8], strides = [1, 1, 1]} : vector<16x1x8xbf16> to vector<1x1x8xbf16>
    %12 = vector.shape_cast %11 : vector<1x1x8xbf16> to vector<1x8xbf16>
    %cst_8 = arith.constant dense<0.000000e+00> : vector<64x8xf32>
    %13 = tpu.matmul %10, %12, %cst_8 {dimension_numbers = #tpu.dot_dimension_numbers<[1], [0], [0], [1], [0, 0, 1, 1], [], []>} : vector<64x1xbf16>, vector<1x8xbf16>, vector<64x8xf32> -> vector<64x8xf32>
    %14 = arith.addf %9, %13 : vector<64x8xf32>
    %15 = vector.extract_strided_slice %5 {offsets = [128, 0], sizes = [64, 1], strides = [1, 1]} : vector<1024x1xbf16> to vector<64x1xbf16>
    %16 = vector.extract_strided_slice %3 {offsets = [2, 0, 0], sizes = [1, 1, 8], strides = [1, 1, 1]} : vector<16x1x8xbf16> to vector<1x1x8xbf16>
    %17 = vector.shape_cast %16 : vector<1x1x8xbf16> to vector<1x8xbf16>
    %cst_9 = arith.constant dense<0.000000e+00> : vector<64x8xf32>
    %18 = tpu.matmul %15, %17, %cst_9 {dimension_numbers = #tpu.dot_dimension_numbers<[1], [0], [0], [1], [0, 0, 1, 1], [], []>} : vector<64x1xbf16>, vector<1x8xbf16>, vector<64x8xf32> -> vector<64x8xf32>
    %19 = arith.addf %14, %18 : vector<64x8xf32>
    %20 = vector.extract_strided_slice %5 {offsets = [192, 0], sizes = [64, 1], strides = [1, 1]} : vector<1024x1xbf16> to vector<64x1xbf16>
    %21 = vector.extract_strided_slice %3 {offsets = [3, 0, 0], sizes = [1, 1, 8], strides = [1, 1, 1]} : vector<16x1x8xbf16> to vector<1x1x8xbf16>
    %22 = vector.shape_cast %21 : vector<1x1x8xbf16> to vector<1x8xbf16>
    %cst_10 = arith.constant dense<0.000000e+00> : vector<64x8xf32>
    %23 = tpu.matmul %20, %22, %cst_10 {dimension_numbers = #tpu.dot_dimension_numbers<[1], [0], [0], [1], [0, 0, 1, 1], [], []>} : vector<64x1xbf16>, vector<1x8xbf16>, vector<64x8xf32> -> vector<64x8xf32>
    %24 = arith.addf %19, %23 : vector<64x8xf32>
    %25 = vector.extract_strided_slice %5 {offsets = [256, 0], sizes = [64, 1], strides = [1, 1]} : vector<1024x1xbf16> to vector<64x1xbf16>
    %26 = vector.extract_strided_slice %3 {offsets = [4, 0, 0], sizes = [1, 1, 8], strides = [1, 1, 1]} : vector<16x1x8xbf16> to vector<1x1x8xbf16>
    %27 = vector.shape_cast %26 : vector<1x1x8xbf16> to vector<1x8xbf16>
    %cst_11 = arith.constant dense<0.000000e+00> : vector<64x8xf32>
    %28 = tpu.matmul %25, %27, %cst_11 {dimension_numbers = #tpu.dot_dimension_numbers<[1], [0], [0], [1], [0, 0, 1, 1], [], []>} : vector<64x1xbf16>, vector<1x8xbf16>, vector<64x8xf32> -> vector<64x8xf32>
    %29 = arith.addf %24, %28 : vector<64x8xf32>
    %30 = vector.extract_strided_slice %5 {offsets = [320, 0], sizes = [64, 1], strides = [1, 1]} : vector<1024x1xbf16> to vector<64x1xbf16>
    %31 = vector.extract_strided_slice %3 {offsets = [5, 0, 0], sizes = [1, 1, 8], strides = [1, 1, 1]} : vector<16x1x8xbf16> to vector<1x1x8xbf16>
    %32 = vector.shape_cast %31 : vector<1x1x8xbf16> to vector<1x8xbf16>
    %cst_12 = arith.constant dense<0.000000e+00> : vector<64x8xf32>
    %33 = tpu.matmul %30, %32, %cst_12 {dimension_numbers = #tpu.dot_dimension_numbers<[1], [0], [0], [1], [0, 0, 1, 1], [], []>} : vector<64x1xbf16>, vector<1x8xbf16>, vector<64x8xf32> -> vector<64x8xf32>
    %34 = arith.addf %29, %33 : vector<64x8xf32>
    %35 = vector.extract_strided_slice %5 {offsets = [384, 0], sizes = [64, 1], strides = [1, 1]} : vector<1024x1xbf16> to vector<64x1xbf16>
    %36 = vector.extract_strided_slice %3 {offsets = [6, 0, 0], sizes = [1, 1, 8], strides = [1, 1, 1]} : vector<16x1x8xbf16> to vector<1x1x8xbf16>
    %37 = vector.shape_cast %36 : vector<1x1x8xbf16> to vector<1x8xbf16>
    %cst_13 = arith.constant dense<0.000000e+00> : vector<64x8xf32>
    %38 = tpu.matmul %35, %37, %cst_13 {dimension_numbers = #tpu.dot_dimension_numbers<[1], [0], [0], [1], [0, 0, 1, 1], [], []>} : vector<64x1xbf16>, vector<1x8xbf16>, vector<64x8xf32> -> vector<64x8xf32>
    %39 = arith.addf %34, %38 : vector<64x8xf32>
    %40 = vector.extract_strided_slice %5 {offsets = [448, 0], sizes = [64, 1], strides = [1, 1]} : vector<1024x1xbf16> to vector<64x1xbf16>
    %41 = vector.extract_strided_slice %3 {offsets = [7, 0, 0], sizes = [1, 1, 8], strides = [1, 1, 1]} : vector<16x1x8xbf16> to vector<1x1x8xbf16>
    %42 = vector.shape_cast %41 : vector<1x1x8xbf16> to vector<1x8xbf16>
    %cst_14 = arith.constant dense<0.000000e+00> : vector<64x8xf32>
    %43 = tpu.matmul %40, %42, %cst_14 {dimension_numbers = #tpu.dot_dimension_numbers<[1], [0], [0], [1], [0, 0, 1, 1], [], []>} : vector<64x1xbf16>, vector<1x8xbf16>, vector<64x8xf32> -> vector<64x8xf32>
    %44 = arith.addf %39, %43 : vector<64x8xf32>
    %45 = vector.extract_strided_slice %5 {offsets = [512, 0], sizes = [64, 1], strides = [1, 1]} : vector<1024x1xbf16> to vector<64x1xbf16>
    %46 = vector.extract_strided_slice %3 {offsets = [8, 0, 0], sizes = [1, 1, 8], strides = [1, 1, 1]} : vector<16x1x8xbf16> to vector<1x1x8xbf16>
    %47 = vector.shape_cast %46 : vector<1x1x8xbf16> to vector<1x8xbf16>
    %cst_15 = arith.constant dense<0.000000e+00> : vector<64x8xf32>
    %48 = tpu.matmul %45, %47, %cst_15 {dimension_numbers = #tpu.dot_dimension_numbers<[1], [0], [0], [1], [0, 0, 1, 1], [], []>} : vector<64x1xbf16>, vector<1x8xbf16>, vector<64x8xf32> -> vector<64x8xf32>
    %49 = arith.addf %44, %48 : vector<64x8xf32>
    %50 = vector.extract_strided_slice %5 {offsets = [576, 0], sizes = [64, 1], strides = [1, 1]} : vector<1024x1xbf16> to vector<64x1xbf16>
    %51 = vector.extract_strided_slice %3 {offsets = [9, 0, 0], sizes = [1, 1, 8], strides = [1, 1, 1]} : vector<16x1x8xbf16> to vector<1x1x8xbf16>
    %52 = vector.shape_cast %51 : vector<1x1x8xbf16> to vector<1x8xbf16>
    %cst_16 = arith.constant dense<0.000000e+00> : vector<64x8xf32>
    %53 = tpu.matmul %50, %52, %cst_16 {dimension_numbers = #tpu.dot_dimension_numbers<[1], [0], [0], [1], [0, 0, 1, 1], [], []>} : vector<64x1xbf16>, vector<1x8xbf16>, vector<64x8xf32> -> vector<64x8xf32>
    %54 = arith.addf %49, %53 : vector<64x8xf32>
    %55 = vector.extract_strided_slice %5 {offsets = [640, 0], sizes = [64, 1], strides = [1, 1]} : vector<1024x1xbf16> to vector<64x1xbf16>
    %56 = vector.extract_strided_slice %3 {offsets = [10, 0, 0], sizes = [1, 1, 8], strides = [1, 1, 1]} : vector<16x1x8xbf16> to vector<1x1x8xbf16>
    %57 = vector.shape_cast %56 : vector<1x1x8xbf16> to vector<1x8xbf16>
    %cst_17 = arith.constant dense<0.000000e+00> : vector<64x8xf32>
    %58 = tpu.matmul %55, %57, %cst_17 {dimension_numbers = #tpu.dot_dimension_numbers<[1], [0], [0], [1], [0, 0, 1, 1], [], []>} : vector<64x1xbf16>, vector<1x8xbf16>, vector<64x8xf32> -> vector<64x8xf32>
    %59 = arith.addf %54, %58 : vector<64x8xf32>
    %60 = vector.extract_strided_slice %5 {offsets = [704, 0], sizes = [64, 1], strides = [1, 1]} : vector<1024x1xbf16> to vector<64x1xbf16>
    %61 = vector.extract_strided_slice %3 {offsets = [11, 0, 0], sizes = [1, 1, 8], strides = [1, 1, 1]} : vector<16x1x8xbf16> to vector<1x1x8xbf16>
    %62 = vector.shape_cast %61 : vector<1x1x8xbf16> to vector<1x8xbf16>
    %cst_18 = arith.constant dense<0.000000e+00> : vector<64x8xf32>
    %63 = tpu.matmul %60, %62, %cst_18 {dimension_numbers = #tpu.dot_dimension_numbers<[1], [0], [0], [1], [0, 0, 1, 1], [], []>} : vector<64x1xbf16>, vector<1x8xbf16>, vector<64x8xf32> -> vector<64x8xf32>
    %64 = arith.addf %59, %63 : vector<64x8xf32>
    %65 = vector.extract_strided_slice %5 {offsets = [768, 0], sizes = [64, 1], strides = [1, 1]} : vector<1024x1xbf16> to vector<64x1xbf16>
    %66 = vector.extract_strided_slice %3 {offsets = [12, 0, 0], sizes = [1, 1, 8], strides = [1, 1, 1]} : vector<16x1x8xbf16> to vector<1x1x8xbf16>
    %67 = vector.shape_cast %66 : vector<1x1x8xbf16> to vector<1x8xbf16>
    %cst_19 = arith.constant dense<0.000000e+00> : vector<64x8xf32>
    %68 = tpu.matmul %65, %67, %cst_19 {dimension_numbers = #tpu.dot_dimension_numbers<[1], [0], [0], [1], [0, 0, 1, 1], [], []>} : vector<64x1xbf16>, vector<1x8xbf16>, vector<64x8xf32> -> vector<64x8xf32>
    %69 = arith.addf %64, %68 : vector<64x8xf32>
    %70 = vector.extract_strided_slice %5 {offsets = [832, 0], sizes = [64, 1], strides = [1, 1]} : vector<1024x1xbf16> to vector<64x1xbf16>
    %71 = vector.extract_strided_slice %3 {offsets = [13, 0, 0], sizes = [1, 1, 8], strides = [1, 1, 1]} : vector<16x1x8xbf16> to vector<1x1x8xbf16>
    %72 = vector.shape_cast %71 : vector<1x1x8xbf16> to vector<1x8xbf16>
    %cst_20 = arith.constant dense<0.000000e+00> : vector<64x8xf32>
    %73 = tpu.matmul %70, %72, %cst_20 {dimension_numbers = #tpu.dot_dimension_numbers<[1], [0], [0], [1], [0, 0, 1, 1], [], []>} : vector<64x1xbf16>, vector<1x8xbf16>, vector<64x8xf32> -> vector<64x8xf32>
    %74 = arith.addf %69, %73 : vector<64x8xf32>
    %75 = vector.extract_strided_slice %5 {offsets = [896, 0], sizes = [64, 1], strides = [1, 1]} : vector<1024x1xbf16> to vector<64x1xbf16>
    %76 = vector.extract_strided_slice %3 {offsets = [14, 0, 0], sizes = [1, 1, 8], strides = [1, 1, 1]} : vector<16x1x8xbf16> to vector<1x1x8xbf16>
    %77 = vector.shape_cast %76 : vector<1x1x8xbf16> to vector<1x8xbf16>
    %cst_21 = arith.constant dense<0.000000e+00> : vector<64x8xf32>
    %78 = tpu.matmul %75, %77, %cst_21 {dimension_numbers = #tpu.dot_dimension_numbers<[1], [0], [0], [1], [0, 0, 1, 1], [], []>} : vector<64x1xbf16>, vector<1x8xbf16>, vector<64x8xf32> -> vector<64x8xf32>
    %79 = arith.addf %74, %78 : vector<64x8xf32>
    %80 = vector.extract_strided_slice %5 {offsets = [960, 0], sizes = [64, 1], strides = [1, 1]} : vector<1024x1xbf16> to vector<64x1xbf16>
    %81 = vector.extract_strided_slice %3 {offsets = [15, 0, 0], sizes = [1, 1, 8], strides = [1, 1, 1]} : vector<16x1x8xbf16> to vector<1x1x8xbf16>
    %82 = vector.shape_cast %81 : vector<1x1x8xbf16> to vector<1x8xbf16>
    %cst_22 = arith.constant dense<0.000000e+00> : vector<64x8xf32>
    %83 = tpu.matmul %80, %82, %cst_22 {dimension_numbers = #tpu.dot_dimension_numbers<[1], [0], [0], [1], [0, 0, 1, 1], [], []>} : vector<64x1xbf16>, vector<1x8xbf16>, vector<64x8xf32> -> vector<64x8xf32>
    %84 = arith.addf %79, %83 : vector<64x8xf32>
    %cst_23 = arith.constant 0.000000e+00 : f32
    %85 = vector.broadcast %cst_23 : f32 to vector<64x8xf32>
    %86 = arith.cmpf oge, %84, %85 : vector<64x8xf32>
    %cst_24 = arith.constant 2.000000e-01 : f32
    %87 = vector.broadcast %cst_24 : f32 to vector<64x8xf32>
    %88 = arith.mulf %87, %84 : vector<64x8xf32>
    %89 = arith.select %86, %84, %88 : vector<64x8xi1>, vector<64x8xf32>
    %90 = arith.truncf %89 : vector<64x8xf32> to vector<64x8xbf16>
    %c0_25 = arith.constant 0 : index
    %c0_26 = arith.constant 0 : index
    %91 = vector.load %arg4[%c0_25, %c0_26] : memref<256x64xbf16, #tpu.memory_space<vmem>>, vector<256x64xbf16>
    %c0_27 = arith.constant 0 : index
    %c0_28 = arith.constant 0 : index
    %c0_29 = arith.constant 0 : index
    %92 = vector.load %arg5[%c0_27, %c0_28, %c0_29] : memref<16x8x16xbf16, #tpu.memory_space<vmem>>, vector<16x8x16xbf16>
    %cst_30 = arith.constant dense<0.000000e+00> : vector<256x8xf32>
    %93 = tpu.matmul %91, %90, %cst_30 {dimension_numbers = #tpu.dot_dimension_numbers<[1], [0], [0], [1], [0, 0, 1, 1], [], []>} : vector<256x64xbf16>, vector<64x8xbf16>, vector<256x8xf32> -> vector<256x8xf32>
    %94 = arith.truncf %93 : vector<256x8xf32> to vector<256x8xbf16>
    %95 = vector.extract_strided_slice %94 {offsets = [0, 0], sizes = [16, 8], strides = [1, 1]} : vector<256x8xbf16> to vector<16x8xbf16>
    %96 = vector.extract_strided_slice %92 {offsets = [0, 0, 0], sizes = [1, 8, 16], strides = [1, 1, 1]} : vector<16x8x16xbf16> to vector<1x8x16xbf16>
    %97 = vector.shape_cast %96 : vector<1x8x16xbf16> to vector<8x16xbf16>
    %cst_31 = arith.constant dense<0.000000e+00> : vector<16x16xf32>
    %98 = tpu.matmul %95, %97, %cst_31 {dimension_numbers = #tpu.dot_dimension_numbers<[1], [0], [0], [1], [0, 0, 1, 1], [], []>} : vector<16x8xbf16>, vector<8x16xbf16>, vector<16x16xf32> -> vector<16x16xf32>
    %99 = vector.extract_strided_slice %94 {offsets = [16, 0], sizes = [16, 8], strides = [1, 1]} : vector<256x8xbf16> to vector<16x8xbf16>
    %100 = vector.extract_strided_slice %92 {offsets = [1, 0, 0], sizes = [1, 8, 16], strides = [1, 1, 1]} : vector<16x8x16xbf16> to vector<1x8x16xbf16>
    %101 = vector.shape_cast %100 : vector<1x8x16xbf16> to vector<8x16xbf16>
    %cst_32 = arith.constant dense<0.000000e+00> : vector<16x16xf32>
    %102 = tpu.matmul %99, %101, %cst_32 {dimension_numbers = #tpu.dot_dimension_numbers<[1], [0], [0], [1], [0, 0, 1, 1], [], []>} : vector<16x8xbf16>, vector<8x16xbf16>, vector<16x16xf32> -> vector<16x16xf32>
    %103 = arith.addf %98, %102 : vector<16x16xf32>
    %104 = vector.extract_strided_slice %94 {offsets = [32, 0], sizes = [16, 8], strides = [1, 1]} : vector<256x8xbf16> to vector<16x8xbf16>
    %105 = vector.extract_strided_slice %92 {offsets = [2, 0, 0], sizes = [1, 8, 16], strides = [1, 1, 1]} : vector<16x8x16xbf16> to vector<1x8x16xbf16>
    %106 = vector.shape_cast %105 : vector<1x8x16xbf16> to vector<8x16xbf16>
    %cst_33 = arith.constant dense<0.000000e+00> : vector<16x16xf32>
    %107 = tpu.matmul %104, %106, %cst_33 {dimension_numbers = #tpu.dot_dimension_numbers<[1], [0], [0], [1], [0, 0, 1, 1], [], []>} : vector<16x8xbf16>, vector<8x16xbf16>, vector<16x16xf32> -> vector<16x16xf32>
    %108 = arith.addf %103, %107 : vector<16x16xf32>
    %109 = vector.extract_strided_slice %94 {offsets = [48, 0], sizes = [16, 8], strides = [1, 1]} : vector<256x8xbf16> to vector<16x8xbf16>
    %110 = vector.extract_strided_slice %92 {offsets = [3, 0, 0], sizes = [1, 8, 16], strides = [1, 1, 1]} : vector<16x8x16xbf16> to vector<1x8x16xbf16>
    %111 = vector.shape_cast %110 : vector<1x8x16xbf16> to vector<8x16xbf16>
    %cst_34 = arith.constant dense<0.000000e+00> : vector<16x16xf32>
    %112 = tpu.matmul %109, %111, %cst_34 {dimension_numbers = #tpu.dot_dimension_numbers<[1], [0], [0], [1], [0, 0, 1, 1], [], []>} : vector<16x8xbf16>, vector<8x16xbf16>, vector<16x16xf32> -> vector<16x16xf32>
    %113 = arith.addf %108, %112 : vector<16x16xf32>
    %114 = vector.extract_strided_slice %94 {offsets = [64, 0], sizes = [16, 8], strides = [1, 1]} : vector<256x8xbf16> to vector<16x8xbf16>
    %115 = vector.extract_strided_slice %92 {offsets = [4, 0, 0], sizes = [1, 8, 16], strides = [1, 1, 1]} : vector<16x8x16xbf16> to vector<1x8x16xbf16>
    %116 = vector.shape_cast %115 : vector<1x8x16xbf16> to vector<8x16xbf16>
    %cst_35 = arith.constant dense<0.000000e+00> : vector<16x16xf32>
    %117 = tpu.matmul %114, %116, %cst_35 {dimension_numbers = #tpu.dot_dimension_numbers<[1], [0], [0], [1], [0, 0, 1, 1], [], []>} : vector<16x8xbf16>, vector<8x16xbf16>, vector<16x16xf32> -> vector<16x16xf32>
    %118 = arith.addf %113, %117 : vector<16x16xf32>
    %119 = vector.extract_strided_slice %94 {offsets = [80, 0], sizes = [16, 8], strides = [1, 1]} : vector<256x8xbf16> to vector<16x8xbf16>
    %120 = vector.extract_strided_slice %92 {offsets = [5, 0, 0], sizes = [1, 8, 16], strides = [1, 1, 1]} : vector<16x8x16xbf16> to vector<1x8x16xbf16>
    %121 = vector.shape_cast %120 : vector<1x8x16xbf16> to vector<8x16xbf16>
    %cst_36 = arith.constant dense<0.000000e+00> : vector<16x16xf32>
    %122 = tpu.matmul %119, %121, %cst_36 {dimension_numbers = #tpu.dot_dimension_numbers<[1], [0], [0], [1], [0, 0, 1, 1], [], []>} : vector<16x8xbf16>, vector<8x16xbf16>, vector<16x16xf32> -> vector<16x16xf32>
    %123 = arith.addf %118, %122 : vector<16x16xf32>
    %124 = vector.extract_strided_slice %94 {offsets = [96, 0], sizes = [16, 8], strides = [1, 1]} : vector<256x8xbf16> to vector<16x8xbf16>
    %125 = vector.extract_strided_slice %92 {offsets = [6, 0, 0], sizes = [1, 8, 16], strides = [1, 1, 1]} : vector<16x8x16xbf16> to vector<1x8x16xbf16>
    %126 = vector.shape_cast %125 : vector<1x8x16xbf16> to vector<8x16xbf16>
    %cst_37 = arith.constant dense<0.000000e+00> : vector<16x16xf32>
    %127 = tpu.matmul %124, %126, %cst_37 {dimension_numbers = #tpu.dot_dimension_numbers<[1], [0], [0], [1], [0, 0, 1, 1], [], []>} : vector<16x8xbf16>, vector<8x16xbf16>, vector<16x16xf32> -> vector<16x16xf32>
    %128 = arith.addf %123, %127 : vector<16x16xf32>
    %129 = vector.extract_strided_slice %94 {offsets = [112, 0], sizes = [16, 8], strides = [1, 1]} : vector<256x8xbf16> to vector<16x8xbf16>
    %130 = vector.extract_strided_slice %92 {offsets = [7, 0, 0], sizes = [1, 8, 16], strides = [1, 1, 1]} : vector<16x8x16xbf16> to vector<1x8x16xbf16>
    %131 = vector.shape_cast %130 : vector<1x8x16xbf16> to vector<8x16xbf16>
    %cst_38 = arith.constant dense<0.000000e+00> : vector<16x16xf32>
    %132 = tpu.matmul %129, %131, %cst_38 {dimension_numbers = #tpu.dot_dimension_numbers<[1], [0], [0], [1], [0, 0, 1, 1], [], []>} : vector<16x8xbf16>, vector<8x16xbf16>, vector<16x16xf32> -> vector<16x16xf32>
    %133 = arith.addf %128, %132 : vector<16x16xf32>
    %134 = vector.extract_strided_slice %94 {offsets = [128, 0], sizes = [16, 8], strides = [1, 1]} : vector<256x8xbf16> to vector<16x8xbf16>
    %135 = vector.extract_strided_slice %92 {offsets = [8, 0, 0], sizes = [1, 8, 16], strides = [1, 1, 1]} : vector<16x8x16xbf16> to vector<1x8x16xbf16>
    %136 = vector.shape_cast %135 : vector<1x8x16xbf16> to vector<8x16xbf16>
    %cst_39 = arith.constant dense<0.000000e+00> : vector<16x16xf32>
    %137 = tpu.matmul %134, %136, %cst_39 {dimension_numbers = #tpu.dot_dimension_numbers<[1], [0], [0], [1], [0, 0, 1, 1], [], []>} : vector<16x8xbf16>, vector<8x16xbf16>, vector<16x16xf32> -> vector<16x16xf32>
    %138 = arith.addf %133, %137 : vector<16x16xf32>
    %139 = vector.extract_strided_slice %94 {offsets = [144, 0], sizes = [16, 8], strides = [1, 1]} : vector<256x8xbf16> to vector<16x8xbf16>
    %140 = vector.extract_strided_slice %92 {offsets = [9, 0, 0], sizes = [1, 8, 16], strides = [1, 1, 1]} : vector<16x8x16xbf16> to vector<1x8x16xbf16>
    %141 = vector.shape_cast %140 : vector<1x8x16xbf16> to vector<8x16xbf16>
    %cst_40 = arith.constant dense<0.000000e+00> : vector<16x16xf32>
    %142 = tpu.matmul %139, %141, %cst_40 {dimension_numbers = #tpu.dot_dimension_numbers<[1], [0], [0], [1], [0, 0, 1, 1], [], []>} : vector<16x8xbf16>, vector<8x16xbf16>, vector<16x16xf32> -> vector<16x16xf32>
    %143 = arith.addf %138, %142 : vector<16x16xf32>
    %144 = vector.extract_strided_slice %94 {offsets = [160, 0], sizes = [16, 8], strides = [1, 1]} : vector<256x8xbf16> to vector<16x8xbf16>
    %145 = vector.extract_strided_slice %92 {offsets = [10, 0, 0], sizes = [1, 8, 16], strides = [1, 1, 1]} : vector<16x8x16xbf16> to vector<1x8x16xbf16>
    %146 = vector.shape_cast %145 : vector<1x8x16xbf16> to vector<8x16xbf16>
    %cst_41 = arith.constant dense<0.000000e+00> : vector<16x16xf32>
    %147 = tpu.matmul %144, %146, %cst_41 {dimension_numbers = #tpu.dot_dimension_numbers<[1], [0], [0], [1], [0, 0, 1, 1], [], []>} : vector<16x8xbf16>, vector<8x16xbf16>, vector<16x16xf32> -> vector<16x16xf32>
    %148 = arith.addf %143, %147 : vector<16x16xf32>
    %149 = vector.extract_strided_slice %94 {offsets = [176, 0], sizes = [16, 8], strides = [1, 1]} : vector<256x8xbf16> to vector<16x8xbf16>
    %150 = vector.extract_strided_slice %92 {offsets = [11, 0, 0], sizes = [1, 8, 16], strides = [1, 1, 1]} : vector<16x8x16xbf16> to vector<1x8x16xbf16>
    %151 = vector.shape_cast %150 : vector<1x8x16xbf16> to vector<8x16xbf16>
    %cst_42 = arith.constant dense<0.000000e+00> : vector<16x16xf32>
    %152 = tpu.matmul %149, %151, %cst_42 {dimension_numbers = #tpu.dot_dimension_numbers<[1], [0], [0], [1], [0, 0, 1, 1], [], []>} : vector<16x8xbf16>, vector<8x16xbf16>, vector<16x16xf32> -> vector<16x16xf32>
    %153 = arith.addf %148, %152 : vector<16x16xf32>
    %154 = vector.extract_strided_slice %94 {offsets = [192, 0], sizes = [16, 8], strides = [1, 1]} : vector<256x8xbf16> to vector<16x8xbf16>
    %155 = vector.extract_strided_slice %92 {offsets = [12, 0, 0], sizes = [1, 8, 16], strides = [1, 1, 1]} : vector<16x8x16xbf16> to vector<1x8x16xbf16>
    %156 = vector.shape_cast %155 : vector<1x8x16xbf16> to vector<8x16xbf16>
    %cst_43 = arith.constant dense<0.000000e+00> : vector<16x16xf32>
    %157 = tpu.matmul %154, %156, %cst_43 {dimension_numbers = #tpu.dot_dimension_numbers<[1], [0], [0], [1], [0, 0, 1, 1], [], []>} : vector<16x8xbf16>, vector<8x16xbf16>, vector<16x16xf32> -> vector<16x16xf32>
    %158 = arith.addf %153, %157 : vector<16x16xf32>
    %159 = vector.extract_strided_slice %94 {offsets = [208, 0], sizes = [16, 8], strides = [1, 1]} : vector<256x8xbf16> to vector<16x8xbf16>
    %160 = vector.extract_strided_slice %92 {offsets = [13, 0, 0], sizes = [1, 8, 16], strides = [1, 1, 1]} : vector<16x8x16xbf16> to vector<1x8x16xbf16>
    %161 = vector.shape_cast %160 : vector<1x8x16xbf16> to vector<8x16xbf16>
    %cst_44 = arith.constant dense<0.000000e+00> : vector<16x16xf32>
    %162 = tpu.matmul %159, %161, %cst_44 {dimension_numbers = #tpu.dot_dimension_numbers<[1], [0], [0], [1], [0, 0, 1, 1], [], []>} : vector<16x8xbf16>, vector<8x16xbf16>, vector<16x16xf32> -> vector<16x16xf32>
    %163 = arith.addf %158, %162 : vector<16x16xf32>
    %164 = vector.extract_strided_slice %94 {offsets = [224, 0], sizes = [16, 8], strides = [1, 1]} : vector<256x8xbf16> to vector<16x8xbf16>
    %165 = vector.extract_strided_slice %92 {offsets = [14, 0, 0], sizes = [1, 8, 16], strides = [1, 1, 1]} : vector<16x8x16xbf16> to vector<1x8x16xbf16>
    %166 = vector.shape_cast %165 : vector<1x8x16xbf16> to vector<8x16xbf16>
    %cst_45 = arith.constant dense<0.000000e+00> : vector<16x16xf32>
    %167 = tpu.matmul %164, %166, %cst_45 {dimension_numbers = #tpu.dot_dimension_numbers<[1], [0], [0], [1], [0, 0, 1, 1], [], []>} : vector<16x8xbf16>, vector<8x16xbf16>, vector<16x16xf32> -> vector<16x16xf32>
    %168 = arith.addf %163, %167 : vector<16x16xf32>
    %169 = vector.extract_strided_slice %94 {offsets = [240, 0], sizes = [16, 8], strides = [1, 1]} : vector<256x8xbf16> to vector<16x8xbf16>
    %170 = vector.extract_strided_slice %92 {offsets = [15, 0, 0], sizes = [1, 8, 16], strides = [1, 1, 1]} : vector<16x8x16xbf16> to vector<1x8x16xbf16>
    %171 = vector.shape_cast %170 : vector<1x8x16xbf16> to vector<8x16xbf16>
    %cst_46 = arith.constant dense<0.000000e+00> : vector<16x16xf32>
    %172 = tpu.matmul %169, %171, %cst_46 {dimension_numbers = #tpu.dot_dimension_numbers<[1], [0], [0], [1], [0, 0, 1, 1], [], []>} : vector<16x8xbf16>, vector<8x16xbf16>, vector<16x16xf32> -> vector<16x16xf32>
    %173 = arith.addf %168, %172 : vector<16x16xf32>
    %cst_47 = arith.constant 0.000000e+00 : f32
    %174 = vector.broadcast %cst_47 : f32 to vector<16x16xf32>
    %175 = arith.cmpf oge, %173, %174 : vector<16x16xf32>
    %cst_48 = arith.constant 2.000000e-01 : f32
    %176 = vector.broadcast %cst_48 : f32 to vector<16x16xf32>
    %177 = arith.mulf %176, %173 : vector<16x16xf32>
    %178 = arith.select %175, %173, %177 : vector<16x16xi1>, vector<16x16xf32>
    %c0_49 = arith.constant 0 : index
    %c0_50 = arith.constant 0 : index
    %179 = vector.load %arg6[%c0_49, %c0_50] : memref<16x16xf32, #tpu.memory_space<vmem>>, vector<16x16xf32>
    %180 = arith.mulf %178, %179 : vector<16x16xf32>
    %cst_51 = arith.constant dense<0.000000e+00> : vector<16xf32>
    %181 = vector.multi_reduction <add>, %180, %cst_51 [1] : vector<16x16xf32> to vector<16xf32>
    %182 = vector.shape_cast %181 : vector<16xf32> to vector<16x1xf32>
    %cst_52 = arith.constant dense<0.000000e+00> : vector<1xf32>
    %183 = vector.multi_reduction <add>, %182, %cst_52 [0] : vector<16x1xf32> to vector<1xf32>
    %184 = vector.shape_cast %183 : vector<1xf32> to vector<1x1xf32>
    %c0_53 = arith.constant 0 : index
    %c0_54 = arith.constant 0 : index
    %c0_55 = arith.constant 0 : index
    %185 = vector.load %arg7[%c0_53, %c0_54, %c0_55] : memref<1x1x1xf32, #tpu.memory_space<vmem>>, vector<1x1x1xf32>
    %186 = vector.shape_cast %185 : vector<1x1x1xf32> to vector<1x1xf32>
    %187 = vector.shape_cast %184 : vector<1x1xf32> to vector<1x1x1xf32>
    tpu.vector_store %arg7[%c0_53, %c0_54, %c0_55], %187 {strides = array<i32>} : memref<1x1x1xf32, #tpu.memory_space<vmem>>, vector<1x1x1xf32>,
    return
  }
  func.func @transform_0(%arg0: i32) -> (i32, i32, i32) {
    %c0_i32 = arith.constant 0 : i32
    %c0_i32_0 = arith.constant 0 : i32
    %c0_i32_1 = arith.constant 0 : i32
    return %arg0, %c0_i32, %c0_i32_0 : i32, i32, i32
  }
  func.func @transform_1(%arg0: i32) -> (i32, i32) {
    %c0_i32 = arith.constant 0 : i32
    %c0_i32_0 = arith.constant 0 : i32
    %c0_i32_1 = arith.constant 0 : i32
    return %c0_i32, %c0_i32_0 : i32, i32
  }
  func.func @transform_2(%arg0: i32) -> (i32, i32, i32) {
    %c0_i32 = arith.constant 0 : i32
    %c0_i32_0 = arith.constant 0 : i32
    %c0_i32_1 = arith.constant 0 : i32
    %c0_i32_2 = arith.constant 0 : i32
    return %c0_i32, %c0_i32_0, %c0_i32_1 : i32, i32, i32
  }
  func.func @transform_3(%arg0: i32) -> (i32, i32) {
    %c0_i32 = arith.constant 0 : i32
    %c0_i32_0 = arith.constant 0 : i32
    %c0_i32_1 = arith.constant 0 : i32
    return %c0_i32, %c0_i32_0 : i32, i32
  }
  func.func @transform_4(%arg0: i32) -> (i32, i32, i32) {
    %c0_i32 = arith.constant 0 : i32
    %c0_i32_0 = arith.constant 0 : i32
    %c0_i32_1 = arith.constant 0 : i32
    %c0_i32_2 = arith.constant 0 : i32
    return %c0_i32, %c0_i32_0, %c0_i32_1 : i32, i32, i32
  }
  func.func @transform_5(%arg0: i32) -> (i32, i32) {
    %c0_i32 = arith.constant 0 : i32
    %c0_i32_0 = arith.constant 0 : i32
    %c0_i32_1 = arith.constant 0 : i32
    return %c0_i32, %c0_i32_0 : i32, i32
  }
  func.func @transform_6(%arg0: i32) -> (i32, i32, i32) {
    %c0_i32 = arith.constant 0 : i32
    %c0_i32_0 = arith.constant 0 : i32
    %c0_i32_1 = arith.constant 0 : i32
    return %arg0, %c0_i32, %c0_i32_0 : i32, i32, i32
  }
}

</mosaic_0001>

<llo_original>
// kernel: tpu_custom_call.1
$region0: #{tpu_custom_call.1}
  #allocation0 [shape = 'u32[]', space=smem, size = 0x4, offset = 0x4, fixed_abs, tag = 'smem constant byte address 0x4 - core index']
  #allocation1 [shape = 'u32[144,128]{1,0:T(1,128)}', space=vmem, size = 0x12000, scoped, tag = 'internal scratch']
  %s0 = inlined_call_operand.vmem [shape: bf16[2,256,1], index: 0, kind: input, shape index: {}]
  %s1 = inlined_call_operand.hbm [shape: bf16[1024,256], index: 1, kind: input, shape index: {}]
  %s2 = inlined_call_operand.vmem [shape: bf16[16,1,8], index: 2, kind: input, shape index: {}]
  %s3 = inlined_call_operand.vmem [shape: bf16[256,64], index: 3, kind: input, shape index: {}]
  %s4 = inlined_call_operand.vmem [shape: bf16[16,8,16], index: 4, kind: input, shape index: {}]
  %s5 = inlined_call_operand.vmem [shape: f32[16,16], index: 5, kind: input, shape index: {}]
  %s6 = inlined_call_operand.vmem [shape: f32[2,1,1], index: 6, kind: output, shape index: {}]
  %s7 = sld [smem:[#allocation0]]
  $region61: #{tpu_custom_call.1} parent=0
    _
  %s9 = ssub.s32 1, %s7
  %s10 = scalar_select 0, %s9, %s7
  $region1: #{tpu_custom_call.1} parent=0
    #allocation2 [shape = 'u8[524288]{0}', space=vmem, size = 0x80000, scoped, tag = 'input window, operand 1, single buffered']
    #allocation3 [shape = 's32[2]{0}', space=sflag, size = 0x8, scoped, tag = 'scoped memory for tpu_custom_call.1']
    %11 = vsyncpa [#allocation3], 0
    loop: start=0, step=1, limit=4
    $region2: #{tpu_custom_call.1} parent=1 // loop_pre_header
      _
    $region3: #{tpu_custom_call.1} parent=1 // loop_header
      %s13 = sphi 0, %s17
      %p14 = scmp.ge.s32.totalorder %s13, 4
      %s23 = sphi 0, %s25
      %s26 = sphi 0, %s23
      %s27 = sphi 0, %s26
      %s43 = sphi 0, %s27
      %s47 = sphi 0, %s47
      %s49 = sphi 0, %s47
      %s50 = sphi 0, %s49
      %s64 = sphi 0, %s50
      %s68 = sphi 0, %s68
      %s70 = sphi 0, %s68
      %s71 = sphi 0, %s70
      %s85 = sphi 0, %s71
      %s89 = sphi 0, %s89
      %s91 = sphi 0, %s89
      %s92 = sphi 0, %s91
      %s106 = sphi 0, %s92
      %s110 = sphi 0, %s110
      %s112 = sphi 0, %s110
      %s113 = sphi 0, %s112
      %s127 = sphi 0, %s113
      %s131 = sphi 0, %s131
      %s133 = sphi 0, %s131
      %s134 = sphi 0, %s133
      %s148 = sphi 0, %s134
      %s154 = sphi 0, %s156
      %s157 = sphi 0, %s154
      %s158 = sphi 0, %s157
      %s174 = sphi 0, %s158
    $region4: #{tpu_custom_call.1} parent=1 // loop_header_branch
      %16 = sbr.rel (%p14) target = $region8
    $region5: #{tpu_custom_call.1} parent=1 // loop_body
      %s18 = ssub.s32 %s13, 1
      %s19 = ssub.s32 %s13, 2
      %s20 = sadd.s32 %s13, 1
      %s21 = ssub.s32 %s13, %s20
      %p22 = scmp.eq.s32.totalorder %s21, 0
      %s24 = sadd.s32 %s23, 1
      %s25 = scalar_select %p22, %s23, %s24
      %p28 = pneg %p22
      %p29 = scmp.eq.s32.totalorder %s13, 1
      %p30 = por %p28, %p29
      %p31 = scmp.ne.s32.totalorder %s23, %s26
      %p32 = scmp.eq.s32.totalorder %s13, 0
      %p33 = por %p31, %p32
      %p34 = scmp.ne.s32.totalorder %s23, %s26
      %p35 = scmp.eq.s32.totalorder %s18, 1
      %p36 = por %p34, %p35
      %p37 = scmp.ne.s32.totalorder %s26, %s27
      %p38 = scmp.eq.s32.totalorder %s18, 0
      %p39 = por %p37, %p38
      %p40 = scmp.ne.s32.totalorder %s26, %s27
      %p41 = scmp.eq.s32.totalorder %s19, 1
      %p42 = por %p40, %p41
      %p44 = scmp.ne.s32.totalorder %s27, %s43
      %p45 = scmp.eq.s32.totalorder %s19, 0
      %p46 = por %p44, %p45
      %s48 = sadd.s32 %s47, 1
      %p51 = scmp.eq.s32.totalorder %s13, 1
      %p52 = scmp.ne.s32.totalorder %s47, %s49
      %p53 = scmp.eq.s32.totalorder %s13, 0
      %p54 = por %p52, %p53
      %p55 = scmp.ne.s32.totalorder %s47, %s49
      %p56 = scmp.eq.s32.totalorder %s18, 1
      %p57 = por %p55, %p56
      %p58 = scmp.ne.s32.totalorder %s49, %s50
      %p59 = scmp.eq.s32.totalorder %s18, 0
      %p60 = por %p58, %p59
      %p61 = scmp.ne.s32.totalorder %s49, %s50
      %p62 = scmp.eq.s32.totalorder %s19, 1
      %p63 = por %p61, %p62
      %p65 = scmp.ne.s32.totalorder %s50, %s64
      %p66 = scmp.eq.s32.totalorder %s19, 0
      %p67 = por %p65, %p66
      %s69 = sadd.s32 %s68, 1
      %p72 = scmp.eq.s32.totalorder %s13, 1
      %p73 = scmp.ne.s32.totalorder %s68, %s70
      %p74 = scmp.eq.s32.totalorder %s13, 0
      %p75 = por %p73, %p74
      %p76 = scmp.ne.s32.totalorder %s68, %s70
      %p77 = scmp.eq.s32.totalorder %s18, 1
      %p78 = por %p76, %p77
      %p79 = scmp.ne.s32.totalorder %s70, %s71
      %p80 = scmp.eq.s32.totalorder %s18, 0
      %p81 = por %p79, %p80
      %p82 = scmp.ne.s32.totalorder %s70, %s71
      %p83 = scmp.eq.s32.totalorder %s19, 1
      %p84 = por %p82, %p83
      %p86 = scmp.ne.s32.totalorder %s71, %s85
      %p87 = scmp.eq.s32.totalorder %s19, 0
      %p88 = por %p86, %p87
      %s90 = sadd.s32 %s89, 1
      %p93 = scmp.eq.s32.totalorder %s13, 1
      %p94 = scmp.ne.s32.totalorder %s89, %s91
      %p95 = scmp.eq.s32.totalorder %s13, 0
      %p96 = por %p94, %p95
      %p97 = scmp.ne.s32.totalorder %s89, %s91
      %p98 = scmp.eq.s32.totalorder %s18, 1
      %p99 = por %p97, %p98
      %p100 = scmp.ne.s32.totalorder %s91, %s92
      %p101 = scmp.eq.s32.totalorder %s18, 0
      %p102 = por %p100, %p101
      %p103 = scmp.ne.s32.totalorder %s91, %s92
      %p104 = scmp.eq.s32.totalorder %s19, 1
      %p105 = por %p103, %p104
      %p107 = scmp.ne.s32.totalorder %s92, %s106
      %p108 = scmp.eq.s32.totalorder %s19, 0
      %p109 = por %p107, %p108
      %s111 = sadd.s32 %s110, 1
      %p114 = scmp.eq.s32.totalorder %s13, 1
      %p115 = scmp.ne.s32.totalorder %s110, %s112
      %p116 = scmp.eq.s32.totalorder %s13, 0
      %p117 = por %p115, %p116
      %p118 = scmp.ne.s32.totalorder %s110, %s112
      %p119 = scmp.eq.s32.totalorder %s18, 1
      %p120 = por %p118, %p119
      %p121 = scmp.ne.s32.totalorder %s112, %s113
      %p122 = scmp.eq.s32.totalorder %s18, 0
      %p123 = por %p121, %p122
      %p124 = scmp.ne.s32.totalorder %s112, %s113
      %p125 = scmp.eq.s32.totalorder %s19, 1
      %p126 = por %p124, %p125
      %p128 = scmp.ne.s32.totalorder %s113, %s127
      %p129 = scmp.eq.s32.totalorder %s19, 0
      %p130 = por %p128, %p129
      %s132 = sadd.s32 %s131, 1
      %p135 = scmp.eq.s32.totalorder %s13, 1
      %p136 = scmp.ne.s32.totalorder %s131, %s133
      %p137 = scmp.eq.s32.totalorder %s13, 0
      %p138 = por %p136, %p137
      %p139 = scmp.ne.s32.totalorder %s131, %s133
      %p140 = scmp.eq.s32.totalorder %s18, 1
      %p141 = por %p139, %p140
      %p142 = scmp.ne.s32.totalorder %s133, %s134
      %p143 = scmp.eq.s32.totalorder %s18, 0
      %p144 = por %p142, %p143
      %p145 = scmp.ne.s32.totalorder %s133, %s134
      %p146 = scmp.eq.s32.totalorder %s19, 1
      %p147 = por %p145, %p146
      %p149 = scmp.ne.s32.totalorder %s134, %s148
      %p150 = scmp.eq.s32.totalorder %s19, 0
      %p151 = por %p149, %p150
      %s152 = ssub.s32 %s13, %s20
      %p153 = scmp.eq.s32.totalorder %s152, 0
      %s155 = sadd.s32 %s154, 1
      %s156 = scalar_select %p153, %s154, %s155
      %p159 = pneg %p153
      %p160 = scmp.eq.s32.totalorder %s13, 1
      %p161 = por %p159, %p160
      %p162 = scmp.ne.s32.totalorder %s154, %s157
      %p163 = scmp.eq.s32.totalorder %s13, 0
      %p164 = por %p162, %p163
      %p165 = scmp.ne.s32.totalorder %s154, %s157
      %p166 = scmp.eq.s32.totalorder %s18, 1
      %p167 = por %p165, %p166
      %p168 = scmp.ne.s32.totalorder %s157, %s158
      %p169 = scmp.eq.s32.totalorder %s18, 0
      %p170 = por %p168, %p169
      %p171 = scmp.ne.s32.totalorder %s157, %s158
      %p172 = scmp.eq.s32.totalorder %s19, 1
      %p173 = por %p171, %p172
      %p175 = scmp.ne.s32.totalorder %s158, %s174
      %p176 = scmp.eq.s32.totalorder %s19, 0
      %p177 = por %p175, %p176
      %p178 = scmp.le.s32.totalorder 1, %s13
      %p179 = scmp.lt.s32.totalorder %s13, 3
      %p180 = pnand %p178, %p179
      %p181 = pneg %p180
      // Predicated region
      $region9: #{tpu_custom_call.1} parent=5 // pred_check
        _
      $region10: #{tpu_custom_call.1} parent=5 // pred_check_branch
        %183 = sbr.rel (%p180) target = $region12
      $region11: #{tpu_custom_call.1} parent=5 // pred_region
        %s184 = ssub.s32 %s13, 1
        // Predicated region
        $region13: #{tpu_custom_call.1} parent=11 // pred_check
          %p185 = pneg %p60
        $region14: #{tpu_custom_call.1} parent=11 // pred_check_branch
          %187 = sbr.rel (%p185) target = $region16
        $region15: #{tpu_custom_call.1} parent=11 // pred_region
          %s189 = ssub.s32 16384, 16384
          %190 = vsyncadd [#allocation3], %s189
          %s191 = sshll.u32 [#allocation2], 4
          %s192 = int_to_ptr.vmem [resolvable:$true] %s191
          %197 = dma.hbm_to_vmem [thread:$0]  %s1, 16384, %s192, [#allocation3], 128, 128, 8
        $region16: #{tpu_custom_call.1} parent=11 // pred_fallthru
          _
        // Predicated region
        $region17: #{tpu_custom_call.1} parent=11 // pred_check
          %p198 = pneg %p81
        $region18: #{tpu_custom_call.1} parent=11 // pred_check_branch
          %200 = sbr.rel (%p198) target = $region20
        $region19: #{tpu_custom_call.1} parent=11 // pred_region
          _
        $region20: #{tpu_custom_call.1} parent=11 // pred_fallthru
          _
        // Predicated region
        $region21: #{tpu_custom_call.1} parent=11 // pred_check
          %p201 = pneg %p102
        $region22: #{tpu_custom_call.1} parent=11 // pred_check_branch
          %203 = sbr.rel (%p201) target = $region24
        $region23: #{tpu_custom_call.1} parent=11 // pred_region
          _
        $region24: #{tpu_custom_call.1} parent=11 // pred_fallthru
          _
        // Predicated region
        $region25: #{tpu_custom_call.1} parent=11 // pred_check
          %p204 = pneg %p123
        $region26: #{tpu_custom_call.1} parent=11 // pred_check_branch
          %206 = sbr.rel (%p204) target = $region28
        $region27: #{tpu_custom_call.1} parent=11 // pred_region
          _
        $region28: #{tpu_custom_call.1} parent=11 // pred_fallthru
          _
        // Predicated region
        $region29: #{tpu_custom_call.1} parent=11 // pred_check
          %p207 = pneg %p144
        $region30: #{tpu_custom_call.1} parent=11 // pred_check_branch
          %209 = sbr.rel (%p207) target = $region32
        $region31: #{tpu_custom_call.1} parent=11 // pred_region
          _
        $region32: #{tpu_custom_call.1} parent=11 // pred_fallthru
          _
      $region12: #{tpu_custom_call.1} parent=5 // pred_fallthru
        _
      %p210 = scmp.lt.s32.totalorder %s13, 2
      // Predicated region
      $region33: #{tpu_custom_call.1} parent=5 // pred_check
        %p211 = pneg %p210
      $region34: #{tpu_custom_call.1} parent=5 // pred_check_branch
        %213 = sbr.rel (%p211) target = $region36
      $region35: #{tpu_custom_call.1} parent=5 // pred_region
        // Predicated region
        $region37: #{tpu_custom_call.1} parent=35 // pred_check
          %p214 = pneg %p33
        $region38: #{tpu_custom_call.1} parent=35 // pred_check_branch
          %216 = sbr.rel (%p214) target = $region40
        $region39: #{tpu_custom_call.1} parent=35 // pred_region
          %p217 = scmp.lt.s32.totalorder %s13, 1
          %s218 = scalar_select %p217, %s13, 1
          %s219 = smul.addr %s218, 32
          %s220 = smul.addr %s219, 4
          %s221 = scalar_lea.vmem %s0, %s220
        $region40: #{tpu_custom_call.1} parent=35 // pred_fallthru
          _
      $region36: #{tpu_custom_call.1} parent=5 // pred_fallthru
        _
      %p222 = scmp.le.s32.totalorder 1, %s13
      %p223 = scmp.lt.s32.totalorder %s13, 3
      %p224 = pnand %p222, %p223
      %p225 = pneg %p224
      // Predicated region
      $region41: #{tpu_custom_call.1} parent=5 // pred_check
        _
      $region42: #{tpu_custom_call.1} parent=5 // pred_check_branch
        %227 = sbr.rel (%p224) target = $region44
      $region43: #{tpu_custom_call.1} parent=5 // pred_region
        %s228 = ssub.s32 %s13, 1
        // Predicated region
        $region45: #{tpu_custom_call.1} parent=43 // pred_check
          %p229 = pneg %p60
        $region46: #{tpu_custom_call.1} parent=43 // pred_check_branch
          %231 = sbr.rel (%p229) target = $region48
        $region47: #{tpu_custom_call.1} parent=43 // pred_region
          %232 = dma.done [#allocation3], 16384
        $region48: #{tpu_custom_call.1} parent=43 // pred_fallthru
          _
        %p233 = scmp.lt.s32.totalorder %s18, 1
        %s234 = scalar_select %p233, %s18, 1
        %s235 = smul.addr %s234, 32
        %s236 = smul.addr %s235, 4
        %s237 = scalar_lea.vmem %s0, %s236
        %p238 = pneg %p39
        %p239 = pneg %p36
        %p240 = pneg %p60
        %p241 = pneg %p57
        %p242 = pneg %p81
        %p243 = pneg %p78
        %p244 = pneg %p102
        %p245 = pneg %p99
        %p246 = pneg %p123
        %p247 = pneg %p120
        %p248 = pneg %p144
        %p249 = pneg %p141
        %p250 = pneg %p170
        %p251 = pneg %p167
        %p252 = scmp.lt.s32.totalorder %s18, 1
        %s253 = scalar_select %p252, %s18, 1
        %s254 = scalar_lea.vmem %s6, %s253
        %p255 = scmp.lt.s32.totalorder %s18, 1
        %s256 = scalar_select %p255, %s18, 1
        %s257 = smul.addr %s256, 32
        %s258 = smul.addr %s257, 4
        %s259 = scalar_lea.vmem %s0, %s258
        %p260 = scmp.lt.s32.totalorder %s18, 1
        %s261 = scalar_select %p260, %s18, 1
        %s262 = scalar_lea.vmem %s6, %s261
        %v264 = vld [vmem:[%s259] sm:$0xf]
        %v265 = vld [vmem:[%s259 + $0x4] sm:$0xf]
        %v266 = vld [vmem:[%s259 + $0x8] sm:$0xf]
        %v267 = vld [vmem:[%s259 + $0xc] sm:$0xf]
        %v268 = vld [vmem:[%s259 + $0x10] sm:$0xf]
        %v269 = vld [vmem:[%s259 + $0x14] sm:$0xf]
        %v270 = vld [vmem:[%s259 + $0x18] sm:$0xf]
        %v271 = vld [vmem:[%s259 + $0x1c] sm:$0xf]
        %v272 = vld [vmem:[%s259 + $0x20] sm:$0xf]
        %v273 = vld [vmem:[%s259 + $0x24] sm:$0xf]
        %v274 = vld [vmem:[%s259 + $0x28] sm:$0xf]
        %v275 = vld [vmem:[%s259 + $0x2c] sm:$0xf]
        %v276 = vld [vmem:[%s259 + $0x30] sm:$0xf]
        %v277 = vld [vmem:[%s259 + $0x34] sm:$0xf]
        %v278 = vld [vmem:[%s259 + $0x38] sm:$0xf]
        %v279 = vld [vmem:[%s259 + $0x3c] sm:$0xf]
        %v280 = vld [vmem:[%s259 + $0x40] sm:$0xf]
        %v281 = vld [vmem:[%s259 + $0x44] sm:$0xf]
        %v282 = vld [vmem:[%s259 + $0x48] sm:$0xf]
        %v283 = vld [vmem:[%s259 + $0x4c] sm:$0xf]
        %v284 = vld [vmem:[%s259 + $0x50] sm:$0xf]
        %v285 = vld [vmem:[%s259 + $0x54] sm:$0xf]
        %v286 = vld [vmem:[%s259 + $0x58] sm:$0xf]
        %v287 = vld [vmem:[%s259 + $0x5c] sm:$0xf]
        %v288 = vld [vmem:[%s259 + $0x60] sm:$0xf]
        %v289 = vld [vmem:[%s259 + $0x64] sm:$0xf]
        %v290 = vld [vmem:[%s259 + $0x68] sm:$0xf]
        %v291 = vld [vmem:[%s259 + $0x6c] sm:$0xf]
        %v292 = vld [vmem:[%s259 + $0x70] sm:$0xf]
        %v293 = vld [vmem:[%s259 + $0x74] sm:$0xf]
        %v294 = vld [vmem:[%s259 + $0x78] sm:$0xf]
        %v295 = vld [vmem:[%s259 + $0x7c] sm:$0xf]
        %v296 = vld [vmem:[#allocation2] sm:$0xff]
        %v297 = vld [vmem:[#allocation2 + $0x8] sm:$0xff]
        %v298 = vld [vmem:[#allocation2 + $0x10] sm:$0xff]
        %v299 = vld [vmem:[#allocation2 + $0x18] sm:$0xff]
        %v300 = vld [vmem:[#allocation2 + $0x20] sm:$0xff]
        %v301 = vld [vmem:[#allocation2 + $0x28] sm:$0xff]
        %v302 = vld [vmem:[#allocation2 + $0x30] sm:$0xff]
        %v303 = vld [vmem:[#allocation2 + $0x38] sm:$0xff]
        %v304 = vld [vmem:[#allocation2 + $0x40] sm:$0xff]
        %v305 = vld [vmem:[#allocation2 + $0x48] sm:$0xff]
        %v306 = vld [vmem:[#allocation2 + $0x50] sm:$0xff]
        %v307 = vld [vmem:[#allocation2 + $0x58] sm:$0xff]
        %v308 = vld [vmem:[#allocation2 + $0x60] sm:$0xff]
        %v309 = vld [vmem:[#allocation2 + $0x68] sm:$0xff]
        %v310 = vld [vmem:[#allocation2 + $0x70] sm:$0xff]
        %v311 = vld [vmem:[#allocation2 + $0x78] sm:$0xff]
        %v312 = vld [vmem:[#allocation2 + $0x80] sm:$0xff]
        %v313 = vld [vmem:[#allocation2 + $0x88] sm:$0xff]
        %v314 = vld [vmem:[#allocation2 + $0x90] sm:$0xff]
        %v315 = vld [vmem:[#allocation2 + $0x98] sm:$0xff]
        %v316 = vld [vmem:[#allocation2 + $0xa0] sm:$0xff]
        %v317 = vld [vmem:[#allocation2 + $0xa8] sm:$0xff]
        %v318 = vld [vmem:[#allocation2 + $0xb0] sm:$0xff]
        %v319 = vld [vmem:[#allocation2 + $0xb8] sm:$0xff]
        %v320 = vld [vmem:[#allocation2 + $0xc0] sm:$0xff]
        %v321 = vld [vmem:[#allocation2 + $0xc8] sm:$0xff]
        %v322 = vld [vmem:[#allocation2 + $0xd0] sm:$0xff]
        %v323 = vld [vmem:[#allocation2 + $0xd8] sm:$0xff]
        %v324 = vld [vmem:[#allocation2 + $0xe0] sm:$0xff]
        %v325 = vld [vmem:[#allocation2 + $0xe8] sm:$0xff]
        %v326 = vld [vmem:[#allocation2 + $0xf0] sm:$0xff]
        %v327 = vld [vmem:[#allocation2 + $0xf8] sm:$0xff]
        %v328 = vld [vmem:[#allocation2 + $0x100] sm:$0xff]
        %v329 = vld [vmem:[#allocation2 + $0x108] sm:$0xff]
        %v330 = vld [vmem:[#allocation2 + $0x110] sm:$0xff]
        %v331 = vld [vmem:[#allocation2 + $0x118] sm:$0xff]
        %v332 = vld [vmem:[#allocation2 + $0x120] sm:$0xff]
        %v333 = vld [vmem:[#allocation2 + $0x128] sm:$0xff]
        %v334 = vld [vmem:[#allocation2 + $0x130] sm:$0xff]
        %v335 = vld [vmem:[#allocation2 + $0x138] sm:$0xff]
        %v336 = vld [vmem:[#allocation2 + $0x140] sm:$0xff]
        %v337 = vld [vmem:[#allocation2 + $0x148] sm:$0xff]
        %v338 = vld [vmem:[#allocation2 + $0x150] sm:$0xff]
        %v339 = vld [vmem:[#allocation2 + $0x158] sm:$0xff]
        %v340 = vld [vmem:[#allocation2 + $0x160] sm:$0xff]
        %v341 = vld [vmem:[#allocation2 + $0x168] sm:$0xff]
        %v342 = vld [vmem:[#allocation2 + $0x170] sm:$0xff]
        %v343 = vld [vmem:[#allocation2 + $0x178] sm:$0xff]
        %v344 = vld [vmem:[#allocation2 + $0x180] sm:$0xff]
        %v345 = vld [vmem:[#allocation2 + $0x188] sm:$0xff]
        %v346 = vld [vmem:[#allocation2 + $0x190] sm:$0xff]
        %v347 = vld [vmem:[#allocation2 + $0x198] sm:$0xff]
        %v348 = vld [vmem:[#allocation2 + $0x1a0] sm:$0xff]
        %v349 = vld [vmem:[#allocation2 + $0x1a8] sm:$0xff]
        %v350 = vld [vmem:[#allocation2 + $0x1b0] sm:$0xff]
        %v351 = vld [vmem:[#allocation2 + $0x1b8] sm:$0xff]
        %v352 = vld [vmem:[#allocation2 + $0x1c0] sm:$0xff]
        %v353 = vld [vmem:[#allocation2 + $0x1c8] sm:$0xff]
        %v354 = vld [vmem:[#allocation2 + $0x1d0] sm:$0xff]
        %v355 = vld [vmem:[#allocation2 + $0x1d8] sm:$0xff]
        %v356 = vld [vmem:[#allocation2 + $0x1e0] sm:$0xff]
        %v357 = vld [vmem:[#allocation2 + $0x1e8] sm:$0xff]
        %v358 = vld [vmem:[#allocation2 + $0x1f0] sm:$0xff]
        %v359 = vld [vmem:[#allocation2 + $0x1f8] sm:$0xff]
        %v360 = vld [vmem:[#allocation2 + $0x200] sm:$0xff]
        %v361 = vld [vmem:[#allocation2 + $0x208] sm:$0xff]
        %v362 = vld [vmem:[#allocation2 + $0x210] sm:$0xff]
        %v363 = vld [vmem:[#allocation2 + $0x218] sm:$0xff]
        %v364 = vld [vmem:[#allocation2 + $0x220] sm:$0xff]
        %v365 = vld [vmem:[#allocation2 + $0x228] sm:$0xff]
        %v366 = vld [vmem:[#allocation2 + $0x230] sm:$0xff]
        %v367 = vld [vmem:[#allocation2 + $0x238] sm:$0xff]
        %v368 = vld [vmem:[#allocation2 + $0x240] sm:$0xff]
        %v369 = vld [vmem:[#allocation2 + $0x248] sm:$0xff]
        %v370 = vld [vmem:[#allocation2 + $0x250] sm:$0xff]
        %v371 = vld [vmem:[#allocation2 + $0x258] sm:$0xff]
        %v372 = vld [vmem:[#allocation2 + $0x260] sm:$0xff]
        %v373 = vld [vmem:[#allocation2 + $0x268] sm:$0xff]
        %v374 = vld [vmem:[#allocation2 + $0x270] sm:$0xff]
        %v375 = vld [vmem:[#allocation2 + $0x278] sm:$0xff]
        %v376 = vld [vmem:[#allocation2 + $0x280] sm:$0xff]
        %v377 = vld [vmem:[#allocation2 + $0x288] sm:$0xff]
        %v378 = vld [vmem:[#allocation2 + $0x290] sm:$0xff]
        %v379 = vld [vmem:[#allocation2 + $0x298] sm:$0xff]
        %v380 = vld [vmem:[#allocation2 + $0x2a0] sm:$0xff]
        %v381 = vld [vmem:[#allocation2 + $0x2a8] sm:$0xff]
        %v382 = vld [vmem:[#allocation2 + $0x2b0] sm:$0xff]
        %v383 = vld [vmem:[#allocation2 + $0x2b8] sm:$0xff]
        %v384 = vld [vmem:[#allocation2 + $0x2c0] sm:$0xff]
        %v385 = vld [vmem:[#allocation2 + $0x2c8] sm:$0xff]
        %v386 = vld [vmem:[#allocation2 + $0x2d0] sm:$0xff]
        %v387 = vld [vmem:[#allocation2 + $0x2d8] sm:$0xff]
        %v388 = vld [vmem:[#allocation2 + $0x2e0] sm:$0xff]
        %v389 = vld [vmem:[#allocation2 + $0x2e8] sm:$0xff]
        %v390 = vld [vmem:[#allocation2 + $0x2f0] sm:$0xff]
        %v391 = vld [vmem:[#allocation2 + $0x2f8] sm:$0xff]
        %v392 = vld [vmem:[#allocation2 + $0x300] sm:$0xff]
        %v393 = vld [vmem:[#allocation2 + $0x308] sm:$0xff]
        %v394 = vld [vmem:[#allocation2 + $0x310] sm:$0xff]
        %v395 = vld [vmem:[#allocation2 + $0x318] sm:$0xff]
        %v396 = vld [vmem:[#allocation2 + $0x320] sm:$0xff]
        %v397 = vld [vmem:[#allocation2 + $0x328] sm:$0xff]
        %v398 = vld [vmem:[#allocation2 + $0x330] sm:$0xff]
        %v399 = vld [vmem:[#allocation2 + $0x338] sm:$0xff]
        %v400 = vld [vmem:[#allocation2 + $0x340] sm:$0xff]
        %v401 = vld [vmem:[#allocation2 + $0x348] sm:$0xff]
        %v402 = vld [vmem:[#allocation2 + $0x350] sm:$0xff]
        %v403 = vld [vmem:[#allocation2 + $0x358] sm:$0xff]
        %v404 = vld [vmem:[#allocation2 + $0x360] sm:$0xff]
        %v405 = vld [vmem:[#allocation2 + $0x368] sm:$0xff]
        %v406 = vld [vmem:[#allocation2 + $0x370] sm:$0xff]
        %v407 = vld [vmem:[#allocation2 + $0x378] sm:$0xff]
        %v408 = vld [vmem:[#allocation2 + $0x380] sm:$0xff]
        %v409 = vld [vmem:[#allocation2 + $0x388] sm:$0xff]
        %v410 = vld [vmem:[#allocation2 + $0x390] sm:$0xff]
        %v411 = vld [vmem:[#allocation2 + $0x398] sm:$0xff]
        %v412 = vld [vmem:[#allocation2 + $0x3a0] sm:$0xff]
        %v413 = vld [vmem:[#allocation2 + $0x3a8] sm:$0xff]
        %v414 = vld [vmem:[#allocation2 + $0x3b0] sm:$0xff]
        %v415 = vld [vmem:[#allocation2 + $0x3b8] sm:$0xff]
        %v416 = vld [vmem:[#allocation2 + $0x3c0] sm:$0xff]
        %v417 = vld [vmem:[#allocation2 + $0x3c8] sm:$0xff]
        %v418 = vld [vmem:[#allocation2 + $0x3d0] sm:$0xff]
        %v419 = vld [vmem:[#allocation2 + $0x3d8] sm:$0xff]
        %v420 = vld [vmem:[#allocation2 + $0x3e0] sm:$0xff]
        %v421 = vld [vmem:[#allocation2 + $0x3e8] sm:$0xff]
        %v422 = vld [vmem:[#allocation2 + $0x3f0] sm:$0xff]
        %v423 = vld [vmem:[#allocation2 + $0x3f8] sm:$0xff]
        %v424 = vld [vmem:[%s2] sm:$0x1]
        %v425 = vld [vmem:[%s2 + $0x1] sm:$0x1]
        %v426 = vld [vmem:[%s2 + $0x2] sm:$0x1]
        %v427 = vld [vmem:[%s2 + $0x3] sm:$0x1]
        %v428 = vld [vmem:[%s2 + $0x4] sm:$0x1]
        %v429 = vld [vmem:[%s2 + $0x5] sm:$0x1]
        %v430 = vld [vmem:[%s2 + $0x6] sm:$0x1]
        %v431 = vld [vmem:[%s2 + $0x7] sm:$0x1]
        %v432 = vld [vmem:[%s2 + $0x8] sm:$0x1]
        %v433 = vld [vmem:[%s2 + $0x9] sm:$0x1]
        %v434 = vld [vmem:[%s2 + $0xa] sm:$0x1]
        %v435 = vld [vmem:[%s2 + $0xb] sm:$0x1]
        %v436 = vld [vmem:[%s2 + $0xc] sm:$0x1]
        %v437 = vld [vmem:[%s2 + $0xd] sm:$0x1]
        %v438 = vld [vmem:[%s2 + $0xe] sm:$0x1]
        %v439 = vld [vmem:[%s2 + $0xf] sm:$0x1]
        %v568 = vunpack.c.l.b16 %v296
        %v569 = vunpack.c.h.b16 %v296
        %v570 = vunpack.c.l.b16 %v297
        %v571 = vunpack.c.h.b16 %v297
        %v572 = vunpack.c.l.b16 %v298
        %v573 = vunpack.c.h.b16 %v298
        %v574 = vunpack.c.l.b16 %v299
        %v575 = vunpack.c.h.b16 %v299
        %v576 = vunpack.c.l.b16 %v300
        %v577 = vunpack.c.h.b16 %v300
        %v578 = vunpack.c.l.b16 %v301
        %v579 = vunpack.c.h.b16 %v301
        %v580 = vunpack.c.l.b16 %v302
        %v581 = vunpack.c.h.b16 %v302
        %v582 = vunpack.c.l.b16 %v303
        %v583 = vunpack.c.h.b16 %v303
        %v584 = vunpack.c.l.b16 %v304
        %v585 = vunpack.c.h.b16 %v304
        %v586 = vunpack.c.l.b16 %v305
        %v587 = vunpack.c.h.b16 %v305
        %v588 = vunpack.c.l.b16 %v306
        %v589 = vunpack.c.h.b16 %v306
        %v590 = vunpack.c.l.b16 %v307
        %v591 = vunpack.c.h.b16 %v307
        %v592 = vunpack.c.l.b16 %v308
        %v593 = vunpack.c.h.b16 %v308
        %v594 = vunpack.c.l.b16 %v309
        %v595 = vunpack.c.h.b16 %v309
        %v596 = vunpack.c.l.b16 %v310
        %v597 = vunpack.c.h.b16 %v310
        %v598 = vunpack.c.l.b16 %v311
        %v599 = vunpack.c.h.b16 %v311
        %v600 = vunpack.c.l.b16 %v312
        %v601 = vunpack.c.h.b16 %v312
        %v602 = vunpack.c.l.b16 %v313
        %v603 = vunpack.c.h.b16 %v313
        %v604 = vunpack.c.l.b16 %v314
        %v605 = vunpack.c.h.b16 %v314
        %v606 = vunpack.c.l.b16 %v315
        %v607 = vunpack.c.h.b16 %v315
        %v608 = vunpack.c.l.b16 %v316
        %v609 = vunpack.c.h.b16 %v316
        %v610 = vunpack.c.l.b16 %v317
        %v611 = vunpack.c.h.b16 %v317
        %v612 = vunpack.c.l.b16 %v318
        %v613 = vunpack.c.h.b16 %v318
        %v614 = vunpack.c.l.b16 %v319
        %v615 = vunpack.c.h.b16 %v319
        %v616 = vunpack.c.l.b16 %v320
        %v617 = vunpack.c.h.b16 %v320
        %v618 = vunpack.c.l.b16 %v321
        %v619 = vunpack.c.h.b16 %v321
        %v620 = vunpack.c.l.b16 %v322
        %v621 = vunpack.c.h.b16 %v322
        %v622 = vunpack.c.l.b16 %v323
        %v623 = vunpack.c.h.b16 %v323
        %v624 = vunpack.c.l.b16 %v324
        %v625 = vunpack.c.h.b16 %v324
        %v626 = vunpack.c.l.b16 %v325
        %v627 = vunpack.c.h.b16 %v325
        %v628 = vunpack.c.l.b16 %v326
        %v629 = vunpack.c.h.b16 %v326
        %v630 = vunpack.c.l.b16 %v327
        %v631 = vunpack.c.h.b16 %v327
        %v632 = vunpack.c.l.b16 %v328
        %v633 = vunpack.c.h.b16 %v328
        %v634 = vunpack.c.l.b16 %v329
        %v635 = vunpack.c.h.b16 %v329
        %v636 = vunpack.c.l.b16 %v330
        %v637 = vunpack.c.h.b16 %v330
        %v638 = vunpack.c.l.b16 %v331
        %v639 = vunpack.c.h.b16 %v331
        %v640 = vunpack.c.l.b16 %v332
        %v641 = vunpack.c.h.b16 %v332
        %v642 = vunpack.c.l.b16 %v333
        %v643 = vunpack.c.h.b16 %v333
        %v644 = vunpack.c.l.b16 %v334
        %v645 = vunpack.c.h.b16 %v334
        %v646 = vunpack.c.l.b16 %v335
        %v647 = vunpack.c.h.b16 %v335
        %v648 = vunpack.c.l.b16 %v336
        %v649 = vunpack.c.h.b16 %v336
        %v650 = vunpack.c.l.b16 %v337
        %v651 = vunpack.c.h.b16 %v337
        %v652 = vunpack.c.l.b16 %v338
        %v653 = vunpack.c.h.b16 %v338
        %v654 = vunpack.c.l.b16 %v339
        %v655 = vunpack.c.h.b16 %v339
        %v656 = vunpack.c.l.b16 %v340
        %v657 = vunpack.c.h.b16 %v340
        %v658 = vunpack.c.l.b16 %v341
        %v659 = vunpack.c.h.b16 %v341
        %v660 = vunpack.c.l.b16 %v342
        %v661 = vunpack.c.h.b16 %v342
        %v662 = vunpack.c.l.b16 %v343
        %v663 = vunpack.c.h.b16 %v343
        %v664 = vunpack.c.l.b16 %v344
        %v665 = vunpack.c.h.b16 %v344
        %v666 = vunpack.c.l.b16 %v345
        %v667 = vunpack.c.h.b16 %v345
        %v668 = vunpack.c.l.b16 %v346
        %v669 = vunpack.c.h.b16 %v346
        %v670 = vunpack.c.l.b16 %v347
        %v671 = vunpack.c.h.b16 %v347
        %v672 = vunpack.c.l.b16 %v348
        %v673 = vunpack.c.h.b16 %v348
        %v674 = vunpack.c.l.b16 %v349
        %v675 = vunpack.c.h.b16 %v349
        %v676 = vunpack.c.l.b16 %v350
        %v677 = vunpack.c.h.b16 %v350
        %v678 = vunpack.c.l.b16 %v351
        %v679 = vunpack.c.h.b16 %v351
        %v680 = vunpack.c.l.b16 %v352
        %v681 = vunpack.c.h.b16 %v352
        %v682 = vunpack.c.l.b16 %v353
        %v683 = vunpack.c.h.b16 %v353
        %v684 = vunpack.c.l.b16 %v354
        %v685 = vunpack.c.h.b16 %v354
        %v686 = vunpack.c.l.b16 %v355
        %v687 = vunpack.c.h.b16 %v355
        %v688 = vunpack.c.l.b16 %v356
        %v689 = vunpack.c.h.b16 %v356
        %v690 = vunpack.c.l.b16 %v357
        %v691 = vunpack.c.h.b16 %v357
        %v692 = vunpack.c.l.b16 %v358
        %v693 = vunpack.c.h.b16 %v358
        %v694 = vunpack.c.l.b16 %v359
        %v695 = vunpack.c.h.b16 %v359
        %v696 = vunpack.c.l.b16 %v360
        %v697 = vunpack.c.h.b16 %v360
        %v698 = vunpack.c.l.b16 %v361
        %v699 = vunpack.c.h.b16 %v361
        %v700 = vunpack.c.l.b16 %v362
        %v701 = vunpack.c.h.b16 %v362
        %v702 = vunpack.c.l.b16 %v363
        %v703 = vunpack.c.h.b16 %v363
        %v704 = vunpack.c.l.b16 %v364
        %v705 = vunpack.c.h.b16 %v364
        %v706 = vunpack.c.l.b16 %v365
        %v707 = vunpack.c.h.b16 %v365
        %v708 = vunpack.c.l.b16 %v366
        %v709 = vunpack.c.h.b16 %v366
        %v710 = vunpack.c.l.b16 %v367
        %v711 = vunpack.c.h.b16 %v367
        %v712 = vunpack.c.l.b16 %v368
        %v713 = vunpack.c.h.b16 %v368
        %v714 = vunpack.c.l.b16 %v369
        %v715 = vunpack.c.h.b16 %v369
        %v716 = vunpack.c.l.b16 %v370
        %v717 = vunpack.c.h.b16 %v370
        %v718 = vunpack.c.l.b16 %v371
        %v719 = vunpack.c.h.b16 %v371
        %v720 = vunpack.c.l.b16 %v372
        %v721 = vunpack.c.h.b16 %v372
        %v722 = vunpack.c.l.b16 %v373
        %v723 = vunpack.c.h.b16 %v373
        %v724 = vunpack.c.l.b16 %v374
        %v725 = vunpack.c.h.b16 %v374
        %v726 = vunpack.c.l.b16 %v375
        %v727 = vunpack.c.h.b16 %v375
        %v728 = vunpack.c.l.b16 %v376
        %v729 = vunpack.c.h.b16 %v376
        %v730 = vunpack.c.l.b16 %v377
        %v731 = vunpack.c.h.b16 %v377
        %v732 = vunpack.c.l.b16 %v378
        %v733 = vunpack.c.h.b16 %v378
        %v734 = vunpack.c.l.b16 %v379
        %v735 = vunpack.c.h.b16 %v379
        %v736 = vunpack.c.l.b16 %v380
        %v737 = vunpack.c.h.b16 %v380
        %v738 = vunpack.c.l.b16 %v381
        %v739 = vunpack.c.h.b16 %v381
        %v740 = vunpack.c.l.b16 %v382
        %v741 = vunpack.c.h.b16 %v382
        %v742 = vunpack.c.l.b16 %v383
        %v743 = vunpack.c.h.b16 %v383
        %v744 = vunpack.c.l.b16 %v384
        %v745 = vunpack.c.h.b16 %v384
        %v746 = vunpack.c.l.b16 %v385
        %v747 = vunpack.c.h.b16 %v385
        %v748 = vunpack.c.l.b16 %v386
        %v749 = vunpack.c.h.b16 %v386
        %v750 = vunpack.c.l.b16 %v387
        %v751 = vunpack.c.h.b16 %v387
        %v752 = vunpack.c.l.b16 %v388
        %v753 = vunpack.c.h.b16 %v388
        %v754 = vunpack.c.l.b16 %v389
        %v755 = vunpack.c.h.b16 %v389
        %v756 = vunpack.c.l.b16 %v390
        %v757 = vunpack.c.h.b16 %v390
        %v758 = vunpack.c.l.b16 %v391
        %v759 = vunpack.c.h.b16 %v391
        %v760 = vunpack.c.l.b16 %v392
        %v761 = vunpack.c.h.b16 %v392
        %v762 = vunpack.c.l.b16 %v393
        %v763 = vunpack.c.h.b16 %v393
        %v764 = vunpack.c.l.b16 %v394
        %v765 = vunpack.c.h.b16 %v394
        %v766 = vunpack.c.l.b16 %v395
        %v767 = vunpack.c.h.b16 %v395
        %v768 = vunpack.c.l.b16 %v396
        %v769 = vunpack.c.h.b16 %v396
        %v770 = vunpack.c.l.b16 %v397
        %v771 = vunpack.c.h.b16 %v397
        %v772 = vunpack.c.l.b16 %v398
        %v773 = vunpack.c.h.b16 %v398
        %v774 = vunpack.c.l.b16 %v399
        %v775 = vunpack.c.h.b16 %v399
        %v776 = vunpack.c.l.b16 %v400
        %v777 = vunpack.c.h.b16 %v400
        %v778 = vunpack.c.l.b16 %v401
        %v779 = vunpack.c.h.b16 %v401
        %v780 = vunpack.c.l.b16 %v402
        %v781 = vunpack.c.h.b16 %v402
        %v782 = vunpack.c.l.b16 %v403
        %v783 = vunpack.c.h.b16 %v403
        %v784 = vunpack.c.l.b16 %v404
        %v785 = vunpack.c.h.b16 %v404
        %v786 = vunpack.c.l.b16 %v405
        %v787 = vunpack.c.h.b16 %v405
        %v788 = vunpack.c.l.b16 %v406
        %v789 = vunpack.c.h.b16 %v406
        %v790 = vunpack.c.l.b16 %v407
        %v791 = vunpack.c.h.b16 %v407
        %v792 = vunpack.c.l.b16 %v408
        %v793 = vunpack.c.h.b16 %v408
        %v794 = vunpack.c.l.b16 %v409
        %v795 = vunpack.c.h.b16 %v409
        %v796 = vunpack.c.l.b16 %v410
        %v797 = vunpack.c.h.b16 %v410
        %v798 = vunpack.c.l.b16 %v411
        %v799 = vunpack.c.h.b16 %v411
        %v800 = vunpack.c.l.b16 %v412
        %v801 = vunpack.c.h.b16 %v412
        %v802 = vunpack.c.l.b16 %v413
        %v803 = vunpack.c.h.b16 %v413
        %v804 = vunpack.c.l.b16 %v414
        %v805 = vunpack.c.h.b16 %v414
        %v806 = vunpack.c.l.b16 %v415
        %v807 = vunpack.c.h.b16 %v415
        %v808 = vunpack.c.l.b16 %v416
        %v809 = vunpack.c.h.b16 %v416
        %v810 = vunpack.c.l.b16 %v417
        %v811 = vunpack.c.h.b16 %v417
        %v812 = vunpack.c.l.b16 %v418
        %v813 = vunpack.c.h.b16 %v418
        %v814 = vunpack.c.l.b16 %v419
        %v815 = vunpack.c.h.b16 %v419
        %v816 = vunpack.c.l.b16 %v420
        %v817 = vunpack.c.h.b16 %v420
        %v818 = vunpack.c.l.b16 %v421
        %v819 = vunpack.c.h.b16 %v421
        %v820 = vunpack.c.l.b16 %v422
        %v821 = vunpack.c.h.b16 %v422
        %v822 = vunpack.c.l.b16 %v423
        %v823 = vunpack.c.h.b16 %v423
        %v824 = vpack.c.b16 %v570, %v568
        %v825 = vpack.c.b16 %v571, %v569
        %v826 = vpack.c.b16 %v574, %v572
        %v827 = vpack.c.b16 %v575, %v573
        %v828 = vpack.c.b16 %v578, %v576
        %v829 = vpack.c.b16 %v579, %v577
        %v830 = vpack.c.b16 %v582, %v580
        %v831 = vpack.c.b16 %v583, %v581
        %v832 = vpack.c.b16 %v586, %v584
        %v833 = vpack.c.b16 %v587, %v585
        %v834 = vpack.c.b16 %v590, %v588
        %v835 = vpack.c.b16 %v591, %v589
        %v836 = vpack.c.b16 %v594, %v592
        %v837 = vpack.c.b16 %v595, %v593
        %v838 = vpack.c.b16 %v598, %v596
        %v839 = vpack.c.b16 %v599, %v597
        %v840 = vpack.c.b16 %v602, %v600
        %v841 = vpack.c.b16 %v603, %v601
        %v842 = vpack.c.b16 %v606, %v604
        %v843 = vpack.c.b16 %v607, %v605
        %v844 = vpack.c.b16 %v610, %v608
        %v845 = vpack.c.b16 %v611, %v609
        %v846 = vpack.c.b16 %v614, %v612
        %v847 = vpack.c.b16 %v615, %v613
        %v848 = vpack.c.b16 %v618, %v616
        %v849 = vpack.c.b16 %v619, %v617
        %v850 = vpack.c.b16 %v622, %v620
        %v851 = vpack.c.b16 %v623, %v621
        %v852 = vpack.c.b16 %v626, %v624
        %v853 = vpack.c.b16 %v627, %v625
        %v854 = vpack.c.b16 %v630, %v628
        %v855 = vpack.c.b16 %v631, %v629
        %v856 = vpack.c.b16 %v634, %v632
        %v857 = vpack.c.b16 %v635, %v633
        %v858 = vpack.c.b16 %v638, %v636
        %v859 = vpack.c.b16 %v639, %v637
        %v860 = vpack.c.b16 %v642, %v640
        %v861 = vpack.c.b16 %v643, %v641
        %v862 = vpack.c.b16 %v646, %v644
        %v863 = vpack.c.b16 %v647, %v645
        %v864 = vpack.c.b16 %v650, %v648
        %v865 = vpack.c.b16 %v651, %v649
        %v866 = vpack.c.b16 %v654, %v652
        %v867 = vpack.c.b16 %v655, %v653
        %v868 = vpack.c.b16 %v658, %v656
        %v869 = vpack.c.b16 %v659, %v657
        %v870 = vpack.c.b16 %v662, %v660
        %v871 = vpack.c.b16 %v663, %v661
        %v872 = vpack.c.b16 %v666, %v664
        %v873 = vpack.c.b16 %v667, %v665
        %v874 = vpack.c.b16 %v670, %v668
        %v875 = vpack.c.b16 %v671, %v669
        %v876 = vpack.c.b16 %v674, %v672
        %v877 = vpack.c.b16 %v675, %v673
        %v878 = vpack.c.b16 %v678, %v676
        %v879 = vpack.c.b16 %v679, %v677
        %v880 = vpack.c.b16 %v682, %v680
        %v881 = vpack.c.b16 %v683, %v681
        %v882 = vpack.c.b16 %v686, %v684
        %v883 = vpack.c.b16 %v687, %v685
        %v884 = vpack.c.b16 %v690, %v688
        %v885 = vpack.c.b16 %v691, %v689
        %v886 = vpack.c.b16 %v694, %v692
        %v887 = vpack.c.b16 %v695, %v693
        %v888 = vpack.c.b16 %v698, %v696
        %v889 = vpack.c.b16 %v699, %v697
        %v890 = vpack.c.b16 %v702, %v700
        %v891 = vpack.c.b16 %v703, %v701
        %v892 = vpack.c.b16 %v706, %v704
        %v893 = vpack.c.b16 %v707, %v705
        %v894 = vpack.c.b16 %v710, %v708
        %v895 = vpack.c.b16 %v711, %v709
        %v896 = vpack.c.b16 %v714, %v712
        %v897 = vpack.c.b16 %v715, %v713
        %v898 = vpack.c.b16 %v718, %v716
        %v899 = vpack.c.b16 %v719, %v717
        %v900 = vpack.c.b16 %v722, %v720
        %v901 = vpack.c.b16 %v723, %v721
        %v902 = vpack.c.b16 %v726, %v724
        %v903 = vpack.c.b16 %v727, %v725
        %v904 = vpack.c.b16 %v730, %v728
        %v905 = vpack.c.b16 %v731, %v729
        %v906 = vpack.c.b16 %v734, %v732
        %v907 = vpack.c.b16 %v735, %v733
        %v908 = vpack.c.b16 %v738, %v736
        %v909 = vpack.c.b16 %v739, %v737
        %v910 = vpack.c.b16 %v742, %v740
        %v911 = vpack.c.b16 %v743, %v741
        %v912 = vpack.c.b16 %v746, %v744
        %v913 = vpack.c.b16 %v747, %v745
        %v914 = vpack.c.b16 %v750, %v748
        %v915 = vpack.c.b16 %v751, %v749
        %v916 = vpack.c.b16 %v754, %v752
        %v917 = vpack.c.b16 %v755, %v753
        %v918 = vpack.c.b16 %v758, %v756
        %v919 = vpack.c.b16 %v759, %v757
        %v920 = vpack.c.b16 %v762, %v760
        %v921 = vpack.c.b16 %v763, %v761
        %v922 = vpack.c.b16 %v766, %v764
        %v923 = vpack.c.b16 %v767, %v765
        %v924 = vpack.c.b16 %v770, %v768
        %v925 = vpack.c.b16 %v771, %v769
        %v926 = vpack.c.b16 %v774, %v772
        %v927 = vpack.c.b16 %v775, %v773
        %v928 = vpack.c.b16 %v778, %v776
        %v929 = vpack.c.b16 %v779, %v777
        %v930 = vpack.c.b16 %v782, %v780
        %v931 = vpack.c.b16 %v783, %v781
        %v932 = vpack.c.b16 %v786, %v784
        %v933 = vpack.c.b16 %v787, %v785
        %v934 = vpack.c.b16 %v790, %v788
        %v935 = vpack.c.b16 %v791, %v789
        %v936 = vpack.c.b16 %v794, %v792
        %v937 = vpack.c.b16 %v795, %v793
        %v938 = vpack.c.b16 %v798, %v796
        %v939 = vpack.c.b16 %v799, %v797
        %v940 = vpack.c.b16 %v802, %v800
        %v941 = vpack.c.b16 %v803, %v801
        %v942 = vpack.c.b16 %v806, %v804
        %v943 = vpack.c.b16 %v807, %v805
        %v944 = vpack.c.b16 %v810, %v808
        %v945 = vpack.c.b16 %v811, %v809
        %v946 = vpack.c.b16 %v814, %v812
        %v947 = vpack.c.b16 %v815, %v813
        %v948 = vpack.c.b16 %v818, %v816
        %v949 = vpack.c.b16 %v819, %v817
        %v950 = vpack.c.b16 %v822, %v820
        %v951 = vpack.c.b16 %v823, %v821
        %v1112 = vunpack.c.l.b16 %v264
        %v1113 = vunpack.c.l.b16 %v265
        %v1114 = vunpack.c.l.b16 %v266
        %v1115 = vunpack.c.l.b16 %v267
        %v1116 = vunpack.c.l.b16 %v268
        %v1117 = vunpack.c.l.b16 %v269
        %v1118 = vunpack.c.l.b16 %v270
        %v1119 = vunpack.c.l.b16 %v271
        %v1120 = vunpack.c.l.b16 %v272
        %v1121 = vunpack.c.l.b16 %v273
        %v1122 = vunpack.c.l.b16 %v274
        %v1123 = vunpack.c.l.b16 %v275
        %v1124 = vunpack.c.l.b16 %v276
        %v1125 = vunpack.c.l.b16 %v277
        %v1126 = vunpack.c.l.b16 %v278
        %v1127 = vunpack.c.l.b16 %v279
        %v1128 = vunpack.c.l.b16 %v280
        %v1129 = vunpack.c.l.b16 %v281
        %v1130 = vunpack.c.l.b16 %v282
        %v1131 = vunpack.c.l.b16 %v283
        %v1132 = vunpack.c.l.b16 %v284
        %v1133 = vunpack.c.l.b16 %v285
        %v1134 = vunpack.c.l.b16 %v286
        %v1135 = vunpack.c.l.b16 %v287
        %v1136 = vunpack.c.l.b16 %v288
        %v1137 = vunpack.c.l.b16 %v289
        %v1138 = vunpack.c.l.b16 %v290
        %v1139 = vunpack.c.l.b16 %v291
        %v1140 = vunpack.c.l.b16 %v292
        %v1141 = vunpack.c.l.b16 %v293
        %v1142 = vunpack.c.l.b16 %v294
        %v1143 = vunpack.c.l.b16 %v295
        %v1144 = vpack.c.b16 %v1113, %v1112
        %v1145 = vpack.c.b16 %v1115, %v1114
        %v1146 = vpack.c.b16 %v1117, %v1116
        %v1147 = vpack.c.b16 %v1119, %v1118
        %v1148 = vpack.c.b16 %v1121, %v1120
        %v1149 = vpack.c.b16 %v1123, %v1122
        %v1150 = vpack.c.b16 %v1125, %v1124
        %v1151 = vpack.c.b16 %v1127, %v1126
        %v1152 = vpack.c.b16 %v1129, %v1128
        %v1153 = vpack.c.b16 %v1131, %v1130
        %v1154 = vpack.c.b16 %v1133, %v1132
        %v1155 = vpack.c.b16 %v1135, %v1134
        %v1156 = vpack.c.b16 %v1137, %v1136
        %v1157 = vpack.c.b16 %v1139, %v1138
        %v1158 = vpack.c.b16 %v1141, %v1140
        %v1159 = vpack.c.b16 %v1143, %v1142
        %1176 = vmatprep.subr.bf16.mxu0 0
        %1177 = vmatpush1.bf16.msra.mxu0 %v1151
        %1178 = vmatprep.subr.bf16.mxu0 0
        %1179 = vmatpush1.bf16.msra.mxu0 %v1150
        %1180 = vmatprep.subr.bf16.mxu0 0
        %1181 = vmatpush1.bf16.msra.mxu0 %v1149
        %1182 = vmatprep.subr.bf16.mxu0 0
        %1183 = vmatpush1.bf16.msra.mxu0 %v1148
        %1184 = vmatprep.subr.bf16.mxu0 0
        %1185 = vmatpush1.bf16.msra.mxu0 %v1147
        %1186 = vmatprep.subr.bf16.mxu0 0
        %1187 = vmatpush1.bf16.msra.mxu0 %v1146
        %1188 = vmatprep.subr.bf16.mxu0 0
        %1189 = vmatpush1.bf16.msra.mxu0 %v1145
        %1190 = vmatprep.subr.bf16.mxu0 0
        %1191 = vmatpush1.bf16.msra.mxu0 %v1144
        %1192 = vmatprep.subr.bf16.mxu0 0
        %1193 = vmatpush2.bf16.msra.mxu0 %v1159
        %1194 = vmatprep.subr.bf16.mxu0 0
        %1195 = vmatpush2.bf16.msra.mxu0 %v1158
        %1196 = vmatprep.subr.bf16.mxu0 0
        %1197 = vmatpush2.bf16.msra.mxu0 %v1157
        %1198 = vmatprep.subr.bf16.mxu0 0
        %1199 = vmatpush2.bf16.msra.mxu0 %v1156
        %1200 = vmatprep.subr.bf16.mxu0 0
        %1201 = vmatpush2.bf16.msra.mxu0 %v1155
        %1202 = vmatprep.subr.bf16.mxu0 0
        %1203 = vmatpush2.bf16.msra.mxu0 %v1154
        %1204 = vmatprep.subr.bf16.mxu0 0
        %1205 = vmatpush2.bf16.msra.mxu0 %v1153
        %1206 = vmatprep.subr.bf16.mxu0 0
        %1207 = vmatpush2.bf16.msra.mxu0 %v1152
        %1208 = vmatprep.mubr.bf16.mxu0 %v825
        %1209 = vmatmul.mubr.bf16.gmra.mxu0 %v824
        %v1210 = vpop.f32.mrf.mxu0
        %v1211 = vadd.f32 0.0, %v1210
        %v1212 = vpop.f32.mrf.mxu0
        %v1213 = vpop.f32.mrf.mxu0
        %v1214 = vadd.f32 0.0, %v1213
        %v1215 = vpop.f32.mrf.mxu0
        %1216 = vmatprep.mubr.bf16.mxu0 %v827
        %1217 = vmatmul.mubr.bf16.gmra.mxu0 %v826
        %v1218 = vpop.f32.mrf.mxu0
        %v1219 = vadd.f32 0.0, %v1218
        %v1220 = vpop.f32.mrf.mxu0
        %v1221 = vpop.f32.mrf.mxu0
        %v1222 = vadd.f32 0.0, %v1221
        %v1223 = vpop.f32.mrf.mxu0
        %1224 = vmatprep.mubr.bf16.mxu0 %v829
        %1225 = vmatmul.mubr.bf16.gmra.mxu0 %v828
        %v1226 = vpop.f32.mrf.mxu0
        %v1227 = vadd.f32 0.0, %v1226
        %v1228 = vpop.f32.mrf.mxu0
        %v1229 = vpop.f32.mrf.mxu0
        %v1230 = vadd.f32 0.0, %v1229
        %v1231 = vpop.f32.mrf.mxu0
        %1232 = vmatprep.mubr.bf16.mxu0 %v831
        %1233 = vmatmul.mubr.bf16.gmra.mxu0 %v830
        %v1234 = vpop.f32.mrf.mxu0
        %v1235 = vadd.f32 0.0, %v1234
        %v1236 = vpop.f32.mrf.mxu0
        %v1237 = vpop.f32.mrf.mxu0
        %v1238 = vadd.f32 0.0, %v1237
        %v1239 = vpop.f32.mrf.mxu0
        %1240 = vmatprep.mubr.bf16.mxu0 %v833
        %1241 = vmatmul.mubr.bf16.gmra.mxu0 %v832
        %v1242 = vpop.f32.mrf.mxu0
        %v1243 = vadd.f32 0.0, %v1242
        %v1244 = vpop.f32.mrf.mxu0
        %v1245 = vpop.f32.mrf.mxu0
        %v1246 = vadd.f32 0.0, %v1245
        %v1247 = vpop.f32.mrf.mxu0
        %1248 = vmatprep.mubr.bf16.mxu0 %v835
        %1249 = vmatmul.mubr.bf16.gmra.mxu0 %v834
        %v1250 = vpop.f32.mrf.mxu0
        %v1251 = vadd.f32 0.0, %v1250
        %v1252 = vpop.f32.mrf.mxu0
        %v1253 = vpop.f32.mrf.mxu0
        %v1254 = vadd.f32 0.0, %v1253
        %v1255 = vpop.f32.mrf.mxu0
        %1256 = vmatprep.mubr.bf16.mxu0 %v837
        %1257 = vmatmul.mubr.bf16.gmra.mxu0 %v836
        %v1258 = vpop.f32.mrf.mxu0
        %v1259 = vadd.f32 0.0, %v1258
        %v1260 = vpop.f32.mrf.mxu0
        %v1261 = vpop.f32.mrf.mxu0
        %v1262 = vadd.f32 0.0, %v1261
        %v1263 = vpop.f32.mrf.mxu0
        %1264 = vmatprep.mubr.bf16.mxu0 %v839
        %1265 = vmatmul.mubr.bf16.gmra.mxu0 %v838
        %v1266 = vpop.f32.mrf.mxu0
        %v1267 = vadd.f32 0.0, %v1266
        %v1268 = vpop.f32.mrf.mxu0
        %v1269 = vpop.f32.mrf.mxu0
        %v1270 = vadd.f32 0.0, %v1269
        %v1271 = vpop.f32.mrf.mxu0
        %1272 = vmatprep.mubr.bf16.mxu0 %v841
        %1273 = vmatmul.mubr.bf16.gmra.mxu0 %v840
        %v1274 = vpop.f32.mrf.mxu0
        %v1275 = vadd.f32 0.0, %v1274
        %v1276 = vpop.f32.mrf.mxu0
        %v1277 = vpop.f32.mrf.mxu0
        %v1278 = vadd.f32 0.0, %v1277
        %v1279 = vpop.f32.mrf.mxu0
        %1280 = vmatprep.mubr.bf16.mxu0 %v843
        %1281 = vmatmul.mubr.bf16.gmra.mxu0 %v842
        %v1282 = vpop.f32.mrf.mxu0
        %v1283 = vadd.f32 0.0, %v1282
        %v1284 = vpop.f32.mrf.mxu0
        %v1285 = vpop.f32.mrf.mxu0
        %v1286 = vadd.f32 0.0, %v1285
        %v1287 = vpop.f32.mrf.mxu0
        %1288 = vmatprep.mubr.bf16.mxu0 %v845
        %1289 = vmatmul.mubr.bf16.gmra.mxu0 %v844
        %v1290 = vpop.f32.mrf.mxu0
        %v1291 = vadd.f32 0.0, %v1290
        %v1292 = vpop.f32.mrf.mxu0
        %v1293 = vpop.f32.mrf.mxu0
        %v1294 = vadd.f32 0.0, %v1293
        %v1295 = vpop.f32.mrf.mxu0
        %1296 = vmatprep.mubr.bf16.mxu0 %v847
        %1297 = vmatmul.mubr.bf16.gmra.mxu0 %v846
        %v1298 = vpop.f32.mrf.mxu0
        %v1299 = vadd.f32 0.0, %v1298
        %v1300 = vpop.f32.mrf.mxu0
        %v1301 = vpop.f32.mrf.mxu0
        %v1302 = vadd.f32 0.0, %v1301
        %v1303 = vpop.f32.mrf.mxu0
        %1304 = vmatprep.mubr.bf16.mxu0 %v849
        %1305 = vmatmul.mubr.bf16.gmra.mxu0 %v848
        %v1306 = vpop.f32.mrf.mxu0
        %v1307 = vadd.f32 0.0, %v1306
        %v1308 = vpop.f32.mrf.mxu0
        %v1309 = vpop.f32.mrf.mxu0
        %v1310 = vadd.f32 0.0, %v1309
        %v1311 = vpop.f32.mrf.mxu0
        %1312 = vmatprep.mubr.bf16.mxu0 %v851
        %1313 = vmatmul.mubr.bf16.gmra.mxu0 %v850
        %v1314 = vpop.f32.mrf.mxu0
        %v1315 = vadd.f32 0.0, %v1314
        %v1316 = vpop.f32.mrf.mxu0
        %v1317 = vpop.f32.mrf.mxu0
        %v1318 = vadd.f32 0.0, %v1317
        %v1319 = vpop.f32.mrf.mxu0
        %1320 = vmatprep.mubr.bf16.mxu0 %v853
        %1321 = vmatmul.mubr.bf16.gmra.mxu0 %v852
        %v1322 = vpop.f32.mrf.mxu0
        %v1323 = vadd.f32 0.0, %v1322
        %v1324 = vpop.f32.mrf.mxu0
        %v1325 = vpop.f32.mrf.mxu0
        %v1326 = vadd.f32 0.0, %v1325
        %v1327 = vpop.f32.mrf.mxu0
        %1328 = vmatprep.mubr.bf16.mxu0 %v855
        %1329 = vmatmul.mubr.bf16.gmra.mxu0 %v854
        %v1330 = vpop.f32.mrf.mxu0
        %v1331 = vadd.f32 0.0, %v1330
        %v1332 = vpop.f32.mrf.mxu0
        %v1333 = vpop.f32.mrf.mxu0
        %v1334 = vadd.f32 0.0, %v1333
        %v1335 = vpop.f32.mrf.mxu0
        %1336 = vmatprep.mubr.bf16.mxu0 %v857
        %1337 = vmatmul.mubr.bf16.gmra.mxu0 %v856
        %v1338 = vpop.f32.mrf.mxu0
        %v1339 = vadd.f32 0.0, %v1338
        %v1340 = vpop.f32.mrf.mxu0
        %v1341 = vpop.f32.mrf.mxu0
        %v1342 = vadd.f32 0.0, %v1341
        %v1343 = vpop.f32.mrf.mxu0
        %1344 = vmatprep.mubr.bf16.mxu0 %v859
        %1345 = vmatmul.mubr.bf16.gmra.mxu0 %v858
        %v1346 = vpop.f32.mrf.mxu0
        %v1347 = vadd.f32 0.0, %v1346
        %v1348 = vpop.f32.mrf.mxu0
        %v1349 = vpop.f32.mrf.mxu0
        %v1350 = vadd.f32 0.0, %v1349
        %v1351 = vpop.f32.mrf.mxu0
        %1352 = vmatprep.mubr.bf16.mxu0 %v861
        %1353 = vmatmul.mubr.bf16.gmra.mxu0 %v860
        %v1354 = vpop.f32.mrf.mxu0
        %v1355 = vadd.f32 0.0, %v1354
        %v1356 = vpop.f32.mrf.mxu0
        %v1357 = vpop.f32.mrf.mxu0
        %v1358 = vadd.f32 0.0, %v1357
        %v1359 = vpop.f32.mrf.mxu0
        %1360 = vmatprep.mubr.bf16.mxu0 %v863
        %1361 = vmatmul.mubr.bf16.gmra.mxu0 %v862
        %v1362 = vpop.f32.mrf.mxu0
        %v1363 = vadd.f32 0.0, %v1362
        %v1364 = vpop.f32.mrf.mxu0
        %v1365 = vpop.f32.mrf.mxu0
        %v1366 = vadd.f32 0.0, %v1365
        %v1367 = vpop.f32.mrf.mxu0
        %1368 = vmatprep.mubr.bf16.mxu0 %v865
        %1369 = vmatmul.mubr.bf16.gmra.mxu0 %v864
        %v1370 = vpop.f32.mrf.mxu0
        %v1371 = vadd.f32 0.0, %v1370
        %v1372 = vpop.f32.mrf.mxu0
        %v1373 = vpop.f32.mrf.mxu0
        %v1374 = vadd.f32 0.0, %v1373
        %v1375 = vpop.f32.mrf.mxu0
        %1376 = vmatprep.mubr.bf16.mxu0 %v867
        %1377 = vmatmul.mubr.bf16.gmra.mxu0 %v866
        %v1378 = vpop.f32.mrf.mxu0
        %v1379 = vadd.f32 0.0, %v1378
        %v1380 = vpop.f32.mrf.mxu0
        %v1381 = vpop.f32.mrf.mxu0
        %v1382 = vadd.f32 0.0, %v1381
        %v1383 = vpop.f32.mrf.mxu0
        %1384 = vmatprep.mubr.bf16.mxu0 %v869
        %1385 = vmatmul.mubr.bf16.gmra.mxu0 %v868
        %v1386 = vpop.f32.mrf.mxu0
        %v1387 = vadd.f32 0.0, %v1386
        %v1388 = vpop.f32.mrf.mxu0
        %v1389 = vpop.f32.mrf.mxu0
        %v1390 = vadd.f32 0.0, %v1389
        %v1391 = vpop.f32.mrf.mxu0
        %1392 = vmatprep.mubr.bf16.mxu0 %v871
        %1393 = vmatmul.mubr.bf16.gmra.mxu0 %v870
        %v1394 = vpop.f32.mrf.mxu0
        %v1395 = vadd.f32 0.0, %v1394
        %v1396 = vpop.f32.mrf.mxu0
        %v1397 = vpop.f32.mrf.mxu0
        %v1398 = vadd.f32 0.0, %v1397
        %v1399 = vpop.f32.mrf.mxu0
        %1400 = vmatprep.mubr.bf16.mxu0 %v873
        %1401 = vmatmul.mubr.bf16.gmra.mxu0 %v872
        %v1402 = vpop.f32.mrf.mxu0
        %v1403 = vadd.f32 0.0, %v1402
        %v1404 = vpop.f32.mrf.mxu0
        %v1405 = vpop.f32.mrf.mxu0
        %v1406 = vadd.f32 0.0, %v1405
        %v1407 = vpop.f32.mrf.mxu0
        %1408 = vmatprep.mubr.bf16.mxu0 %v875
        %1409 = vmatmul.mubr.bf16.gmra.mxu0 %v874
        %v1410 = vpop.f32.mrf.mxu0
        %v1411 = vadd.f32 0.0, %v1410
        %v1412 = vpop.f32.mrf.mxu0
        %v1413 = vpop.f32.mrf.mxu0
        %v1414 = vadd.f32 0.0, %v1413
        %v1415 = vpop.f32.mrf.mxu0
        %1416 = vmatprep.mubr.bf16.mxu0 %v877
        %1417 = vmatmul.mubr.bf16.gmra.mxu0 %v876
        %v1418 = vpop.f32.mrf.mxu0
        %v1419 = vadd.f32 0.0, %v1418
        %v1420 = vpop.f32.mrf.mxu0
        %v1421 = vpop.f32.mrf.mxu0
        %v1422 = vadd.f32 0.0, %v1421
        %v1423 = vpop.f32.mrf.mxu0
        %1424 = vmatprep.mubr.bf16.mxu0 %v879
        %1425 = vmatmul.mubr.bf16.gmra.mxu0 %v878
        %v1426 = vpop.f32.mrf.mxu0
        %v1427 = vadd.f32 0.0, %v1426
        %v1428 = vpop.f32.mrf.mxu0
        %v1429 = vpop.f32.mrf.mxu0
        %v1430 = vadd.f32 0.0, %v1429
        %v1431 = vpop.f32.mrf.mxu0
        %1432 = vmatprep.mubr.bf16.mxu0 %v881
        %1433 = vmatmul.mubr.bf16.gmra.mxu0 %v880
        %v1434 = vpop.f32.mrf.mxu0
        %v1435 = vadd.f32 0.0, %v1434
        %v1436 = vpop.f32.mrf.mxu0
        %v1437 = vpop.f32.mrf.mxu0
        %v1438 = vadd.f32 0.0, %v1437
        %v1439 = vpop.f32.mrf.mxu0
        %1440 = vmatprep.mubr.bf16.mxu0 %v883
        %1441 = vmatmul.mubr.bf16.gmra.mxu0 %v882
        %v1442 = vpop.f32.mrf.mxu0
        %v1443 = vadd.f32 0.0, %v1442
        %v1444 = vpop.f32.mrf.mxu0
        %v1445 = vpop.f32.mrf.mxu0
        %v1446 = vadd.f32 0.0, %v1445
        %v1447 = vpop.f32.mrf.mxu0
        %1448 = vmatprep.mubr.bf16.mxu0 %v885
        %1449 = vmatmul.mubr.bf16.gmra.mxu0 %v884
        %v1450 = vpop.f32.mrf.mxu0
        %v1451 = vadd.f32 0.0, %v1450
        %v1452 = vpop.f32.mrf.mxu0
        %v1453 = vpop.f32.mrf.mxu0
        %v1454 = vadd.f32 0.0, %v1453
        %v1455 = vpop.f32.mrf.mxu0
        %1456 = vmatprep.mubr.bf16.mxu0 %v887
        %1457 = vmatmul.mubr.bf16.gmra.mxu0 %v886
        %v1458 = vpop.f32.mrf.mxu0
        %v1459 = vadd.f32 0.0, %v1458
        %v1460 = vpop.f32.mrf.mxu0
        %v1461 = vpop.f32.mrf.mxu0
        %v1462 = vadd.f32 0.0, %v1461
        %v1463 = vpop.f32.mrf.mxu0
        %1464 = vmatprep.mubr.bf16.mxu0 %v889
        %1465 = vmatmul.mubr.bf16.gmra.mxu0 %v888
        %v1466 = vpop.f32.mrf.mxu0
        %v1467 = vadd.f32 0.0, %v1466
        %v1468 = vpop.f32.mrf.mxu0
        %v1469 = vpop.f32.mrf.mxu0
        %v1470 = vadd.f32 0.0, %v1469
        %v1471 = vpop.f32.mrf.mxu0
        %1472 = vmatprep.mubr.bf16.mxu0 %v891
        %1473 = vmatmul.mubr.bf16.gmra.mxu0 %v890
        %v1474 = vpop.f32.mrf.mxu0
        %v1475 = vadd.f32 0.0, %v1474
        %v1476 = vpop.f32.mrf.mxu0
        %v1477 = vpop.f32.mrf.mxu0
        %v1478 = vadd.f32 0.0, %v1477
        %v1479 = vpop.f32.mrf.mxu0
        %1480 = vmatprep.mubr.bf16.mxu0 %v893
        %1481 = vmatmul.mubr.bf16.gmra.mxu0 %v892
        %v1482 = vpop.f32.mrf.mxu0
        %v1483 = vadd.f32 0.0, %v1482
        %v1484 = vpop.f32.mrf.mxu0
        %v1485 = vpop.f32.mrf.mxu0
        %v1486 = vadd.f32 0.0, %v1485
        %v1487 = vpop.f32.mrf.mxu0
        %1488 = vmatprep.mubr.bf16.mxu0 %v895
        %1489 = vmatmul.mubr.bf16.gmra.mxu0 %v894
        %v1490 = vpop.f32.mrf.mxu0
        %v1491 = vadd.f32 0.0, %v1490
        %v1492 = vpop.f32.mrf.mxu0
        %v1493 = vpop.f32.mrf.mxu0
        %v1494 = vadd.f32 0.0, %v1493
        %v1495 = vpop.f32.mrf.mxu0
        %1496 = vmatprep.mubr.bf16.mxu0 %v897
        %1497 = vmatmul.mubr.bf16.gmra.mxu0 %v896
        %v1498 = vpop.f32.mrf.mxu0
        %v1499 = vadd.f32 0.0, %v1498
        %v1500 = vpop.f32.mrf.mxu0
        %v1501 = vpop.f32.mrf.mxu0
        %v1502 = vadd.f32 0.0, %v1501
        %v1503 = vpop.f32.mrf.mxu0
        %1504 = vmatprep.mubr.bf16.mxu0 %v899
        %1505 = vmatmul.mubr.bf16.gmra.mxu0 %v898
        %v1506 = vpop.f32.mrf.mxu0
        %v1507 = vadd.f32 0.0, %v1506
        %v1508 = vpop.f32.mrf.mxu0
        %v1509 = vpop.f32.mrf.mxu0
        %v1510 = vadd.f32 0.0, %v1509
        %v1511 = vpop.f32.mrf.mxu0
        %1512 = vmatprep.mubr.bf16.mxu0 %v901
        %1513 = vmatmul.mubr.bf16.gmra.mxu0 %v900
        %v1514 = vpop.f32.mrf.mxu0
        %v1515 = vadd.f32 0.0, %v1514
        %v1516 = vpop.f32.mrf.mxu0
        %v1517 = vpop.f32.mrf.mxu0
        %v1518 = vadd.f32 0.0, %v1517
        %v1519 = vpop.f32.mrf.mxu0
        %1520 = vmatprep.mubr.bf16.mxu0 %v903
        %1521 = vmatmul.mubr.bf16.gmra.mxu0 %v902
        %v1522 = vpop.f32.mrf.mxu0
        %v1523 = vadd.f32 0.0, %v1522
        %v1524 = vpop.f32.mrf.mxu0
        %v1525 = vpop.f32.mrf.mxu0
        %v1526 = vadd.f32 0.0, %v1525
        %v1527 = vpop.f32.mrf.mxu0
        %1528 = vmatprep.mubr.bf16.mxu0 %v905
        %1529 = vmatmul.mubr.bf16.gmra.mxu0 %v904
        %v1530 = vpop.f32.mrf.mxu0
        %v1531 = vadd.f32 0.0, %v1530
        %v1532 = vpop.f32.mrf.mxu0
        %v1533 = vpop.f32.mrf.mxu0
        %v1534 = vadd.f32 0.0, %v1533
        %v1535 = vpop.f32.mrf.mxu0
        %1536 = vmatprep.mubr.bf16.mxu0 %v907
        %1537 = vmatmul.mubr.bf16.gmra.mxu0 %v906
        %v1538 = vpop.f32.mrf.mxu0
        %v1539 = vadd.f32 0.0, %v1538
        %v1540 = vpop.f32.mrf.mxu0
        %v1541 = vpop.f32.mrf.mxu0
        %v1542 = vadd.f32 0.0, %v1541
        %v1543 = vpop.f32.mrf.mxu0
        %1544 = vmatprep.mubr.bf16.mxu0 %v909
        %1545 = vmatmul.mubr.bf16.gmra.mxu0 %v908
        %v1546 = vpop.f32.mrf.mxu0
        %v1547 = vadd.f32 0.0, %v1546
        %v1548 = vpop.f32.mrf.mxu0
        %v1549 = vpop.f32.mrf.mxu0
        %v1550 = vadd.f32 0.0, %v1549
        %v1551 = vpop.f32.mrf.mxu0
        %1552 = vmatprep.mubr.bf16.mxu0 %v911
        %1553 = vmatmul.mubr.bf16.gmra.mxu0 %v910
        %v1554 = vpop.f32.mrf.mxu0
        %v1555 = vadd.f32 0.0, %v1554
        %v1556 = vpop.f32.mrf.mxu0
        %v1557 = vpop.f32.mrf.mxu0
        %v1558 = vadd.f32 0.0, %v1557
        %v1559 = vpop.f32.mrf.mxu0
        %1560 = vmatprep.mubr.bf16.mxu0 %v913
        %1561 = vmatmul.mubr.bf16.gmra.mxu0 %v912
        %v1562 = vpop.f32.mrf.mxu0
        %v1563 = vadd.f32 0.0, %v1562
        %v1564 = vpop.f32.mrf.mxu0
        %v1565 = vpop.f32.mrf.mxu0
        %v1566 = vadd.f32 0.0, %v1565
        %v1567 = vpop.f32.mrf.mxu0
        %1568 = vmatprep.mubr.bf16.mxu0 %v915
        %1569 = vmatmul.mubr.bf16.gmra.mxu0 %v914
        %v1570 = vpop.f32.mrf.mxu0
        %v1571 = vadd.f32 0.0, %v1570
        %v1572 = vpop.f32.mrf.mxu0
        %v1573 = vpop.f32.mrf.mxu0
        %v1574 = vadd.f32 0.0, %v1573
        %v1575 = vpop.f32.mrf.mxu0
        %1576 = vmatprep.mubr.bf16.mxu0 %v917
        %1577 = vmatmul.mubr.bf16.gmra.mxu0 %v916
        %v1578 = vpop.f32.mrf.mxu0
        %v1579 = vadd.f32 0.0, %v1578
        %v1580 = vpop.f32.mrf.mxu0
        %v1581 = vpop.f32.mrf.mxu0
        %v1582 = vadd.f32 0.0, %v1581
        %v1583 = vpop.f32.mrf.mxu0
        %1584 = vmatprep.mubr.bf16.mxu0 %v919
        %1585 = vmatmul.mubr.bf16.gmra.mxu0 %v918
        %v1586 = vpop.f32.mrf.mxu0
        %v1587 = vadd.f32 0.0, %v1586
        %v1588 = vpop.f32.mrf.mxu0
        %v1589 = vpop.f32.mrf.mxu0
        %v1590 = vadd.f32 0.0, %v1589
        %v1591 = vpop.f32.mrf.mxu0
        %1592 = vmatprep.mubr.bf16.mxu0 %v921
        %1593 = vmatmul.mubr.bf16.gmra.mxu0 %v920
        %v1594 = vpop.f32.mrf.mxu0
        %v1595 = vadd.f32 0.0, %v1594
        %v1596 = vpop.f32.mrf.mxu0
        %v1597 = vpop.f32.mrf.mxu0
        %v1598 = vadd.f32 0.0, %v1597
        %v1599 = vpop.f32.mrf.mxu0
        %1600 = vmatprep.mubr.bf16.mxu0 %v923
        %1601 = vmatmul.mubr.bf16.gmra.mxu0 %v922
        %v1602 = vpop.f32.mrf.mxu0
        %v1603 = vadd.f32 0.0, %v1602
        %v1604 = vpop.f32.mrf.mxu0
        %v1605 = vpop.f32.mrf.mxu0
        %v1606 = vadd.f32 0.0, %v1605
        %v1607 = vpop.f32.mrf.mxu0
        %1608 = vmatprep.mubr.bf16.mxu0 %v925
        %1609 = vmatmul.mubr.bf16.gmra.mxu0 %v924
        %v1610 = vpop.f32.mrf.mxu0
        %v1611 = vadd.f32 0.0, %v1610
        %v1612 = vpop.f32.mrf.mxu0
        %v1613 = vpop.f32.mrf.mxu0
        %v1614 = vadd.f32 0.0, %v1613
        %v1615 = vpop.f32.mrf.mxu0
        %1616 = vmatprep.mubr.bf16.mxu0 %v927
        %1617 = vmatmul.mubr.bf16.gmra.mxu0 %v926
        %v1618 = vpop.f32.mrf.mxu0
        %v1619 = vadd.f32 0.0, %v1618
        %v1620 = vpop.f32.mrf.mxu0
        %v1621 = vpop.f32.mrf.mxu0
        %v1622 = vadd.f32 0.0, %v1621
        %v1623 = vpop.f32.mrf.mxu0
        %1624 = vmatprep.mubr.bf16.mxu0 %v929
        %1625 = vmatmul.mubr.bf16.gmra.mxu0 %v928
        %v1626 = vpop.f32.mrf.mxu0
        %v1627 = vadd.f32 0.0, %v1626
        %v1628 = vpop.f32.mrf.mxu0
        %v1629 = vpop.f32.mrf.mxu0
        %v1630 = vadd.f32 0.0, %v1629
        %v1631 = vpop.f32.mrf.mxu0
        %1632 = vmatprep.mubr.bf16.mxu0 %v931
        %1633 = vmatmul.mubr.bf16.gmra.mxu0 %v930
        %v1634 = vpop.f32.mrf.mxu0
        %v1635 = vadd.f32 0.0, %v1634
        %v1636 = vpop.f32.mrf.mxu0
        %v1637 = vpop.f32.mrf.mxu0
        %v1638 = vadd.f32 0.0, %v1637
        %v1639 = vpop.f32.mrf.mxu0
        %1640 = vmatprep.mubr.bf16.mxu0 %v933
        %1641 = vmatmul.mubr.bf16.gmra.mxu0 %v932
        %v1642 = vpop.f32.mrf.mxu0
        %v1643 = vadd.f32 0.0, %v1642
        %v1644 = vpop.f32.mrf.mxu0
        %v1645 = vpop.f32.mrf.mxu0
        %v1646 = vadd.f32 0.0, %v1645
        %v1647 = vpop.f32.mrf.mxu0
        %1648 = vmatprep.mubr.bf16.mxu0 %v935
        %1649 = vmatmul.mubr.bf16.gmra.mxu0 %v934
        %v1650 = vpop.f32.mrf.mxu0
        %v1651 = vadd.f32 0.0, %v1650
        %v1652 = vpop.f32.mrf.mxu0
        %v1653 = vpop.f32.mrf.mxu0
        %v1654 = vadd.f32 0.0, %v1653
        %v1655 = vpop.f32.mrf.mxu0
        %1656 = vmatprep.mubr.bf16.mxu0 %v937
        %1657 = vmatmul.mubr.bf16.gmra.mxu0 %v936
        %v1658 = vpop.f32.mrf.mxu0
        %v1659 = vadd.f32 0.0, %v1658
        %v1660 = vpop.f32.mrf.mxu0
        %v1661 = vpop.f32.mrf.mxu0
        %v1662 = vadd.f32 0.0, %v1661
        %v1663 = vpop.f32.mrf.mxu0
        %1664 = vmatprep.mubr.bf16.mxu0 %v939
        %1665 = vmatmul.mubr.bf16.gmra.mxu0 %v938
        %v1666 = vpop.f32.mrf.mxu0
        %v1667 = vadd.f32 0.0, %v1666
        %v1668 = vpop.f32.mrf.mxu0
        %v1669 = vpop.f32.mrf.mxu0
        %v1670 = vadd.f32 0.0, %v1669
        %v1671 = vpop.f32.mrf.mxu0
        %1672 = vmatprep.mubr.bf16.mxu0 %v941
        %1673 = vmatmul.mubr.bf16.gmra.mxu0 %v940
        %v1674 = vpop.f32.mrf.mxu0
        %v1675 = vadd.f32 0.0, %v1674
        %v1676 = vpop.f32.mrf.mxu0
        %v1677 = vpop.f32.mrf.mxu0
        %v1678 = vadd.f32 0.0, %v1677
        %v1679 = vpop.f32.mrf.mxu0
        %1680 = vmatprep.mubr.bf16.mxu0 %v943
        %1681 = vmatmul.mubr.bf16.gmra.mxu0 %v942
        %v1682 = vpop.f32.mrf.mxu0
        %v1683 = vadd.f32 0.0, %v1682
        %v1684 = vpop.f32.mrf.mxu0
        %v1685 = vpop.f32.mrf.mxu0
        %v1686 = vadd.f32 0.0, %v1685
        %v1687 = vpop.f32.mrf.mxu0
        %1688 = vmatprep.mubr.bf16.mxu0 %v945
        %1689 = vmatmul.mubr.bf16.gmra.mxu0 %v944
        %v1690 = vpop.f32.mrf.mxu0
        %v1691 = vadd.f32 0.0, %v1690
        %v1692 = vpop.f32.mrf.mxu0
        %v1693 = vpop.f32.mrf.mxu0
        %v1694 = vadd.f32 0.0, %v1693
        %v1695 = vpop.f32.mrf.mxu0
        %1696 = vmatprep.mubr.bf16.mxu0 %v947
        %1697 = vmatmul.mubr.bf16.gmra.mxu0 %v946
        %v1698 = vpop.f32.mrf.mxu0
        %v1699 = vadd.f32 0.0, %v1698
        %v1700 = vpop.f32.mrf.mxu0
        %v1701 = vpop.f32.mrf.mxu0
        %v1702 = vadd.f32 0.0, %v1701
        %v1703 = vpop.f32.mrf.mxu0
        %1704 = vmatprep.mubr.bf16.mxu0 %v949
        %1705 = vmatmul.mubr.bf16.gmra.mxu0 %v948
        %v1706 = vpop.f32.mrf.mxu0
        %v1707 = vadd.f32 0.0, %v1706
        %v1708 = vpop.f32.mrf.mxu0
        %v1709 = vpop.f32.mrf.mxu0
        %v1710 = vadd.f32 0.0, %v1709
        %v1711 = vpop.f32.mrf.mxu0
        %1712 = vmatprep.mubr.bf16.mxu0 %v951
        %1713 = vmatmul.mubr.bf16.gmra.mxu0 %v950
        %v1714 = vpop.f32.mrf.mxu0
        %v1715 = vadd.f32 0.0, %v1714
        %v1716 = vpop.f32.mrf.mxu0
        %v1717 = vpop.f32.mrf.mxu0
        %v1718 = vadd.f32 0.0, %v1717
        %v1719 = vpop.f32.mrf.mxu0
        %1720 = vdwg.mxu0
        %v1721 = vpack.c.bf16 %v1214, %v1211
        %v1722 = vpack.c.bf16 %v1222, %v1219
        %v1723 = vpack.c.bf16 %v1230, %v1227
        %v1724 = vpack.c.bf16 %v1238, %v1235
        %v1725 = vpack.c.bf16 %v1246, %v1243
        %v1726 = vpack.c.bf16 %v1254, %v1251
        %v1727 = vpack.c.bf16 %v1262, %v1259
        %v1728 = vpack.c.bf16 %v1270, %v1267
        %v1729 = vpack.c.bf16 %v1278, %v1275
        %v1730 = vpack.c.bf16 %v1286, %v1283
        %v1731 = vpack.c.bf16 %v1294, %v1291
        %v1732 = vpack.c.bf16 %v1302, %v1299
        %v1733 = vpack.c.bf16 %v1310, %v1307
        %v1734 = vpack.c.bf16 %v1318, %v1315
        %v1735 = vpack.c.bf16 %v1326, %v1323
        %v1736 = vpack.c.bf16 %v1334, %v1331
        %v1737 = vpack.c.bf16 %v1342, %v1339
        %v1738 = vpack.c.bf16 %v1350, %v1347
        %v1739 = vpack.c.bf16 %v1358, %v1355
        %v1740 = vpack.c.bf16 %v1366, %v1363
        %v1741 = vpack.c.bf16 %v1374, %v1371
        %v1742 = vpack.c.bf16 %v1382, %v1379
        %v1743 = vpack.c.bf16 %v1390, %v1387
        %v1744 = vpack.c.bf16 %v1398, %v1395
        %v1745 = vpack.c.bf16 %v1406, %v1403
        %v1746 = vpack.c.bf16 %v1414, %v1411
        %v1747 = vpack.c.bf16 %v1422, %v1419
        %v1748 = vpack.c.bf16 %v1430, %v1427
        %v1749 = vpack.c.bf16 %v1438, %v1435
        %v1750 = vpack.c.bf16 %v1446, %v1443
        %v1751 = vpack.c.bf16 %v1454, %v1451
        %v1752 = vpack.c.bf16 %v1462, %v1459
        %v1753 = vpack.c.bf16 %v1470, %v1467
        %v1754 = vpack.c.bf16 %v1478, %v1475
        %v1755 = vpack.c.bf16 %v1486, %v1483
        %v1756 = vpack.c.bf16 %v1494, %v1491
        %v1757 = vpack.c.bf16 %v1502, %v1499
        %v1758 = vpack.c.bf16 %v1510, %v1507
        %v1759 = vpack.c.bf16 %v1518, %v1515
        %v1760 = vpack.c.bf16 %v1526, %v1523
        %v1761 = vpack.c.bf16 %v1534, %v1531
        %v1762 = vpack.c.bf16 %v1542, %v1539
        %v1763 = vpack.c.bf16 %v1550, %v1547
        %v1764 = vpack.c.bf16 %v1558, %v1555
        %v1765 = vpack.c.bf16 %v1566, %v1563
        %v1766 = vpack.c.bf16 %v1574, %v1571
        %v1767 = vpack.c.bf16 %v1582, %v1579
        %v1768 = vpack.c.bf16 %v1590, %v1587
        %v1769 = vpack.c.bf16 %v1598, %v1595
        %v1770 = vpack.c.bf16 %v1606, %v1603
        %v1771 = vpack.c.bf16 %v1614, %v1611
        %v1772 = vpack.c.bf16 %v1622, %v1619
        %v1773 = vpack.c.bf16 %v1630, %v1627
        %v1774 = vpack.c.bf16 %v1638, %v1635
        %v1775 = vpack.c.bf16 %v1646, %v1643
        %v1776 = vpack.c.bf16 %v1654, %v1651
        %v1777 = vpack.c.bf16 %v1662, %v1659
        %v1778 = vpack.c.bf16 %v1670, %v1667
        %v1779 = vpack.c.bf16 %v1678, %v1675
        %v1780 = vpack.c.bf16 %v1686, %v1683
        %v1781 = vpack.c.bf16 %v1694, %v1691
        %v1782 = vpack.c.bf16 %v1702, %v1699
        %v1783 = vpack.c.bf16 %v1710, %v1707
        %v1784 = vpack.c.bf16 %v1718, %v1715
        %vm1785 = vcmask 7168
        %v1787 = vsel %vm1785, %v1725, 0
        %v1790 = vsel %vm1785, %v1726, 0
        %v1793 = vsel %vm1785, %v1727, 0
        %v1796 = vsel %vm1785, %v1728, 0
        %vm1798 = vcmask 1040384
        %v1799 = vsel 0, 4294967295, 65535
        %v1800 = vsel %vm1798, %v1799, 0
        %v1802 = vand.u32 %v425, %v1800
        %1804 = vmatprep.subr.bf16.mxu0 0
        %1805 = vmatpush1.bf16.msra.mxu0 0
        %1806 = vmatprep.subr.bf16.mxu0 0
        %1807 = vmatpush1.bf16.msra.mxu0 0
        %1808 = vmatprep.subr.bf16.mxu0 0
        %1809 = vmatpush1.bf16.msra.mxu0 0
        %1810 = vmatprep.subr.bf16.mxu0 0
        %1811 = vmatpush1.bf16.msra.mxu0 0
        %1812 = vmatprep.subr.bf16.mxu0 0
        %1813 = vmatpush1.bf16.msra.mxu0 0
        %1814 = vmatprep.subr.bf16.mxu0 0
        %1815 = vmatpush1.bf16.msra.mxu0 0
        %1816 = vmatprep.subr.bf16.mxu0 0
        %1817 = vmatpush1.bf16.msra.mxu0 0
        %1818 = vmatprep.subr.bf16.mxu0 0
        %1819 = vmatpush1.bf16.msra.mxu0 %v1802
        %1820 = vmatprep.subr.bf16.mxu0 0
        %1821 = vmatpush2.bf16.msra.mxu0 0
        %1822 = vmatprep.subr.bf16.mxu0 0
        %1823 = vmatpush2.bf16.msra.mxu0 0
        %1824 = vmatprep.subr.bf16.mxu0 0
        %1825 = vmatpush2.bf16.msra.mxu0 0
        %1826 = vmatprep.subr.bf16.mxu0 0
        %1827 = vmatpush2.bf16.msra.mxu0 0
        %1828 = vmatprep.subr.bf16.mxu0 0
        %1829 = vmatpush2.bf16.msra.mxu0 0
        %1830 = vmatprep.subr.bf16.mxu0 0
        %1831 = vmatpush2.bf16.msra.mxu0 0
        %1832 = vmatprep.subr.bf16.mxu0 0
        %1833 = vmatpush2.bf16.msra.mxu0 0
        %1834 = vmatprep.subr.bf16.mxu0 0
        %1835 = vmatpush2.bf16.msra.mxu0 0
        %1836 = vmatprep.mubr.bf16.mxu0 0
        %1837 = vmatmul.mubr.bf16.gmra.mxu0 %v1787
        %v1838 = vpop.f32.mrf.mxu0
        %v1839 = vadd.f32 0.0, %v1838
        %v1840 = vpop.f32.mrf.mxu0
        %v1841 = vpop.f32.mrf.mxu0
        %v1842 = vadd.f32 0.0, %v1841
        %v1843 = vpop.f32.mrf.mxu0
        %1844 = vmatprep.mubr.bf16.mxu0 0
        %1845 = vmatmul.mubr.bf16.gmra.mxu0 %v1790
        %v1846 = vpop.f32.mrf.mxu0
        %v1847 = vadd.f32 0.0, %v1846
        %v1848 = vpop.f32.mrf.mxu0
        %v1849 = vpop.f32.mrf.mxu0
        %v1850 = vadd.f32 0.0, %v1849
        %v1851 = vpop.f32.mrf.mxu0
        %1852 = vmatprep.mubr.bf16.mxu0 0
        %1853 = vmatmul.mubr.bf16.gmra.mxu0 %v1793
        %v1854 = vpop.f32.mrf.mxu0
        %v1855 = vadd.f32 0.0, %v1854
        %v1856 = vpop.f32.mrf.mxu0
        %v1857 = vpop.f32.mrf.mxu0
        %v1858 = vadd.f32 0.0, %v1857
        %v1859 = vpop.f32.mrf.mxu0
        %1860 = vmatprep.mubr.bf16.mxu0 0
        %1861 = vmatmul.mubr.bf16.gmra.mxu0 %v1796
        %v1862 = vpop.f32.mrf.mxu0
        %v1863 = vadd.f32 0.0, %v1862
        %v1864 = vpop.f32.mrf.mxu0
        %v1865 = vpop.f32.mrf.mxu0
        %v1866 = vadd.f32 0.0, %v1865
        %v1867 = vpop.f32.mrf.mxu0
        %1868 = vdwg.mxu0
        %v1870 = vsel %vm1785, %v1721, 0
        %v1873 = vsel %vm1785, %v1722, 0
        %v1876 = vsel %vm1785, %v1723, 0
        %v1879 = vsel %vm1785, %v1724, 0
        %v1882 = vand.u32 %v424, %v1800
        %1884 = vmatprep.subr.bf16.mxu0 0
        %1885 = vmatpush1.bf16.msra.mxu0 0
        %1886 = vmatprep.subr.bf16.mxu0 0
        %1887 = vmatpush1.bf16.msra.mxu0 0
        %1888 = vmatprep.subr.bf16.mxu0 0
        %1889 = vmatpush1.bf16.msra.mxu0 0
        %1890 = vmatprep.subr.bf16.mxu0 0
        %1891 = vmatpush1.bf16.msra.mxu0 0
        %1892 = vmatprep.subr.bf16.mxu0 0
        %1893 = vmatpush1.bf16.msra.mxu0 0
        %1894 = vmatprep.subr.bf16.mxu0 0
        %1895 = vmatpush1.bf16.msra.mxu0 0
        %1896 = vmatprep.subr.bf16.mxu0 0
        %1897 = vmatpush1.bf16.msra.mxu0 0
        %1898 = vmatprep.subr.bf16.mxu0 0
        %1899 = vmatpush1.bf16.msra.mxu0 %v1882
        %1900 = vmatprep.subr.bf16.mxu0 0
        %1901 = vmatpush2.bf16.msra.mxu0 0
        %1902 = vmatprep.subr.bf16.mxu0 0
        %1903 = vmatpush2.bf16.msra.mxu0 0
        %1904 = vmatprep.subr.bf16.mxu0 0
        %1905 = vmatpush2.bf16.msra.mxu0 0
        %1906 = vmatprep.subr.bf16.mxu0 0
        %1907 = vmatpush2.bf16.msra.mxu0 0
        %1908 = vmatprep.subr.bf16.mxu0 0
        %1909 = vmatpush2.bf16.msra.mxu0 0
        %1910 = vmatprep.subr.bf16.mxu0 0
        %1911 = vmatpush2.bf16.msra.mxu0 0
        %1912 = vmatprep.subr.bf16.mxu0 0
        %1913 = vmatpush2.bf16.msra.mxu0 0
        %1914 = vmatprep.subr.bf16.mxu0 0
        %1915 = vmatpush2.bf16.msra.mxu0 0
        %1916 = vmatprep.mubr.bf16.mxu0 0
        %1917 = vmatmul.mubr.bf16.gmra.mxu0 %v1870
        %v1918 = vpop.f32.mrf.mxu0
        %v1919 = vadd.f32 %v1839, %v1918
        %v1920 = vpop.f32.mrf.mxu0
        %v1921 = vpop.f32.mrf.mxu0
        %v1922 = vadd.f32 %v1842, %v1921
        %v1923 = vpop.f32.mrf.mxu0
        %1924 = vmatprep.mubr.bf16.mxu0 0
        %1925 = vmatmul.mubr.bf16.gmra.mxu0 %v1873
        %v1926 = vpop.f32.mrf.mxu0
        %v1927 = vadd.f32 %v1847, %v1926
        %v1928 = vpop.f32.mrf.mxu0
        %v1929 = vpop.f32.mrf.mxu0
        %v1930 = vadd.f32 %v1850, %v1929
        %v1931 = vpop.f32.mrf.mxu0
        %1932 = vmatprep.mubr.bf16.mxu0 0
        %1933 = vmatmul.mubr.bf16.gmra.mxu0 %v1876
        %v1934 = vpop.f32.mrf.mxu0
        %v1935 = vadd.f32 %v1855, %v1934
        %v1936 = vpop.f32.mrf.mxu0
        %v1937 = vpop.f32.mrf.mxu0
        %v1938 = vadd.f32 %v1858, %v1937
        %v1939 = vpop.f32.mrf.mxu0
        %1940 = vmatprep.mubr.bf16.mxu0 0
        %1941 = vmatmul.mubr.bf16.gmra.mxu0 %v1879
        %v1942 = vpop.f32.mrf.mxu0
        %v1943 = vadd.f32 %v1863, %v1942
        %v1944 = vpop.f32.mrf.mxu0
        %v1945 = vpop.f32.mrf.mxu0
        %v1946 = vadd.f32 %v1866, %v1945
        %v1947 = vpop.f32.mrf.mxu0
        %1948 = vdwg.mxu0
        %v1950 = vsel %vm1785, %v1729, 0
        %v1953 = vsel %vm1785, %v1730, 0
        %v1956 = vsel %vm1785, %v1731, 0
        %v1959 = vsel %vm1785, %v1732, 0
        %v1962 = vand.u32 %v426, %v1800
        %1964 = vmatprep.subr.bf16.mxu0 0
        %1965 = vmatpush1.bf16.msra.mxu0 0
        %1966 = vmatprep.subr.bf16.mxu0 0
        %1967 = vmatpush1.bf16.msra.mxu0 0
        %1968 = vmatprep.subr.bf16.mxu0 0
        %1969 = vmatpush1.bf16.msra.mxu0 0
        %1970 = vmatprep.subr.bf16.mxu0 0
        %1971 = vmatpush1.bf16.msra.mxu0 0
        %1972 = vmatprep.subr.bf16.mxu0 0
        %1973 = vmatpush1.bf16.msra.mxu0 0
        %1974 = vmatprep.subr.bf16.mxu0 0
        %1975 = vmatpush1.bf16.msra.mxu0 0
        %1976 = vmatprep.subr.bf16.mxu0 0
        %1977 = vmatpush1.bf16.msra.mxu0 0
        %1978 = vmatprep.subr.bf16.mxu0 0
        %1979 = vmatpush1.bf16.msra.mxu0 %v1962
        %1980 = vmatprep.subr.bf16.mxu0 0
        %1981 = vmatpush2.bf16.msra.mxu0 0
        %1982 = vmatprep.subr.bf16.mxu0 0
        %1983 = vmatpush2.bf16.msra.mxu0 0
        %1984 = vmatprep.subr.bf16.mxu0 0
        %1985 = vmatpush2.bf16.msra.mxu0 0
        %1986 = vmatprep.subr.bf16.mxu0 0
        %1987 = vmatpush2.bf16.msra.mxu0 0
        %1988 = vmatprep.subr.bf16.mxu0 0
        %1989 = vmatpush2.bf16.msra.mxu0 0
        %1990 = vmatprep.subr.bf16.mxu0 0
        %1991 = vmatpush2.bf16.msra.mxu0 0
        %1992 = vmatprep.subr.bf16.mxu0 0
        %1993 = vmatpush2.bf16.msra.mxu0 0
        %1994 = vmatprep.subr.bf16.mxu0 0
        %1995 = vmatpush2.bf16.msra.mxu0 0
        %1996 = vmatprep.mubr.bf16.mxu0 0
        %1997 = vmatmul.mubr.bf16.gmra.mxu0 %v1950
        %v1998 = vpop.f32.mrf.mxu0
        %v1999 = vadd.f32 0.0, %v1998
        %v2000 = vpop.f32.mrf.mxu0
        %v2001 = vpop.f32.mrf.mxu0
        %v2002 = vadd.f32 0.0, %v2001
        %v2003 = vpop.f32.mrf.mxu0
        %2004 = vmatprep.mubr.bf16.mxu0 0
        %2005 = vmatmul.mubr.bf16.gmra.mxu0 %v1953
        %v2006 = vpop.f32.mrf.mxu0
        %v2007 = vadd.f32 0.0, %v2006
        %v2008 = vpop.f32.mrf.mxu0
        %v2009 = vpop.f32.mrf.mxu0
        %v2010 = vadd.f32 0.0, %v2009
        %v2011 = vpop.f32.mrf.mxu0
        %2012 = vmatprep.mubr.bf16.mxu0 0
        %2013 = vmatmul.mubr.bf16.gmra.mxu0 %v1956
        %v2014 = vpop.f32.mrf.mxu0
        %v2015 = vadd.f32 0.0, %v2014
        %v2016 = vpop.f32.mrf.mxu0
        %v2017 = vpop.f32.mrf.mxu0
        %v2018 = vadd.f32 0.0, %v2017
        %v2019 = vpop.f32.mrf.mxu0
        %2020 = vmatprep.mubr.bf16.mxu0 0
        %2021 = vmatmul.mubr.bf16.gmra.mxu0 %v1959
        %v2022 = vpop.f32.mrf.mxu0
        %v2023 = vadd.f32 0.0, %v2022
        %v2024 = vpop.f32.mrf.mxu0
        %v2025 = vpop.f32.mrf.mxu0
        %v2026 = vadd.f32 0.0, %v2025
        %v2027 = vpop.f32.mrf.mxu0
        %2028 = vdwg.mxu0
        %v2029 = vadd.f32 %v1919, %v1999
        %v2030 = vadd.f32 %v1922, %v2002
        %v2031 = vadd.f32 %v1927, %v2007
        %v2032 = vadd.f32 %v1930, %v2010
        %v2033 = vadd.f32 %v1935, %v2015
        %v2034 = vadd.f32 %v1938, %v2018
        %v2035 = vadd.f32 %v1943, %v2023
        %v2036 = vadd.f32 %v1946, %v2026
        %v2038 = vsel %vm1785, %v1733, 0
        %v2041 = vsel %vm1785, %v1734, 0
        %v2044 = vsel %vm1785, %v1735, 0
        %v2047 = vsel %vm1785, %v1736, 0
        %v2050 = vand.u32 %v427, %v1800
        %2052 = vmatprep.subr.bf16.mxu0 0
        %2053 = vmatpush1.bf16.msra.mxu0 0
        %2054 = vmatprep.subr.bf16.mxu0 0
        %2055 = vmatpush1.bf16.msra.mxu0 0
        %2056 = vmatprep.subr.bf16.mxu0 0
        %2057 = vmatpush1.bf16.msra.mxu0 0
        %2058 = vmatprep.subr.bf16.mxu0 0
        %2059 = vmatpush1.bf16.msra.mxu0 0
        %2060 = vmatprep.subr.bf16.mxu0 0
        %2061 = vmatpush1.bf16.msra.mxu0 0
        %2062 = vmatprep.subr.bf16.mxu0 0
        %2063 = vmatpush1.bf16.msra.mxu0 0
        %2064 = vmatprep.subr.bf16.mxu0 0
        %2065 = vmatpush1.bf16.msra.mxu0 0
        %2066 = vmatprep.subr.bf16.mxu0 0
        %2067 = vmatpush1.bf16.msra.mxu0 %v2050
        %2068 = vmatprep.subr.bf16.mxu0 0
        %2069 = vmatpush2.bf16.msra.mxu0 0
        %2070 = vmatprep.subr.bf16.mxu0 0
        %2071 = vmatpush2.bf16.msra.mxu0 0
        %2072 = vmatprep.subr.bf16.mxu0 0
        %2073 = vmatpush2.bf16.msra.mxu0 0
        %2074 = vmatprep.subr.bf16.mxu0 0
        %2075 = vmatpush2.bf16.msra.mxu0 0
        %2076 = vmatprep.subr.bf16.mxu0 0
        %2077 = vmatpush2.bf16.msra.mxu0 0
        %2078 = vmatprep.subr.bf16.mxu0 0
        %2079 = vmatpush2.bf16.msra.mxu0 0
        %2080 = vmatprep.subr.bf16.mxu0 0
        %2081 = vmatpush2.bf16.msra.mxu0 0
        %2082 = vmatprep.subr.bf16.mxu0 0
        %2083 = vmatpush2.bf16.msra.mxu0 0
        %2084 = vmatprep.mubr.bf16.mxu0 0
        %2085 = vmatmul.mubr.bf16.gmra.mxu0 %v2038
        %v2086 = vpop.f32.mrf.mxu0
        %v2087 = vadd.f32 0.0, %v2086
        %v2088 = vpop.f32.mrf.mxu0
        %v2089 = vpop.f32.mrf.mxu0
        %v2090 = vadd.f32 0.0, %v2089
        %v2091 = vpop.f32.mrf.mxu0
        %2092 = vmatprep.mubr.bf16.mxu0 0
        %2093 = vmatmul.mubr.bf16.gmra.mxu0 %v2041
        %v2094 = vpop.f32.mrf.mxu0
        %v2095 = vadd.f32 0.0, %v2094
        %v2096 = vpop.f32.mrf.mxu0
        %v2097 = vpop.f32.mrf.mxu0
        %v2098 = vadd.f32 0.0, %v2097
        %v2099 = vpop.f32.mrf.mxu0
        %2100 = vmatprep.mubr.bf16.mxu0 0
        %2101 = vmatmul.mubr.bf16.gmra.mxu0 %v2044
        %v2102 = vpop.f32.mrf.mxu0
        %v2103 = vadd.f32 0.0, %v2102
        %v2104 = vpop.f32.mrf.mxu0
        %v2105 = vpop.f32.mrf.mxu0
        %v2106 = vadd.f32 0.0, %v2105
        %v2107 = vpop.f32.mrf.mxu0
        %2108 = vmatprep.mubr.bf16.mxu0 0
        %2109 = vmatmul.mubr.bf16.gmra.mxu0 %v2047
        %v2110 = vpop.f32.mrf.mxu0
        %v2111 = vadd.f32 0.0, %v2110
        %v2112 = vpop.f32.mrf.mxu0
        %v2113 = vpop.f32.mrf.mxu0
        %v2114 = vadd.f32 0.0, %v2113
        %v2115 = vpop.f32.mrf.mxu0
        %2116 = vdwg.mxu0
        %v2117 = vadd.f32 %v2029, %v2087
        %v2118 = vadd.f32 %v2030, %v2090
        %v2119 = vadd.f32 %v2031, %v2095
        %v2120 = vadd.f32 %v2032, %v2098
        %v2121 = vadd.f32 %v2033, %v2103
        %v2122 = vadd.f32 %v2034, %v2106
        %v2123 = vadd.f32 %v2035, %v2111
        %v2124 = vadd.f32 %v2036, %v2114
        %v2126 = vsel %vm1785, %v1737, 0
        %v2129 = vsel %vm1785, %v1738, 0
        %v2132 = vsel %vm1785, %v1739, 0
        %v2135 = vsel %vm1785, %v1740, 0
        %v2138 = vand.u32 %v428, %v1800
        %2140 = vmatprep.subr.bf16.mxu0 0
        %2141 = vmatpush1.bf16.msra.mxu0 0
        %2142 = vmatprep.subr.bf16.mxu0 0
        %2143 = vmatpush1.bf16.msra.mxu0 0
        %2144 = vmatprep.subr.bf16.mxu0 0
        %2145 = vmatpush1.bf16.msra.mxu0 0
        %2146 = vmatprep.subr.bf16.mxu0 0
        %2147 = vmatpush1.bf16.msra.mxu0 0
        %2148 = vmatprep.subr.bf16.mxu0 0
        %2149 = vmatpush1.bf16.msra.mxu0 0
        %2150 = vmatprep.subr.bf16.mxu0 0
        %2151 = vmatpush1.bf16.msra.mxu0 0
        %2152 = vmatprep.subr.bf16.mxu0 0
        %2153 = vmatpush1.bf16.msra.mxu0 0
        %2154 = vmatprep.subr.bf16.mxu0 0
        %2155 = vmatpush1.bf16.msra.mxu0 %v2138
        %2156 = vmatprep.subr.bf16.mxu0 0
        %2157 = vmatpush2.bf16.msra.mxu0 0
        %2158 = vmatprep.subr.bf16.mxu0 0
        %2159 = vmatpush2.bf16.msra.mxu0 0
        %2160 = vmatprep.subr.bf16.mxu0 0
        %2161 = vmatpush2.bf16.msra.mxu0 0
        %2162 = vmatprep.subr.bf16.mxu0 0
        %2163 = vmatpush2.bf16.msra.mxu0 0
        %2164 = vmatprep.subr.bf16.mxu0 0
        %2165 = vmatpush2.bf16.msra.mxu0 0
        %2166 = vmatprep.subr.bf16.mxu0 0
        %2167 = vmatpush2.bf16.msra.mxu0 0
        %2168 = vmatprep.subr.bf16.mxu0 0
        %2169 = vmatpush2.bf16.msra.mxu0 0
        %2170 = vmatprep.subr.bf16.mxu0 0
        %2171 = vmatpush2.bf16.msra.mxu0 0
        %2172 = vmatprep.mubr.bf16.mxu0 0
        %2173 = vmatmul.mubr.bf16.gmra.mxu0 %v2126
        %v2174 = vpop.f32.mrf.mxu0
        %v2175 = vadd.f32 0.0, %v2174
        %v2176 = vpop.f32.mrf.mxu0
        %v2177 = vpop.f32.mrf.mxu0
        %v2178 = vadd.f32 0.0, %v2177
        %v2179 = vpop.f32.mrf.mxu0
        %2180 = vmatprep.mubr.bf16.mxu0 0
        %2181 = vmatmul.mubr.bf16.gmra.mxu0 %v2129
        %v2182 = vpop.f32.mrf.mxu0
        %v2183 = vadd.f32 0.0, %v2182
        %v2184 = vpop.f32.mrf.mxu0
        %v2185 = vpop.f32.mrf.mxu0
        %v2186 = vadd.f32 0.0, %v2185
        %v2187 = vpop.f32.mrf.mxu0
        %2188 = vmatprep.mubr.bf16.mxu0 0
        %2189 = vmatmul.mubr.bf16.gmra.mxu0 %v2132
        %v2190 = vpop.f32.mrf.mxu0
        %v2191 = vadd.f32 0.0, %v2190
        %v2192 = vpop.f32.mrf.mxu0
        %v2193 = vpop.f32.mrf.mxu0
        %v2194 = vadd.f32 0.0, %v2193
        %v2195 = vpop.f32.mrf.mxu0
        %2196 = vmatprep.mubr.bf16.mxu0 0
        %2197 = vmatmul.mubr.bf16.gmra.mxu0 %v2135
        %v2198 = vpop.f32.mrf.mxu0
        %v2199 = vadd.f32 0.0, %v2198
        %v2200 = vpop.f32.mrf.mxu0
        %v2201 = vpop.f32.mrf.mxu0
        %v2202 = vadd.f32 0.0, %v2201
        %v2203 = vpop.f32.mrf.mxu0
        %2204 = vdwg.mxu0
        %v2205 = vadd.f32 %v2117, %v2175
        %v2206 = vadd.f32 %v2118, %v2178
        %v2207 = vadd.f32 %v2119, %v2183
        %v2208 = vadd.f32 %v2120, %v2186
        %v2209 = vadd.f32 %v2121, %v2191
        %v2210 = vadd.f32 %v2122, %v2194
        %v2211 = vadd.f32 %v2123, %v2199
        %v2212 = vadd.f32 %v2124, %v2202
        %v2214 = vsel %vm1785, %v1741, 0
        %v2217 = vsel %vm1785, %v1742, 0
        %v2220 = vsel %vm1785, %v1743, 0
        %v2223 = vsel %vm1785, %v1744, 0
        %v2226 = vand.u32 %v429, %v1800
        %2228 = vmatprep.subr.bf16.mxu0 0
        %2229 = vmatpush1.bf16.msra.mxu0 0
        %2230 = vmatprep.subr.bf16.mxu0 0
        %2231 = vmatpush1.bf16.msra.mxu0 0
        %2232 = vmatprep.subr.bf16.mxu0 0
        %2233 = vmatpush1.bf16.msra.mxu0 0
        %2234 = vmatprep.subr.bf16.mxu0 0
        %2235 = vmatpush1.bf16.msra.mxu0 0
        %2236 = vmatprep.subr.bf16.mxu0 0
        %2237 = vmatpush1.bf16.msra.mxu0 0
        %2238 = vmatprep.subr.bf16.mxu0 0
        %2239 = vmatpush1.bf16.msra.mxu0 0
        %2240 = vmatprep.subr.bf16.mxu0 0
        %2241 = vmatpush1.bf16.msra.mxu0 0
        %2242 = vmatprep.subr.bf16.mxu0 0
        %2243 = vmatpush1.bf16.msra.mxu0 %v2226
        %2244 = vmatprep.subr.bf16.mxu0 0
        %2245 = vmatpush2.bf16.msra.mxu0 0
        %2246 = vmatprep.subr.bf16.mxu0 0
        %2247 = vmatpush2.bf16.msra.mxu0 0
        %2248 = vmatprep.subr.bf16.mxu0 0
        %2249 = vmatpush2.bf16.msra.mxu0 0
        %2250 = vmatprep.subr.bf16.mxu0 0
        %2251 = vmatpush2.bf16.msra.mxu0 0
        %2252 = vmatprep.subr.bf16.mxu0 0
        %2253 = vmatpush2.bf16.msra.mxu0 0
        %2254 = vmatprep.subr.bf16.mxu0 0
        %2255 = vmatpush2.bf16.msra.mxu0 0
        %2256 = vmatprep.subr.bf16.mxu0 0
        %2257 = vmatpush2.bf16.msra.mxu0 0
        %2258 = vmatprep.subr.bf16.mxu0 0
        %2259 = vmatpush2.bf16.msra.mxu0 0
        %2260 = vmatprep.mubr.bf16.mxu0 0
        %2261 = vmatmul.mubr.bf16.gmra.mxu0 %v2214
        %v2262 = vpop.f32.mrf.mxu0
        %v2263 = vadd.f32 0.0, %v2262
        %v2264 = vpop.f32.mrf.mxu0
        %v2265 = vpop.f32.mrf.mxu0
        %v2266 = vadd.f32 0.0, %v2265
        %v2267 = vpop.f32.mrf.mxu0
        %2268 = vmatprep.mubr.bf16.mxu0 0
        %2269 = vmatmul.mubr.bf16.gmra.mxu0 %v2217
        %v2270 = vpop.f32.mrf.mxu0
        %v2271 = vadd.f32 0.0, %v2270
        %v2272 = vpop.f32.mrf.mxu0
        %v2273 = vpop.f32.mrf.mxu0
        %v2274 = vadd.f32 0.0, %v2273
        %v2275 = vpop.f32.mrf.mxu0
        %2276 = vmatprep.mubr.bf16.mxu0 0
        %2277 = vmatmul.mubr.bf16.gmra.mxu0 %v2220
        %v2278 = vpop.f32.mrf.mxu0
        %v2279 = vadd.f32 0.0, %v2278
        %v2280 = vpop.f32.mrf.mxu0
        %v2281 = vpop.f32.mrf.mxu0
        %v2282 = vadd.f32 0.0, %v2281
        %v2283 = vpop.f32.mrf.mxu0
        %2284 = vmatprep.mubr.bf16.mxu0 0
        %2285 = vmatmul.mubr.bf16.gmra.mxu0 %v2223
        %v2286 = vpop.f32.mrf.mxu0
        %v2287 = vadd.f32 0.0, %v2286
        %v2288 = vpop.f32.mrf.mxu0
        %v2289 = vpop.f32.mrf.mxu0
        %v2290 = vadd.f32 0.0, %v2289
        %v2291 = vpop.f32.mrf.mxu0
        %2292 = vdwg.mxu0
        %v2293 = vadd.f32 %v2205, %v2263
        %v2294 = vadd.f32 %v2206, %v2266
        %v2295 = vadd.f32 %v2207, %v2271
        %v2296 = vadd.f32 %v2208, %v2274
        %v2297 = vadd.f32 %v2209, %v2279
        %v2298 = vadd.f32 %v2210, %v2282
        %v2299 = vadd.f32 %v2211, %v2287
        %v2300 = vadd.f32 %v2212, %v2290
        %v2302 = vsel %vm1785, %v1745, 0
        %v2305 = vsel %vm1785, %v1746, 0
        %v2308 = vsel %vm1785, %v1747, 0
        %v2311 = vsel %vm1785, %v1748, 0
        %v2314 = vand.u32 %v430, %v1800
        %2316 = vmatprep.subr.bf16.mxu0 0
        %2317 = vmatpush1.bf16.msra.mxu0 0
        %2318 = vmatprep.subr.bf16.mxu0 0
        %2319 = vmatpush1.bf16.msra.mxu0 0
        %2320 = vmatprep.subr.bf16.mxu0 0
        %2321 = vmatpush1.bf16.msra.mxu0 0
        %2322 = vmatprep.subr.bf16.mxu0 0
        %2323 = vmatpush1.bf16.msra.mxu0 0
        %2324 = vmatprep.subr.bf16.mxu0 0
        %2325 = vmatpush1.bf16.msra.mxu0 0
        %2326 = vmatprep.subr.bf16.mxu0 0
        %2327 = vmatpush1.bf16.msra.mxu0 0
        %2328 = vmatprep.subr.bf16.mxu0 0
        %2329 = vmatpush1.bf16.msra.mxu0 0
        %2330 = vmatprep.subr.bf16.mxu0 0
        %2331 = vmatpush1.bf16.msra.mxu0 %v2314
        %2332 = vmatprep.subr.bf16.mxu0 0
        %2333 = vmatpush2.bf16.msra.mxu0 0
        %2334 = vmatprep.subr.bf16.mxu0 0
        %2335 = vmatpush2.bf16.msra.mxu0 0
        %2336 = vmatprep.subr.bf16.mxu0 0
        %2337 = vmatpush2.bf16.msra.mxu0 0
        %2338 = vmatprep.subr.bf16.mxu0 0
        %2339 = vmatpush2.bf16.msra.mxu0 0
        %2340 = vmatprep.subr.bf16.mxu0 0
        %2341 = vmatpush2.bf16.msra.mxu0 0
        %2342 = vmatprep.subr.bf16.mxu0 0
        %2343 = vmatpush2.bf16.msra.mxu0 0
        %2344 = vmatprep.subr.bf16.mxu0 0
        %2345 = vmatpush2.bf16.msra.mxu0 0
        %2346 = vmatprep.subr.bf16.mxu0 0
        %2347 = vmatpush2.bf16.msra.mxu0 0
        %2348 = vmatprep.mubr.bf16.mxu0 0
        %2349 = vmatmul.mubr.bf16.gmra.mxu0 %v2302
        %v2350 = vpop.f32.mrf.mxu0
        %v2351 = vadd.f32 0.0, %v2350
        %v2352 = vpop.f32.mrf.mxu0
        %v2353 = vpop.f32.mrf.mxu0
        %v2354 = vadd.f32 0.0, %v2353
        %v2355 = vpop.f32.mrf.mxu0
        %2356 = vmatprep.mubr.bf16.mxu0 0
        %2357 = vmatmul.mubr.bf16.gmra.mxu0 %v2305
        %v2358 = vpop.f32.mrf.mxu0
        %v2359 = vadd.f32 0.0, %v2358
        %v2360 = vpop.f32.mrf.mxu0
        %v2361 = vpop.f32.mrf.mxu0
        %v2362 = vadd.f32 0.0, %v2361
        %v2363 = vpop.f32.mrf.mxu0
        %2364 = vmatprep.mubr.bf16.mxu0 0
        %2365 = vmatmul.mubr.bf16.gmra.mxu0 %v2308
        %v2366 = vpop.f32.mrf.mxu0
        %v2367 = vadd.f32 0.0, %v2366
        %v2368 = vpop.f32.mrf.mxu0
        %v2369 = vpop.f32.mrf.mxu0
        %v2370 = vadd.f32 0.0, %v2369
        %v2371 = vpop.f32.mrf.mxu0
        %2372 = vmatprep.mubr.bf16.mxu0 0
        %2373 = vmatmul.mubr.bf16.gmra.mxu0 %v2311
        %v2374 = vpop.f32.mrf.mxu0
        %v2375 = vadd.f32 0.0, %v2374
        %v2376 = vpop.f32.mrf.mxu0
        %v2377 = vpop.f32.mrf.mxu0
        %v2378 = vadd.f32 0.0, %v2377
        %v2379 = vpop.f32.mrf.mxu0
        %2380 = vdwg.mxu0
        %v2381 = vadd.f32 %v2293, %v2351
        %v2382 = vadd.f32 %v2294, %v2354
        %v2383 = vadd.f32 %v2295, %v2359
        %v2384 = vadd.f32 %v2296, %v2362
        %v2385 = vadd.f32 %v2297, %v2367
        %v2386 = vadd.f32 %v2298, %v2370
        %v2387 = vadd.f32 %v2299, %v2375
        %v2388 = vadd.f32 %v2300, %v2378
        %v2390 = vsel %vm1785, %v1749, 0
        %v2393 = vsel %vm1785, %v1750, 0
        %v2396 = vsel %vm1785, %v1751, 0
        %v2399 = vsel %vm1785, %v1752, 0
        %v2402 = vand.u32 %v431, %v1800
        %2404 = vmatprep.subr.bf16.mxu0 0
        %2405 = vmatpush1.bf16.msra.mxu0 0
        %2406 = vmatprep.subr.bf16.mxu0 0
        %2407 = vmatpush1.bf16.msra.mxu0 0
        %2408 = vmatprep.subr.bf16.mxu0 0
        %2409 = vmatpush1.bf16.msra.mxu0 0
        %2410 = vmatprep.subr.bf16.mxu0 0
        %2411 = vmatpush1.bf16.msra.mxu0 0
        %2412 = vmatprep.subr.bf16.mxu0 0
        %2413 = vmatpush1.bf16.msra.mxu0 0
        %2414 = vmatprep.subr.bf16.mxu0 0
        %2415 = vmatpush1.bf16.msra.mxu0 0
        %2416 = vmatprep.subr.bf16.mxu0 0
        %2417 = vmatpush1.bf16.msra.mxu0 0
        %2418 = vmatprep.subr.bf16.mxu0 0
        %2419 = vmatpush1.bf16.msra.mxu0 %v2402
        %2420 = vmatprep.subr.bf16.mxu0 0
        %2421 = vmatpush2.bf16.msra.mxu0 0
        %2422 = vmatprep.subr.bf16.mxu0 0
        %2423 = vmatpush2.bf16.msra.mxu0 0
        %2424 = vmatprep.subr.bf16.mxu0 0
        %2425 = vmatpush2.bf16.msra.mxu0 0
        %2426 = vmatprep.subr.bf16.mxu0 0
        %2427 = vmatpush2.bf16.msra.mxu0 0
        %2428 = vmatprep.subr.bf16.mxu0 0
        %2429 = vmatpush2.bf16.msra.mxu0 0
        %2430 = vmatprep.subr.bf16.mxu0 0
        %2431 = vmatpush2.bf16.msra.mxu0 0
        %2432 = vmatprep.subr.bf16.mxu0 0
        %2433 = vmatpush2.bf16.msra.mxu0 0
        %2434 = vmatprep.subr.bf16.mxu0 0
        %2435 = vmatpush2.bf16.msra.mxu0 0
        %2436 = vmatprep.mubr.bf16.mxu0 0
        %2437 = vmatmul.mubr.bf16.gmra.mxu0 %v2390
        %v2438 = vpop.f32.mrf.mxu0
        %v2439 = vadd.f32 0.0, %v2438
        %v2440 = vpop.f32.mrf.mxu0
        %v2441 = vpop.f32.mrf.mxu0
        %v2442 = vadd.f32 0.0, %v2441
        %v2443 = vpop.f32.mrf.mxu0
        %2444 = vmatprep.mubr.bf16.mxu0 0
        %2445 = vmatmul.mubr.bf16.gmra.mxu0 %v2393
        %v2446 = vpop.f32.mrf.mxu0
        %v2447 = vadd.f32 0.0, %v2446
        %v2448 = vpop.f32.mrf.mxu0
        %v2449 = vpop.f32.mrf.mxu0
        %v2450 = vadd.f32 0.0, %v2449
        %v2451 = vpop.f32.mrf.mxu0
        %2452 = vmatprep.mubr.bf16.mxu0 0
        %2453 = vmatmul.mubr.bf16.gmra.mxu0 %v2396
        %v2454 = vpop.f32.mrf.mxu0
        %v2455 = vadd.f32 0.0, %v2454
        %v2456 = vpop.f32.mrf.mxu0
        %v2457 = vpop.f32.mrf.mxu0
        %v2458 = vadd.f32 0.0, %v2457
        %v2459 = vpop.f32.mrf.mxu0
        %2460 = vmatprep.mubr.bf16.mxu0 0
        %2461 = vmatmul.mubr.bf16.gmra.mxu0 %v2399
        %v2462 = vpop.f32.mrf.mxu0
        %v2463 = vadd.f32 0.0, %v2462
        %v2464 = vpop.f32.mrf.mxu0
        %v2465 = vpop.f32.mrf.mxu0
        %v2466 = vadd.f32 0.0, %v2465
        %v2467 = vpop.f32.mrf.mxu0
        %2468 = vdwg.mxu0
        %v2469 = vadd.f32 %v2381, %v2439
        %v2470 = vadd.f32 %v2382, %v2442
        %v2471 = vadd.f32 %v2383, %v2447
        %v2472 = vadd.f32 %v2384, %v2450
        %v2473 = vadd.f32 %v2385, %v2455
        %v2474 = vadd.f32 %v2386, %v2458
        %v2475 = vadd.f32 %v2387, %v2463
        %v2476 = vadd.f32 %v2388, %v2466
        %v2478 = vsel %vm1785, %v1753, 0
        %v2481 = vsel %vm1785, %v1754, 0
        %v2484 = vsel %vm1785, %v1755, 0
        %v2487 = vsel %vm1785, %v1756, 0
        %v2490 = vand.u32 %v432, %v1800
        %2492 = vmatprep.subr.bf16.mxu0 0
        %2493 = vmatpush1.bf16.msra.mxu0 0
        %2494 = vmatprep.subr.bf16.mxu0 0
        %2495 = vmatpush1.bf16.msra.mxu0 0
        %2496 = vmatprep.subr.bf16.mxu0 0
        %2497 = vmatpush1.bf16.msra.mxu0 0
        %2498 = vmatprep.subr.bf16.mxu0 0
        %2499 = vmatpush1.bf16.msra.mxu0 0
        %2500 = vmatprep.subr.bf16.mxu0 0
        %2501 = vmatpush1.bf16.msra.mxu0 0
        %2502 = vmatprep.subr.bf16.mxu0 0
        %2503 = vmatpush1.bf16.msra.mxu0 0
        %2504 = vmatprep.subr.bf16.mxu0 0
        %2505 = vmatpush1.bf16.msra.mxu0 0
        %2506 = vmatprep.subr.bf16.mxu0 0
        %2507 = vmatpush1.bf16.msra.mxu0 %v2490
        %2508 = vmatprep.subr.bf16.mxu0 0
        %2509 = vmatpush2.bf16.msra.mxu0 0
        %2510 = vmatprep.subr.bf16.mxu0 0
        %2511 = vmatpush2.bf16.msra.mxu0 0
        %2512 = vmatprep.subr.bf16.mxu0 0
        %2513 = vmatpush2.bf16.msra.mxu0 0
        %2514 = vmatprep.subr.bf16.mxu0 0
        %2515 = vmatpush2.bf16.msra.mxu0 0
        %2516 = vmatprep.subr.bf16.mxu0 0
        %2517 = vmatpush2.bf16.msra.mxu0 0
        %2518 = vmatprep.subr.bf16.mxu0 0
        %2519 = vmatpush2.bf16.msra.mxu0 0
        %2520 = vmatprep.subr.bf16.mxu0 0
        %2521 = vmatpush2.bf16.msra.mxu0 0
        %2522 = vmatprep.subr.bf16.mxu0 0
        %2523 = vmatpush2.bf16.msra.mxu0 0
        %2524 = vmatprep.mubr.bf16.mxu0 0
        %2525 = vmatmul.mubr.bf16.gmra.mxu0 %v2478
        %v2526 = vpop.f32.mrf.mxu0
        %v2527 = vadd.f32 0.0, %v2526
        %v2528 = vpop.f32.mrf.mxu0
        %v2529 = vpop.f32.mrf.mxu0
        %v2530 = vadd.f32 0.0, %v2529
        %v2531 = vpop.f32.mrf.mxu0
        %2532 = vmatprep.mubr.bf16.mxu0 0
        %2533 = vmatmul.mubr.bf16.gmra.mxu0 %v2481
        %v2534 = vpop.f32.mrf.mxu0
        %v2535 = vadd.f32 0.0, %v2534
        %v2536 = vpop.f32.mrf.mxu0
        %v2537 = vpop.f32.mrf.mxu0
        %v2538 = vadd.f32 0.0, %v2537
        %v2539 = vpop.f32.mrf.mxu0
        %2540 = vmatprep.mubr.bf16.mxu0 0
        %2541 = vmatmul.mubr.bf16.gmra.mxu0 %v2484
        %v2542 = vpop.f32.mrf.mxu0
        %v2543 = vadd.f32 0.0, %v2542
        %v2544 = vpop.f32.mrf.mxu0
        %v2545 = vpop.f32.mrf.mxu0
        %v2546 = vadd.f32 0.0, %v2545
        %v2547 = vpop.f32.mrf.mxu0
        %2548 = vmatprep.mubr.bf16.mxu0 0
        %2549 = vmatmul.mubr.bf16.gmra.mxu0 %v2487
        %v2550 = vpop.f32.mrf.mxu0
        %v2551 = vadd.f32 0.0, %v2550
        %v2552 = vpop.f32.mrf.mxu0
        %v2553 = vpop.f32.mrf.mxu0
        %v2554 = vadd.f32 0.0, %v2553
        %v2555 = vpop.f32.mrf.mxu0
        %2556 = vdwg.mxu0
        %v2557 = vadd.f32 %v2469, %v2527
        %v2558 = vadd.f32 %v2470, %v2530
        %v2559 = vadd.f32 %v2471, %v2535
        %v2560 = vadd.f32 %v2472, %v2538
        %v2561 = vadd.f32 %v2473, %v2543
        %v2562 = vadd.f32 %v2474, %v2546
        %v2563 = vadd.f32 %v2475, %v2551
        %v2564 = vadd.f32 %v2476, %v2554
        %v2566 = vsel %vm1785, %v1757, 0
        %v2569 = vsel %vm1785, %v1758, 0
        %v2572 = vsel %vm1785, %v1759, 0
        %v2575 = vsel %vm1785, %v1760, 0
        %v2578 = vand.u32 %v433, %v1800
        %2580 = vmatprep.subr.bf16.mxu0 0
        %2581 = vmatpush1.bf16.msra.mxu0 0
        %2582 = vmatprep.subr.bf16.mxu0 0
        %2583 = vmatpush1.bf16.msra.mxu0 0
        %2584 = vmatprep.subr.bf16.mxu0 0
        %2585 = vmatpush1.bf16.msra.mxu0 0
        %2586 = vmatprep.subr.bf16.mxu0 0
        %2587 = vmatpush1.bf16.msra.mxu0 0
        %2588 = vmatprep.subr.bf16.mxu0 0
        %2589 = vmatpush1.bf16.msra.mxu0 0
        %2590 = vmatprep.subr.bf16.mxu0 0
        %2591 = vmatpush1.bf16.msra.mxu0 0
        %2592 = vmatprep.subr.bf16.mxu0 0
        %2593 = vmatpush1.bf16.msra.mxu0 0
        %2594 = vmatprep.subr.bf16.mxu0 0
        %2595 = vmatpush1.bf16.msra.mxu0 %v2578
        %2596 = vmatprep.subr.bf16.mxu0 0
        %2597 = vmatpush2.bf16.msra.mxu0 0
        %2598 = vmatprep.subr.bf16.mxu0 0
        %2599 = vmatpush2.bf16.msra.mxu0 0
        %2600 = vmatprep.subr.bf16.mxu0 0
        %2601 = vmatpush2.bf16.msra.mxu0 0
        %2602 = vmatprep.subr.bf16.mxu0 0
        %2603 = vmatpush2.bf16.msra.mxu0 0
        %2604 = vmatprep.subr.bf16.mxu0 0
        %2605 = vmatpush2.bf16.msra.mxu0 0
        %2606 = vmatprep.subr.bf16.mxu0 0
        %2607 = vmatpush2.bf16.msra.mxu0 0
        %2608 = vmatprep.subr.bf16.mxu0 0
        %2609 = vmatpush2.bf16.msra.mxu0 0
        %2610 = vmatprep.subr.bf16.mxu0 0
        %2611 = vmatpush2.bf16.msra.mxu0 0
        %2612 = vmatprep.mubr.bf16.mxu0 0
        %2613 = vmatmul.mubr.bf16.gmra.mxu0 %v2566
        %v2614 = vpop.f32.mrf.mxu0
        %v2615 = vadd.f32 0.0, %v2614
        %v2616 = vpop.f32.mrf.mxu0
        %v2617 = vpop.f32.mrf.mxu0
        %v2618 = vadd.f32 0.0, %v2617
        %v2619 = vpop.f32.mrf.mxu0
        %2620 = vmatprep.mubr.bf16.mxu0 0
        %2621 = vmatmul.mubr.bf16.gmra.mxu0 %v2569
        %v2622 = vpop.f32.mrf.mxu0
        %v2623 = vadd.f32 0.0, %v2622
        %v2624 = vpop.f32.mrf.mxu0
        %v2625 = vpop.f32.mrf.mxu0
        %v2626 = vadd.f32 0.0, %v2625
        %v2627 = vpop.f32.mrf.mxu0
        %2628 = vmatprep.mubr.bf16.mxu0 0
        %2629 = vmatmul.mubr.bf16.gmra.mxu0 %v2572
        %v2630 = vpop.f32.mrf.mxu0
        %v2631 = vadd.f32 0.0, %v2630
        %v2632 = vpop.f32.mrf.mxu0
        %v2633 = vpop.f32.mrf.mxu0
        %v2634 = vadd.f32 0.0, %v2633
        %v2635 = vpop.f32.mrf.mxu0
        %2636 = vmatprep.mubr.bf16.mxu0 0
        %2637 = vmatmul.mubr.bf16.gmra.mxu0 %v2575
        %v2638 = vpop.f32.mrf.mxu0
        %v2639 = vadd.f32 0.0, %v2638
        %v2640 = vpop.f32.mrf.mxu0
        %v2641 = vpop.f32.mrf.mxu0
        %v2642 = vadd.f32 0.0, %v2641
        %v2643 = vpop.f32.mrf.mxu0
        %2644 = vdwg.mxu0
        %v2645 = vadd.f32 %v2557, %v2615
        %v2646 = vadd.f32 %v2558, %v2618
        %v2647 = vadd.f32 %v2559, %v2623
        %v2648 = vadd.f32 %v2560, %v2626
        %v2649 = vadd.f32 %v2561, %v2631
        %v2650 = vadd.f32 %v2562, %v2634
        %v2651 = vadd.f32 %v2563, %v2639
        %v2652 = vadd.f32 %v2564, %v2642
        %v2654 = vsel %vm1785, %v1761, 0
        %v2657 = vsel %vm1785, %v1762, 0
        %v2660 = vsel %vm1785, %v1763, 0
        %v2663 = vsel %vm1785, %v1764, 0
        %v2666 = vand.u32 %v434, %v1800
        %2668 = vmatprep.subr.bf16.mxu0 0
        %2669 = vmatpush1.bf16.msra.mxu0 0
        %2670 = vmatprep.subr.bf16.mxu0 0
        %2671 = vmatpush1.bf16.msra.mxu0 0
        %2672 = vmatprep.subr.bf16.mxu0 0
        %2673 = vmatpush1.bf16.msra.mxu0 0
        %2674 = vmatprep.subr.bf16.mxu0 0
        %2675 = vmatpush1.bf16.msra.mxu0 0
        %2676 = vmatprep.subr.bf16.mxu0 0
        %2677 = vmatpush1.bf16.msra.mxu0 0
        %2678 = vmatprep.subr.bf16.mxu0 0
        %2679 = vmatpush1.bf16.msra.mxu0 0
        %2680 = vmatprep.subr.bf16.mxu0 0
        %2681 = vmatpush1.bf16.msra.mxu0 0
        %2682 = vmatprep.subr.bf16.mxu0 0
        %2683 = vmatpush1.bf16.msra.mxu0 %v2666
        %2684 = vmatprep.subr.bf16.mxu0 0
        %2685 = vmatpush2.bf16.msra.mxu0 0
        %2686 = vmatprep.subr.bf16.mxu0 0
        %2687 = vmatpush2.bf16.msra.mxu0 0
        %2688 = vmatprep.subr.bf16.mxu0 0
        %2689 = vmatpush2.bf16.msra.mxu0 0
        %2690 = vmatprep.subr.bf16.mxu0 0
        %2691 = vmatpush2.bf16.msra.mxu0 0
        %2692 = vmatprep.subr.bf16.mxu0 0
        %2693 = vmatpush2.bf16.msra.mxu0 0
        %2694 = vmatprep.subr.bf16.mxu0 0
        %2695 = vmatpush2.bf16.msra.mxu0 0
        %2696 = vmatprep.subr.bf16.mxu0 0
        %2697 = vmatpush2.bf16.msra.mxu0 0
        %2698 = vmatprep.subr.bf16.mxu0 0
        %2699 = vmatpush2.bf16.msra.mxu0 0
        %2700 = vmatprep.mubr.bf16.mxu0 0
        %2701 = vmatmul.mubr.bf16.gmra.mxu0 %v2654
        %v2702 = vpop.f32.mrf.mxu0
        %v2703 = vadd.f32 0.0, %v2702
        %v2704 = vpop.f32.mrf.mxu0
        %v2705 = vpop.f32.mrf.mxu0
        %v2706 = vadd.f32 0.0, %v2705
        %v2707 = vpop.f32.mrf.mxu0
        %2708 = vmatprep.mubr.bf16.mxu0 0
        %2709 = vmatmul.mubr.bf16.gmra.mxu0 %v2657
        %v2710 = vpop.f32.mrf.mxu0
        %v2711 = vadd.f32 0.0, %v2710
        %v2712 = vpop.f32.mrf.mxu0
        %v2713 = vpop.f32.mrf.mxu0
        %v2714 = vadd.f32 0.0, %v2713
        %v2715 = vpop.f32.mrf.mxu0
        %2716 = vmatprep.mubr.bf16.mxu0 0
        %2717 = vmatmul.mubr.bf16.gmra.mxu0 %v2660
        %v2718 = vpop.f32.mrf.mxu0
        %v2719 = vadd.f32 0.0, %v2718
        %v2720 = vpop.f32.mrf.mxu0
        %v2721 = vpop.f32.mrf.mxu0
        %v2722 = vadd.f32 0.0, %v2721
        %v2723 = vpop.f32.mrf.mxu0
        %2724 = vmatprep.mubr.bf16.mxu0 0
        %2725 = vmatmul.mubr.bf16.gmra.mxu0 %v2663
        %v2726 = vpop.f32.mrf.mxu0
        %v2727 = vadd.f32 0.0, %v2726
        %v2728 = vpop.f32.mrf.mxu0
        %v2729 = vpop.f32.mrf.mxu0
        %v2730 = vadd.f32 0.0, %v2729
        %v2731 = vpop.f32.mrf.mxu0
        %2732 = vdwg.mxu0
        %v2733 = vadd.f32 %v2645, %v2703
        %v2734 = vadd.f32 %v2646, %v2706
        %v2735 = vadd.f32 %v2647, %v2711
        %v2736 = vadd.f32 %v2648, %v2714
        %v2737 = vadd.f32 %v2649, %v2719
        %v2738 = vadd.f32 %v2650, %v2722
        %v2739 = vadd.f32 %v2651, %v2727
        %v2740 = vadd.f32 %v2652, %v2730
        %v2742 = vsel %vm1785, %v1765, 0
        %v2745 = vsel %vm1785, %v1766, 0
        %v2748 = vsel %vm1785, %v1767, 0
        %v2751 = vsel %vm1785, %v1768, 0
        %v2754 = vand.u32 %v435, %v1800
        %2756 = vmatprep.subr.bf16.mxu0 0
        %2757 = vmatpush1.bf16.msra.mxu0 0
        %2758 = vmatprep.subr.bf16.mxu0 0
        %2759 = vmatpush1.bf16.msra.mxu0 0
        %2760 = vmatprep.subr.bf16.mxu0 0
        %2761 = vmatpush1.bf16.msra.mxu0 0
        %2762 = vmatprep.subr.bf16.mxu0 0
        %2763 = vmatpush1.bf16.msra.mxu0 0
        %2764 = vmatprep.subr.bf16.mxu0 0
        %2765 = vmatpush1.bf16.msra.mxu0 0
        %2766 = vmatprep.subr.bf16.mxu0 0
        %2767 = vmatpush1.bf16.msra.mxu0 0
        %2768 = vmatprep.subr.bf16.mxu0 0
        %2769 = vmatpush1.bf16.msra.mxu0 0
        %2770 = vmatprep.subr.bf16.mxu0 0
        %2771 = vmatpush1.bf16.msra.mxu0 %v2754
        %2772 = vmatprep.subr.bf16.mxu0 0
        %2773 = vmatpush2.bf16.msra.mxu0 0
        %2774 = vmatprep.subr.bf16.mxu0 0
        %2775 = vmatpush2.bf16.msra.mxu0 0
        %2776 = vmatprep.subr.bf16.mxu0 0
        %2777 = vmatpush2.bf16.msra.mxu0 0
        %2778 = vmatprep.subr.bf16.mxu0 0
        %2779 = vmatpush2.bf16.msra.mxu0 0
        %2780 = vmatprep.subr.bf16.mxu0 0
        %2781 = vmatpush2.bf16.msra.mxu0 0
        %2782 = vmatprep.subr.bf16.mxu0 0
        %2783 = vmatpush2.bf16.msra.mxu0 0
        %2784 = vmatprep.subr.bf16.mxu0 0
        %2785 = vmatpush2.bf16.msra.mxu0 0
        %2786 = vmatprep.subr.bf16.mxu0 0
        %2787 = vmatpush2.bf16.msra.mxu0 0
        %2788 = vmatprep.mubr.bf16.mxu0 0
        %2789 = vmatmul.mubr.bf16.gmra.mxu0 %v2742
        %v2790 = vpop.f32.mrf.mxu0
        %v2791 = vadd.f32 0.0, %v2790
        %v2792 = vpop.f32.mrf.mxu0
        %v2793 = vpop.f32.mrf.mxu0
        %v2794 = vadd.f32 0.0, %v2793
        %v2795 = vpop.f32.mrf.mxu0
        %2796 = vmatprep.mubr.bf16.mxu0 0
        %2797 = vmatmul.mubr.bf16.gmra.mxu0 %v2745
        %v2798 = vpop.f32.mrf.mxu0
        %v2799 = vadd.f32 0.0, %v2798
        %v2800 = vpop.f32.mrf.mxu0
        %v2801 = vpop.f32.mrf.mxu0
        %v2802 = vadd.f32 0.0, %v2801
        %v2803 = vpop.f32.mrf.mxu0
        %2804 = vmatprep.mubr.bf16.mxu0 0
        %2805 = vmatmul.mubr.bf16.gmra.mxu0 %v2748
        %v2806 = vpop.f32.mrf.mxu0
        %v2807 = vadd.f32 0.0, %v2806
        %v2808 = vpop.f32.mrf.mxu0
        %v2809 = vpop.f32.mrf.mxu0
        %v2810 = vadd.f32 0.0, %v2809
        %v2811 = vpop.f32.mrf.mxu0
        %2812 = vmatprep.mubr.bf16.mxu0 0
        %2813 = vmatmul.mubr.bf16.gmra.mxu0 %v2751
        %v2814 = vpop.f32.mrf.mxu0
        %v2815 = vadd.f32 0.0, %v2814
        %v2816 = vpop.f32.mrf.mxu0
        %v2817 = vpop.f32.mrf.mxu0
        %v2818 = vadd.f32 0.0, %v2817
        %v2819 = vpop.f32.mrf.mxu0
        %2820 = vdwg.mxu0
        %v2821 = vadd.f32 %v2733, %v2791
        %v2822 = vadd.f32 %v2734, %v2794
        %v2823 = vadd.f32 %v2735, %v2799
        %v2824 = vadd.f32 %v2736, %v2802
        %v2825 = vadd.f32 %v2737, %v2807
        %v2826 = vadd.f32 %v2738, %v2810
        %v2827 = vadd.f32 %v2739, %v2815
        %v2828 = vadd.f32 %v2740, %v2818
        %v2830 = vsel %vm1785, %v1769, 0
        %v2833 = vsel %vm1785, %v1770, 0
        %v2836 = vsel %vm1785, %v1771, 0
        %v2839 = vsel %vm1785, %v1772, 0
        %v2842 = vand.u32 %v436, %v1800
        %2844 = vmatprep.subr.bf16.mxu0 0
        %2845 = vmatpush1.bf16.msra.mxu0 0
        %2846 = vmatprep.subr.bf16.mxu0 0
        %2847 = vmatpush1.bf16.msra.mxu0 0
        %2848 = vmatprep.subr.bf16.mxu0 0
        %2849 = vmatpush1.bf16.msra.mxu0 0
        %2850 = vmatprep.subr.bf16.mxu0 0
        %2851 = vmatpush1.bf16.msra.mxu0 0
        %2852 = vmatprep.subr.bf16.mxu0 0
        %2853 = vmatpush1.bf16.msra.mxu0 0
        %2854 = vmatprep.subr.bf16.mxu0 0
        %2855 = vmatpush1.bf16.msra.mxu0 0
        %2856 = vmatprep.subr.bf16.mxu0 0
        %2857 = vmatpush1.bf16.msra.mxu0 0
        %2858 = vmatprep.subr.bf16.mxu0 0
        %2859 = vmatpush1.bf16.msra.mxu0 %v2842
        %2860 = vmatprep.subr.bf16.mxu0 0
        %2861 = vmatpush2.bf16.msra.mxu0 0
        %2862 = vmatprep.subr.bf16.mxu0 0
        %2863 = vmatpush2.bf16.msra.mxu0 0
        %2864 = vmatprep.subr.bf16.mxu0 0
        %2865 = vmatpush2.bf16.msra.mxu0 0
        %2866 = vmatprep.subr.bf16.mxu0 0
        %2867 = vmatpush2.bf16.msra.mxu0 0
        %2868 = vmatprep.subr.bf16.mxu0 0
        %2869 = vmatpush2.bf16.msra.mxu0 0
        %2870 = vmatprep.subr.bf16.mxu0 0
        %2871 = vmatpush2.bf16.msra.mxu0 0
        %2872 = vmatprep.subr.bf16.mxu0 0
        %2873 = vmatpush2.bf16.msra.mxu0 0
        %2874 = vmatprep.subr.bf16.mxu0 0
        %2875 = vmatpush2.bf16.msra.mxu0 0
        %2876 = vmatprep.mubr.bf16.mxu0 0
        %2877 = vmatmul.mubr.bf16.gmra.mxu0 %v2830
        %v2878 = vpop.f32.mrf.mxu0
        %v2879 = vadd.f32 0.0, %v2878
        %v2880 = vpop.f32.mrf.mxu0
        %v2881 = vpop.f32.mrf.mxu0
        %v2882 = vadd.f32 0.0, %v2881
        %v2883 = vpop.f32.mrf.mxu0
        %2884 = vmatprep.mubr.bf16.mxu0 0
        %2885 = vmatmul.mubr.bf16.gmra.mxu0 %v2833
        %v2886 = vpop.f32.mrf.mxu0
        %v2887 = vadd.f32 0.0, %v2886
        %v2888 = vpop.f32.mrf.mxu0
        %v2889 = vpop.f32.mrf.mxu0
        %v2890 = vadd.f32 0.0, %v2889
        %v2891 = vpop.f32.mrf.mxu0
        %2892 = vmatprep.mubr.bf16.mxu0 0
        %2893 = vmatmul.mubr.bf16.gmra.mxu0 %v2836
        %v2894 = vpop.f32.mrf.mxu0
        %v2895 = vadd.f32 0.0, %v2894
        %v2896 = vpop.f32.mrf.mxu0
        %v2897 = vpop.f32.mrf.mxu0
        %v2898 = vadd.f32 0.0, %v2897
        %v2899 = vpop.f32.mrf.mxu0
        %2900 = vmatprep.mubr.bf16.mxu0 0
        %2901 = vmatmul.mubr.bf16.gmra.mxu0 %v2839
        %v2902 = vpop.f32.mrf.mxu0
        %v2903 = vadd.f32 0.0, %v2902
        %v2904 = vpop.f32.mrf.mxu0
        %v2905 = vpop.f32.mrf.mxu0
        %v2906 = vadd.f32 0.0, %v2905
        %v2907 = vpop.f32.mrf.mxu0
        %2908 = vdwg.mxu0
        %v2909 = vadd.f32 %v2821, %v2879
        %v2910 = vadd.f32 %v2822, %v2882
        %v2911 = vadd.f32 %v2823, %v2887
        %v2912 = vadd.f32 %v2824, %v2890
        %v2913 = vadd.f32 %v2825, %v2895
        %v2914 = vadd.f32 %v2826, %v2898
        %v2915 = vadd.f32 %v2827, %v2903
        %v2916 = vadd.f32 %v2828, %v2906
        %v2918 = vsel %vm1785, %v1773, 0
        %v2921 = vsel %vm1785, %v1774, 0
        %v2924 = vsel %vm1785, %v1775, 0
        %v2927 = vsel %vm1785, %v1776, 0
        %v2930 = vand.u32 %v437, %v1800
        %2932 = vmatprep.subr.bf16.mxu0 0
        %2933 = vmatpush1.bf16.msra.mxu0 0
        %2934 = vmatprep.subr.bf16.mxu0 0
        %2935 = vmatpush1.bf16.msra.mxu0 0
        %2936 = vmatprep.subr.bf16.mxu0 0
        %2937 = vmatpush1.bf16.msra.mxu0 0
        %2938 = vmatprep.subr.bf16.mxu0 0
        %2939 = vmatpush1.bf16.msra.mxu0 0
        %2940 = vmatprep.subr.bf16.mxu0 0
        %2941 = vmatpush1.bf16.msra.mxu0 0
        %2942 = vmatprep.subr.bf16.mxu0 0
        %2943 = vmatpush1.bf16.msra.mxu0 0
        %2944 = vmatprep.subr.bf16.mxu0 0
        %2945 = vmatpush1.bf16.msra.mxu0 0
        %2946 = vmatprep.subr.bf16.mxu0 0
        %2947 = vmatpush1.bf16.msra.mxu0 %v2930
        %2948 = vmatprep.subr.bf16.mxu0 0
        %2949 = vmatpush2.bf16.msra.mxu0 0
        %2950 = vmatprep.subr.bf16.mxu0 0
        %2951 = vmatpush2.bf16.msra.mxu0 0
        %2952 = vmatprep.subr.bf16.mxu0 0
        %2953 = vmatpush2.bf16.msra.mxu0 0
        %2954 = vmatprep.subr.bf16.mxu0 0
        %2955 = vmatpush2.bf16.msra.mxu0 0
        %2956 = vmatprep.subr.bf16.mxu0 0
        %2957 = vmatpush2.bf16.msra.mxu0 0
        %2958 = vmatprep.subr.bf16.mxu0 0
        %2959 = vmatpush2.bf16.msra.mxu0 0
        %2960 = vmatprep.subr.bf16.mxu0 0
        %2961 = vmatpush2.bf16.msra.mxu0 0
        %2962 = vmatprep.subr.bf16.mxu0 0
        %2963 = vmatpush2.bf16.msra.mxu0 0
        %2964 = vmatprep.mubr.bf16.mxu0 0
        %2965 = vmatmul.mubr.bf16.gmra.mxu0 %v2918
        %v2966 = vpop.f32.mrf.mxu0
        %v2967 = vadd.f32 0.0, %v2966
        %v2968 = vpop.f32.mrf.mxu0
        %v2969 = vpop.f32.mrf.mxu0
        %v2970 = vadd.f32 0.0, %v2969
        %v2971 = vpop.f32.mrf.mxu0
        %2972 = vmatprep.mubr.bf16.mxu0 0
        %2973 = vmatmul.mubr.bf16.gmra.mxu0 %v2921
        %v2974 = vpop.f32.mrf.mxu0
        %v2975 = vadd.f32 0.0, %v2974
        %v2976 = vpop.f32.mrf.mxu0
        %v2977 = vpop.f32.mrf.mxu0
        %v2978 = vadd.f32 0.0, %v2977
        %v2979 = vpop.f32.mrf.mxu0
        %2980 = vmatprep.mubr.bf16.mxu0 0
        %2981 = vmatmul.mubr.bf16.gmra.mxu0 %v2924
        %v2982 = vpop.f32.mrf.mxu0
        %v2983 = vadd.f32 0.0, %v2982
        %v2984 = vpop.f32.mrf.mxu0
        %v2985 = vpop.f32.mrf.mxu0
        %v2986 = vadd.f32 0.0, %v2985
        %v2987 = vpop.f32.mrf.mxu0
        %2988 = vmatprep.mubr.bf16.mxu0 0
        %2989 = vmatmul.mubr.bf16.gmra.mxu0 %v2927
        %v2990 = vpop.f32.mrf.mxu0
        %v2991 = vadd.f32 0.0, %v2990
        %v2992 = vpop.f32.mrf.mxu0
        %v2993 = vpop.f32.mrf.mxu0
        %v2994 = vadd.f32 0.0, %v2993
        %v2995 = vpop.f32.mrf.mxu0
        %2996 = vdwg.mxu0
        %v2997 = vadd.f32 %v2909, %v2967
        %v2998 = vadd.f32 %v2910, %v2970
        %v2999 = vadd.f32 %v2911, %v2975
        %v3000 = vadd.f32 %v2912, %v2978
        %v3001 = vadd.f32 %v2913, %v2983
        %v3002 = vadd.f32 %v2914, %v2986
        %v3003 = vadd.f32 %v2915, %v2991
        %v3004 = vadd.f32 %v2916, %v2994
        %v3006 = vsel %vm1785, %v1777, 0
        %v3009 = vsel %vm1785, %v1778, 0
        %v3012 = vsel %vm1785, %v1779, 0
        %v3015 = vsel %vm1785, %v1780, 0
        %v3018 = vand.u32 %v438, %v1800
        %3020 = vmatprep.subr.bf16.mxu0 0
        %3021 = vmatpush1.bf16.msra.mxu0 0
        %3022 = vmatprep.subr.bf16.mxu0 0
        %3023 = vmatpush1.bf16.msra.mxu0 0
        %3024 = vmatprep.subr.bf16.mxu0 0
        %3025 = vmatpush1.bf16.msra.mxu0 0
        %3026 = vmatprep.subr.bf16.mxu0 0
        %3027 = vmatpush1.bf16.msra.mxu0 0
        %3028 = vmatprep.subr.bf16.mxu0 0
        %3029 = vmatpush1.bf16.msra.mxu0 0
        %3030 = vmatprep.subr.bf16.mxu0 0
        %3031 = vmatpush1.bf16.msra.mxu0 0
        %3032 = vmatprep.subr.bf16.mxu0 0
        %3033 = vmatpush1.bf16.msra.mxu0 0
        %3034 = vmatprep.subr.bf16.mxu0 0
        %3035 = vmatpush1.bf16.msra.mxu0 %v3018
        %3036 = vmatprep.subr.bf16.mxu0 0
        %3037 = vmatpush2.bf16.msra.mxu0 0
        %3038 = vmatprep.subr.bf16.mxu0 0
        %3039 = vmatpush2.bf16.msra.mxu0 0
        %3040 = vmatprep.subr.bf16.mxu0 0
        %3041 = vmatpush2.bf16.msra.mxu0 0
        %3042 = vmatprep.subr.bf16.mxu0 0
        %3043 = vmatpush2.bf16.msra.mxu0 0
        %3044 = vmatprep.subr.bf16.mxu0 0
        %3045 = vmatpush2.bf16.msra.mxu0 0
        %3046 = vmatprep.subr.bf16.mxu0 0
        %3047 = vmatpush2.bf16.msra.mxu0 0
        %3048 = vmatprep.subr.bf16.mxu0 0
        %3049 = vmatpush2.bf16.msra.mxu0 0
        %3050 = vmatprep.subr.bf16.mxu0 0
        %3051 = vmatpush2.bf16.msra.mxu0 0
        %3052 = vmatprep.mubr.bf16.mxu0 0
        %3053 = vmatmul.mubr.bf16.gmra.mxu0 %v3006
        %v3054 = vpop.f32.mrf.mxu0
        %v3055 = vadd.f32 0.0, %v3054
        %v3056 = vpop.f32.mrf.mxu0
        %v3057 = vpop.f32.mrf.mxu0
        %v3058 = vadd.f32 0.0, %v3057
        %v3059 = vpop.f32.mrf.mxu0
        %3060 = vmatprep.mubr.bf16.mxu0 0
        %3061 = vmatmul.mubr.bf16.gmra.mxu0 %v3009
        %v3062 = vpop.f32.mrf.mxu0
        %v3063 = vadd.f32 0.0, %v3062
        %v3064 = vpop.f32.mrf.mxu0
        %v3065 = vpop.f32.mrf.mxu0
        %v3066 = vadd.f32 0.0, %v3065
        %v3067 = vpop.f32.mrf.mxu0
        %3068 = vmatprep.mubr.bf16.mxu0 0
        %3069 = vmatmul.mubr.bf16.gmra.mxu0 %v3012
        %v3070 = vpop.f32.mrf.mxu0
        %v3071 = vadd.f32 0.0, %v3070
        %v3072 = vpop.f32.mrf.mxu0
        %v3073 = vpop.f32.mrf.mxu0
        %v3074 = vadd.f32 0.0, %v3073
        %v3075 = vpop.f32.mrf.mxu0
        %3076 = vmatprep.mubr.bf16.mxu0 0
        %3077 = vmatmul.mubr.bf16.gmra.mxu0 %v3015
        %v3078 = vpop.f32.mrf.mxu0
        %v3079 = vadd.f32 0.0, %v3078
        %v3080 = vpop.f32.mrf.mxu0
        %v3081 = vpop.f32.mrf.mxu0
        %v3082 = vadd.f32 0.0, %v3081
        %v3083 = vpop.f32.mrf.mxu0
        %3084 = vdwg.mxu0
        %v3085 = vadd.f32 %v2997, %v3055
        %v3086 = vadd.f32 %v2998, %v3058
        %v3087 = vadd.f32 %v2999, %v3063
        %v3088 = vadd.f32 %v3000, %v3066
        %v3089 = vadd.f32 %v3001, %v3071
        %v3090 = vadd.f32 %v3002, %v3074
        %v3091 = vadd.f32 %v3003, %v3079
        %v3092 = vadd.f32 %v3004, %v3082
        %v3094 = vsel %vm1785, %v1781, 0
        %v3097 = vsel %vm1785, %v1782, 0
        %v3100 = vsel %vm1785, %v1783, 0
        %v3103 = vsel %vm1785, %v1784, 0
        %v3106 = vand.u32 %v439, %v1800
        %3108 = vmatprep.subr.bf16.mxu0 0
        %3109 = vmatpush1.bf16.msra.mxu0 0
        %3110 = vmatprep.subr.bf16.mxu0 0
        %3111 = vmatpush1.bf16.msra.mxu0 0
        %3112 = vmatprep.subr.bf16.mxu0 0
        %3113 = vmatpush1.bf16.msra.mxu0 0
        %3114 = vmatprep.subr.bf16.mxu0 0
        %3115 = vmatpush1.bf16.msra.mxu0 0
        %3116 = vmatprep.subr.bf16.mxu0 0
        %3117 = vmatpush1.bf16.msra.mxu0 0
        %3118 = vmatprep.subr.bf16.mxu0 0
        %3119 = vmatpush1.bf16.msra.mxu0 0
        %3120 = vmatprep.subr.bf16.mxu0 0
        %3121 = vmatpush1.bf16.msra.mxu0 0
        %3122 = vmatprep.subr.bf16.mxu0 0
        %3123 = vmatpush1.bf16.msra.mxu0 %v3106
        %3124 = vmatprep.subr.bf16.mxu0 0
        %3125 = vmatpush2.bf16.msra.mxu0 0
        %3126 = vmatprep.subr.bf16.mxu0 0
        %3127 = vmatpush2.bf16.msra.mxu0 0
        %3128 = vmatprep.subr.bf16.mxu0 0
        %3129 = vmatpush2.bf16.msra.mxu0 0
        %3130 = vmatprep.subr.bf16.mxu0 0
        %3131 = vmatpush2.bf16.msra.mxu0 0
        %3132 = vmatprep.subr.bf16.mxu0 0
        %3133 = vmatpush2.bf16.msra.mxu0 0
        %3134 = vmatprep.subr.bf16.mxu0 0
        %3135 = vmatpush2.bf16.msra.mxu0 0
        %3136 = vmatprep.subr.bf16.mxu0 0
        %3137 = vmatpush2.bf16.msra.mxu0 0
        %3138 = vmatprep.subr.bf16.mxu0 0
        %3139 = vmatpush2.bf16.msra.mxu0 0
        %3140 = vmatprep.mubr.bf16.mxu0 0
        %3141 = vmatmul.mubr.bf16.gmra.mxu0 %v3094
        %v3142 = vpop.f32.mrf.mxu0
        %v3143 = vadd.f32 0.0, %v3142
        %v3144 = vpop.f32.mrf.mxu0
        %v3145 = vpop.f32.mrf.mxu0
        %v3146 = vadd.f32 0.0, %v3145
        %v3147 = vpop.f32.mrf.mxu0
        %3148 = vmatprep.mubr.bf16.mxu0 0
        %3149 = vmatmul.mubr.bf16.gmra.mxu0 %v3097
        %v3150 = vpop.f32.mrf.mxu0
        %v3151 = vadd.f32 0.0, %v3150
        %v3152 = vpop.f32.mrf.mxu0
        %v3153 = vpop.f32.mrf.mxu0
        %v3154 = vadd.f32 0.0, %v3153
        %v3155 = vpop.f32.mrf.mxu0
        %3156 = vmatprep.mubr.bf16.mxu0 0
        %3157 = vmatmul.mubr.bf16.gmra.mxu0 %v3100
        %v3158 = vpop.f32.mrf.mxu0
        %v3159 = vadd.f32 0.0, %v3158
        %v3160 = vpop.f32.mrf.mxu0
        %v3161 = vpop.f32.mrf.mxu0
        %v3162 = vadd.f32 0.0, %v3161
        %v3163 = vpop.f32.mrf.mxu0
        %3164 = vmatprep.mubr.bf16.mxu0 0
        %3165 = vmatmul.mubr.bf16.gmra.mxu0 %v3103
        %v3166 = vpop.f32.mrf.mxu0
        %v3167 = vadd.f32 0.0, %v3166
        %v3168 = vpop.f32.mrf.mxu0
        %v3169 = vpop.f32.mrf.mxu0
        %v3170 = vadd.f32 0.0, %v3169
        %v3171 = vpop.f32.mrf.mxu0
        %3172 = vdwg.mxu0
        %v3173 = vadd.f32 %v3085, %v3143
        %v3174 = vadd.f32 %v3086, %v3146
        %v3175 = vadd.f32 %v3087, %v3151
        %v3176 = vadd.f32 %v3088, %v3154
        %v3177 = vadd.f32 %v3089, %v3159
        %v3178 = vadd.f32 %v3090, %v3162
        %v3179 = vadd.f32 %v3091, %v3167
        %v3180 = vadd.f32 %v3092, %v3170
        %vm3181 = vcmp.ge.f32.partialorder %v3173, 0.0
        %vm3182 = vcmp.ge.f32.partialorder %v3174, 0.0
        %vm3183 = vcmp.ge.f32.partialorder %v3175, 0.0
        %vm3184 = vcmp.ge.f32.partialorder %v3176, 0.0
        %vm3185 = vcmp.ge.f32.partialorder %v3177, 0.0
        %vm3186 = vcmp.ge.f32.partialorder %v3178, 0.0
        %vm3187 = vcmp.ge.f32.partialorder %v3179, 0.0
        %vm3188 = vcmp.ge.f32.partialorder %v3180, 0.0
        %v3189 = vmul.f32 %v3173, 0.2
        %v3190 = vmul.f32 %v3174, 0.2
        %v3191 = vmul.f32 %v3175, 0.2
        %v3192 = vmul.f32 %v3176, 0.2
        %v3193 = vmul.f32 %v3177, 0.2
        %v3194 = vmul.f32 %v3178, 0.2
        %v3195 = vmul.f32 %v3179, 0.2
        %v3196 = vmul.f32 %v3180, 0.2
        %v3197 = vsel %vm3181, %v3173, %v3189
        %v3198 = vsel %vm3182, %v3174, %v3190
        %v3199 = vsel %vm3183, %v3175, %v3191
        %v3200 = vsel %vm3184, %v3176, %v3192
        %v3201 = vsel %vm3185, %v3177, %v3193
        %v3202 = vsel %vm3186, %v3178, %v3194
        %v3203 = vsel %vm3187, %v3179, %v3195
        %v3204 = vsel %vm3188, %v3180, %v3196
        %v3205 = vpack.c.bf16 %v3198, %v3197
        %v3206 = vpack.c.bf16 %v3200, %v3199
        %v3207 = vpack.c.bf16 %v3202, %v3201
        %v3208 = vpack.c.bf16 %v3204, %v3203
        %v3209 = vld [vmem:[%s3] sm:$0xf]
        %v3210 = vld [vmem:[%s3 + $0x4] sm:$0xf]
        %v3211 = vld [vmem:[%s3 + $0x8] sm:$0xf]
        %v3212 = vld [vmem:[%s3 + $0xc] sm:$0xf]
        %v3213 = vld [vmem:[%s3 + $0x10] sm:$0xf]
        %v3214 = vld [vmem:[%s3 + $0x14] sm:$0xf]
        %v3215 = vld [vmem:[%s3 + $0x18] sm:$0xf]
        %v3216 = vld [vmem:[%s3 + $0x1c] sm:$0xf]
        %v3217 = vld [vmem:[%s3 + $0x20] sm:$0xf]
        %v3218 = vld [vmem:[%s3 + $0x24] sm:$0xf]
        %v3219 = vld [vmem:[%s3 + $0x28] sm:$0xf]
        %v3220 = vld [vmem:[%s3 + $0x2c] sm:$0xf]
        %v3221 = vld [vmem:[%s3 + $0x30] sm:$0xf]
        %v3222 = vld [vmem:[%s3 + $0x34] sm:$0xf]
        %v3223 = vld [vmem:[%s3 + $0x38] sm:$0xf]
        %v3224 = vld [vmem:[%s3 + $0x3c] sm:$0xf]
        %v3225 = vld [vmem:[%s3 + $0x40] sm:$0xf]
        %v3226 = vld [vmem:[%s3 + $0x44] sm:$0xf]
        %v3227 = vld [vmem:[%s3 + $0x48] sm:$0xf]
        %v3228 = vld [vmem:[%s3 + $0x4c] sm:$0xf]
        %v3229 = vld [vmem:[%s3 + $0x50] sm:$0xf]
        %v3230 = vld [vmem:[%s3 + $0x54] sm:$0xf]
        %v3231 = vld [vmem:[%s3 + $0x58] sm:$0xf]
        %v3232 = vld [vmem:[%s3 + $0x5c] sm:$0xf]
        %v3233 = vld [vmem:[%s3 + $0x60] sm:$0xf]
        %v3234 = vld [vmem:[%s3 + $0x64] sm:$0xf]
        %v3235 = vld [vmem:[%s3 + $0x68] sm:$0xf]
        %v3236 = vld [vmem:[%s3 + $0x6c] sm:$0xf]
        %v3237 = vld [vmem:[%s3 + $0x70] sm:$0xf]
        %v3238 = vld [vmem:[%s3 + $0x74] sm:$0xf]
        %v3239 = vld [vmem:[%s3 + $0x78] sm:$0xf]
        %v3240 = vld [vmem:[%s3 + $0x7c] sm:$0xf]
        %v3241 = vld [vmem:[%s4] sm:$0xf]
        %v3242 = vld [vmem:[%s4 + $0x4] sm:$0xf]
        %v3243 = vld [vmem:[%s4 + $0x8] sm:$0xf]
        %v3244 = vld [vmem:[%s4 + $0xc] sm:$0xf]
        %v3245 = vld [vmem:[%s4 + $0x10] sm:$0xf]
        %v3246 = vld [vmem:[%s4 + $0x14] sm:$0xf]
        %v3247 = vld [vmem:[%s4 + $0x18] sm:$0xf]
        %v3248 = vld [vmem:[%s4 + $0x1c] sm:$0xf]
        %v3249 = vld [vmem:[%s4 + $0x20] sm:$0xf]
        %v3250 = vld [vmem:[%s4 + $0x24] sm:$0xf]
        %v3251 = vld [vmem:[%s4 + $0x28] sm:$0xf]
        %v3252 = vld [vmem:[%s4 + $0x2c] sm:$0xf]
        %v3253 = vld [vmem:[%s4 + $0x30] sm:$0xf]
        %v3254 = vld [vmem:[%s4 + $0x34] sm:$0xf]
        %v3255 = vld [vmem:[%s4 + $0x38] sm:$0xf]
        %v3256 = vld [vmem:[%s4 + $0x3c] sm:$0xf]
        %v3289 = vunpack.c.l.b16 %v3209
        %v3290 = vunpack.c.l.b16 %v3210
        %v3291 = vunpack.c.l.b16 %v3211
        %v3292 = vunpack.c.l.b16 %v3212
        %v3293 = vunpack.c.l.b16 %v3213
        %v3294 = vunpack.c.l.b16 %v3214
        %v3295 = vunpack.c.l.b16 %v3215
        %v3296 = vunpack.c.l.b16 %v3216
        %v3297 = vunpack.c.l.b16 %v3217
        %v3298 = vunpack.c.l.b16 %v3218
        %v3299 = vunpack.c.l.b16 %v3219
        %v3300 = vunpack.c.l.b16 %v3220
        %v3301 = vunpack.c.l.b16 %v3221
        %v3302 = vunpack.c.l.b16 %v3222
        %v3303 = vunpack.c.l.b16 %v3223
        %v3304 = vunpack.c.l.b16 %v3224
        %v3305 = vunpack.c.l.b16 %v3225
        %v3306 = vunpack.c.l.b16 %v3226
        %v3307 = vunpack.c.l.b16 %v3227
        %v3308 = vunpack.c.l.b16 %v3228
        %v3309 = vunpack.c.l.b16 %v3229
        %v3310 = vunpack.c.l.b16 %v3230
        %v3311 = vunpack.c.l.b16 %v3231
        %v3312 = vunpack.c.l.b16 %v3232
        %v3313 = vunpack.c.l.b16 %v3233
        %v3314 = vunpack.c.l.b16 %v3234
        %v3315 = vunpack.c.l.b16 %v3235
        %v3316 = vunpack.c.l.b16 %v3236
        %v3317 = vunpack.c.l.b16 %v3237
        %v3318 = vunpack.c.l.b16 %v3238
        %v3319 = vunpack.c.l.b16 %v3239
        %v3320 = vunpack.c.l.b16 %v3240
        %v3321 = vpack.c.b16 %v3290, %v3289
        %v3322 = vpack.c.b16 %v3292, %v3291
        %v3323 = vpack.c.b16 %v3294, %v3293
        %v3324 = vpack.c.b16 %v3296, %v3295
        %v3325 = vpack.c.b16 %v3298, %v3297
        %v3326 = vpack.c.b16 %v3300, %v3299
        %v3327 = vpack.c.b16 %v3302, %v3301
        %v3328 = vpack.c.b16 %v3304, %v3303
        %v3329 = vpack.c.b16 %v3306, %v3305
        %v3330 = vpack.c.b16 %v3308, %v3307
        %v3331 = vpack.c.b16 %v3310, %v3309
        %v3332 = vpack.c.b16 %v3312, %v3311
        %v3333 = vpack.c.b16 %v3314, %v3313
        %v3334 = vpack.c.b16 %v3316, %v3315
        %v3335 = vpack.c.b16 %v3318, %v3317
        %v3336 = vpack.c.b16 %v3320, %v3319
        %vm3337 = vcmask 523264
        %v3339 = vsel %vm3337, %v3321, 0
        %v3342 = vsel %vm3337, %v3322, 0
        %v3345 = vsel %vm3337, %v3323, 0
        %v3348 = vsel %vm3337, %v3324, 0
        %v3351 = vsel %vm3337, %v3325, 0
        %v3354 = vsel %vm3337, %v3326, 0
        %v3357 = vsel %vm3337, %v3327, 0
        %v3360 = vsel %vm3337, %v3328, 0
        %v3363 = vsel %vm3337, %v3329, 0
        %v3366 = vsel %vm3337, %v3330, 0
        %v3369 = vsel %vm3337, %v3331, 0
        %v3372 = vsel %vm3337, %v3332, 0
        %v3375 = vsel %vm3337, %v3333, 0
        %v3378 = vsel %vm3337, %v3334, 0
        %v3381 = vsel %vm3337, %v3335, 0
        %v3384 = vsel %vm3337, %v3336, 0
        %3386 = vmatprep.subr.bf16.mxu0 0
        %3387 = vmatpush1.bf16.msra.mxu0 0
        %3388 = vmatprep.subr.bf16.mxu0 0
        %3389 = vmatpush1.bf16.msra.mxu0 0
        %3390 = vmatprep.subr.bf16.mxu0 0
        %3391 = vmatpush1.bf16.msra.mxu0 0
        %3392 = vmatprep.subr.bf16.mxu0 0
        %3393 = vmatpush1.bf16.msra.mxu0 0
        %3394 = vmatprep.subr.bf16.mxu0 0
        %3395 = vmatpush1.bf16.msra.mxu0 %v3208
        %3396 = vmatprep.subr.bf16.mxu0 0
        %3397 = vmatpush1.bf16.msra.mxu0 %v3207
        %3398 = vmatprep.subr.bf16.mxu0 0
        %3399 = vmatpush1.bf16.msra.mxu0 %v3206
        %3400 = vmatprep.subr.bf16.mxu0 0
        %3401 = vmatpush1.bf16.msra.mxu0 %v3205
        %3402 = vmatprep.subr.bf16.mxu0 0
        %3403 = vmatpush2.bf16.msra.mxu0 0
        %3404 = vmatprep.subr.bf16.mxu0 0
        %3405 = vmatpush2.bf16.msra.mxu0 0
        %3406 = vmatprep.subr.bf16.mxu0 0
        %3407 = vmatpush2.bf16.msra.mxu0 0
        %3408 = vmatprep.subr.bf16.mxu0 0
        %3409 = vmatpush2.bf16.msra.mxu0 0
        %3410 = vmatprep.subr.bf16.mxu0 0
        %3411 = vmatpush2.bf16.msra.mxu0 0
        %3412 = vmatprep.subr.bf16.mxu0 0
        %3413 = vmatpush2.bf16.msra.mxu0 0
        %3414 = vmatprep.subr.bf16.mxu0 0
        %3415 = vmatpush2.bf16.msra.mxu0 0
        %3416 = vmatprep.subr.bf16.mxu0 0
        %3417 = vmatpush2.bf16.msra.mxu0 0
        %3418 = vmatprep.mubr.bf16.mxu0 0
        %3419 = vmatmul.mubr.bf16.gmra.mxu0 %v3339
        %v3420 = vpop.f32.mrf.mxu0
        %v3421 = vadd.f32 0.0, %v3420
        %v3422 = vpop.f32.mrf.mxu0
        %v3423 = vpop.f32.mrf.mxu0
        %v3424 = vadd.f32 0.0, %v3423
        %v3425 = vpop.f32.mrf.mxu0
        %3426 = vmatprep.mubr.bf16.mxu0 0
        %3427 = vmatmul.mubr.bf16.gmra.mxu0 %v3342
        %v3428 = vpop.f32.mrf.mxu0
        %v3429 = vadd.f32 0.0, %v3428
        %v3430 = vpop.f32.mrf.mxu0
        %v3431 = vpop.f32.mrf.mxu0
        %v3432 = vadd.f32 0.0, %v3431
        %v3433 = vpop.f32.mrf.mxu0
        %3434 = vmatprep.mubr.bf16.mxu0 0
        %3435 = vmatmul.mubr.bf16.gmra.mxu0 %v3345
        %v3436 = vpop.f32.mrf.mxu0
        %v3437 = vadd.f32 0.0, %v3436
        %v3438 = vpop.f32.mrf.mxu0
        %v3439 = vpop.f32.mrf.mxu0
        %v3440 = vadd.f32 0.0, %v3439
        %v3441 = vpop.f32.mrf.mxu0
        %3442 = vmatprep.mubr.bf16.mxu0 0
        %3443 = vmatmul.mubr.bf16.gmra.mxu0 %v3348
        %v3444 = vpop.f32.mrf.mxu0
        %v3445 = vadd.f32 0.0, %v3444
        %v3446 = vpop.f32.mrf.mxu0
        %v3447 = vpop.f32.mrf.mxu0
        %v3448 = vadd.f32 0.0, %v3447
        %v3449 = vpop.f32.mrf.mxu0
        %3450 = vmatprep.mubr.bf16.mxu0 0
        %3451 = vmatmul.mubr.bf16.gmra.mxu0 %v3351
        %v3452 = vpop.f32.mrf.mxu0
        %v3453 = vadd.f32 0.0, %v3452
        %v3454 = vpop.f32.mrf.mxu0
        %v3455 = vpop.f32.mrf.mxu0
        %v3456 = vadd.f32 0.0, %v3455
        %v3457 = vpop.f32.mrf.mxu0
        %3458 = vmatprep.mubr.bf16.mxu0 0
        %3459 = vmatmul.mubr.bf16.gmra.mxu0 %v3354
        %v3460 = vpop.f32.mrf.mxu0
        %v3461 = vadd.f32 0.0, %v3460
        %v3462 = vpop.f32.mrf.mxu0
        %v3463 = vpop.f32.mrf.mxu0
        %v3464 = vadd.f32 0.0, %v3463
        %v3465 = vpop.f32.mrf.mxu0
        %3466 = vmatprep.mubr.bf16.mxu0 0
        %3467 = vmatmul.mubr.bf16.gmra.mxu0 %v3357
        %v3468 = vpop.f32.mrf.mxu0
        %v3469 = vadd.f32 0.0, %v3468
        %v3470 = vpop.f32.mrf.mxu0
        %v3471 = vpop.f32.mrf.mxu0
        %v3472 = vadd.f32 0.0, %v3471
        %v3473 = vpop.f32.mrf.mxu0
        %3474 = vmatprep.mubr.bf16.mxu0 0
        %3475 = vmatmul.mubr.bf16.gmra.mxu0 %v3360
        %v3476 = vpop.f32.mrf.mxu0
        %v3477 = vadd.f32 0.0, %v3476
        %v3478 = vpop.f32.mrf.mxu0
        %v3479 = vpop.f32.mrf.mxu0
        %v3480 = vadd.f32 0.0, %v3479
        %v3481 = vpop.f32.mrf.mxu0
        %3482 = vmatprep.mubr.bf16.mxu0 0
        %3483 = vmatmul.mubr.bf16.gmra.mxu0 %v3363
        %v3484 = vpop.f32.mrf.mxu0
        %v3485 = vadd.f32 0.0, %v3484
        %v3486 = vpop.f32.mrf.mxu0
        %v3487 = vpop.f32.mrf.mxu0
        %v3488 = vadd.f32 0.0, %v3487
        %v3489 = vpop.f32.mrf.mxu0
        %3490 = vmatprep.mubr.bf16.mxu0 0
        %3491 = vmatmul.mubr.bf16.gmra.mxu0 %v3366
        %v3492 = vpop.f32.mrf.mxu0
        %v3493 = vadd.f32 0.0, %v3492
        %v3494 = vpop.f32.mrf.mxu0
        %v3495 = vpop.f32.mrf.mxu0
        %v3496 = vadd.f32 0.0, %v3495
        %v3497 = vpop.f32.mrf.mxu0
        %3498 = vmatprep.mubr.bf16.mxu0 0
        %3499 = vmatmul.mubr.bf16.gmra.mxu0 %v3369
        %v3500 = vpop.f32.mrf.mxu0
        %v3501 = vadd.f32 0.0, %v3500
        %v3502 = vpop.f32.mrf.mxu0
        %v3503 = vpop.f32.mrf.mxu0
        %v3504 = vadd.f32 0.0, %v3503
        %v3505 = vpop.f32.mrf.mxu0
        %3506 = vmatprep.mubr.bf16.mxu0 0
        %3507 = vmatmul.mubr.bf16.gmra.mxu0 %v3372
        %v3508 = vpop.f32.mrf.mxu0
        %v3509 = vadd.f32 0.0, %v3508
        %v3510 = vpop.f32.mrf.mxu0
        %v3511 = vpop.f32.mrf.mxu0
        %v3512 = vadd.f32 0.0, %v3511
        %v3513 = vpop.f32.mrf.mxu0
        %3514 = vmatprep.mubr.bf16.mxu0 0
        %3515 = vmatmul.mubr.bf16.gmra.mxu0 %v3375
        %v3516 = vpop.f32.mrf.mxu0
        %v3517 = vadd.f32 0.0, %v3516
        %v3518 = vpop.f32.mrf.mxu0
        %v3519 = vpop.f32.mrf.mxu0
        %v3520 = vadd.f32 0.0, %v3519
        %v3521 = vpop.f32.mrf.mxu0
        %3522 = vmatprep.mubr.bf16.mxu0 0
        %3523 = vmatmul.mubr.bf16.gmra.mxu0 %v3378
        %v3524 = vpop.f32.mrf.mxu0
        %v3525 = vadd.f32 0.0, %v3524
        %v3526 = vpop.f32.mrf.mxu0
        %v3527 = vpop.f32.mrf.mxu0
        %v3528 = vadd.f32 0.0, %v3527
        %v3529 = vpop.f32.mrf.mxu0
        %3530 = vmatprep.mubr.bf16.mxu0 0
        %3531 = vmatmul.mubr.bf16.gmra.mxu0 %v3381
        %v3532 = vpop.f32.mrf.mxu0
        %v3533 = vadd.f32 0.0, %v3532
        %v3534 = vpop.f32.mrf.mxu0
        %v3535 = vpop.f32.mrf.mxu0
        %v3536 = vadd.f32 0.0, %v3535
        %v3537 = vpop.f32.mrf.mxu0
        %3538 = vmatprep.mubr.bf16.mxu0 0
        %3539 = vmatmul.mubr.bf16.gmra.mxu0 %v3384
        %v3540 = vpop.f32.mrf.mxu0
        %v3541 = vadd.f32 0.0, %v3540
        %v3542 = vpop.f32.mrf.mxu0
        %v3543 = vpop.f32.mrf.mxu0
        %v3544 = vadd.f32 0.0, %v3543
        %v3545 = vpop.f32.mrf.mxu0
        %3546 = vdwg.mxu0
        %v3547 = vpack.c.bf16 %v3424, %v3421
        %v3548 = vpack.c.bf16 %v3432, %v3429
        %v3549 = vpack.c.bf16 %v3440, %v3437
        %v3550 = vpack.c.bf16 %v3448, %v3445
        %v3551 = vpack.c.bf16 %v3456, %v3453
        %v3552 = vpack.c.bf16 %v3464, %v3461
        %v3553 = vpack.c.bf16 %v3472, %v3469
        %v3554 = vpack.c.bf16 %v3480, %v3477
        %v3555 = vpack.c.bf16 %v3488, %v3485
        %v3556 = vpack.c.bf16 %v3496, %v3493
        %v3557 = vpack.c.bf16 %v3504, %v3501
        %v3558 = vpack.c.bf16 %v3512, %v3509
        %v3559 = vpack.c.bf16 %v3520, %v3517
        %v3560 = vpack.c.bf16 %v3528, %v3525
        %v3561 = vpack.c.bf16 %v3536, %v3533
        %v3562 = vpack.c.bf16 %v3544, %v3541
        %vm3563 = vcmask 64512
        %v3565 = vsel %vm3563, %v3548, 0
        %vm3567 = vcmask 1043456
        %v3569 = vsel %vm3567, %v3242, 0
        %3571 = vmatprep.subr.bf16.mxu0 0
        %3572 = vmatpush1.bf16.msra.mxu0 0
        %3573 = vmatprep.subr.bf16.mxu0 0
        %3574 = vmatpush1.bf16.msra.mxu0 0
        %3575 = vmatprep.subr.bf16.mxu0 0
        %3576 = vmatpush1.bf16.msra.mxu0 0
        %3577 = vmatprep.subr.bf16.mxu0 0
        %3578 = vmatpush1.bf16.msra.mxu0 0
        %3579 = vmatprep.subr.bf16.mxu0 0
        %3580 = vmatpush1.bf16.msra.mxu0 0
        %3581 = vmatprep.subr.bf16.mxu0 0
        %3582 = vmatpush1.bf16.msra.mxu0 0
        %3583 = vmatprep.subr.bf16.mxu0 0
        %3584 = vmatpush1.bf16.msra.mxu0 0
        %3585 = vmatprep.subr.bf16.mxu0 0
        %3586 = vmatpush1.bf16.msra.mxu0 %v3569
        %3587 = vmatprep.subr.bf16.mxu0 0
        %3588 = vmatpush2.bf16.msra.mxu0 0
        %3589 = vmatprep.subr.bf16.mxu0 0
        %3590 = vmatpush2.bf16.msra.mxu0 0
        %3591 = vmatprep.subr.bf16.mxu0 0
        %3592 = vmatpush2.bf16.msra.mxu0 0
        %3593 = vmatprep.subr.bf16.mxu0 0
        %3594 = vmatpush2.bf16.msra.mxu0 0
        %3595 = vmatprep.subr.bf16.mxu0 0
        %3596 = vmatpush2.bf16.msra.mxu0 0
        %3597 = vmatprep.subr.bf16.mxu0 0
        %3598 = vmatpush2.bf16.msra.mxu0 0
        %3599 = vmatprep.subr.bf16.mxu0 0
        %3600 = vmatpush2.bf16.msra.mxu0 0
        %3601 = vmatprep.subr.bf16.mxu0 0
        %3602 = vmatpush2.bf16.msra.mxu0 0
        %3603 = vmatprep.mubr.bf16.mxu0 0
        %3604 = vmatmul.mubr.bf16.gmra.mxu0 %v3565
        %v3605 = vpop.f32.mrf.mxu0
        %v3606 = vadd.f32 0.0, %v3605
        %v3607 = vpop.f32.mrf.mxu0
        %v3608 = vpop.f32.mrf.mxu0
        %v3609 = vadd.f32 0.0, %v3608
        %v3610 = vpop.f32.mrf.mxu0
        %3611 = vdwg.mxu0
        %v3613 = vsel %vm3563, %v3547, 0
        %v3616 = vsel %vm3567, %v3241, 0
        %3618 = vmatprep.subr.bf16.mxu0 0
        %3619 = vmatpush1.bf16.msra.mxu0 0
        %3620 = vmatprep.subr.bf16.mxu0 0
        %3621 = vmatpush1.bf16.msra.mxu0 0
        %3622 = vmatprep.subr.bf16.mxu0 0
        %3623 = vmatpush1.bf16.msra.mxu0 0
        %3624 = vmatprep.subr.bf16.mxu0 0
        %3625 = vmatpush1.bf16.msra.mxu0 0
        %3626 = vmatprep.subr.bf16.mxu0 0
        %3627 = vmatpush1.bf16.msra.mxu0 0
        %3628 = vmatprep.subr.bf16.mxu0 0
        %3629 = vmatpush1.bf16.msra.mxu0 0
        %3630 = vmatprep.subr.bf16.mxu0 0
        %3631 = vmatpush1.bf16.msra.mxu0 0
        %3632 = vmatprep.subr.bf16.mxu0 0
        %3633 = vmatpush1.bf16.msra.mxu0 %v3616
        %3634 = vmatprep.subr.bf16.mxu0 0
        %3635 = vmatpush2.bf16.msra.mxu0 0
        %3636 = vmatprep.subr.bf16.mxu0 0
        %3637 = vmatpush2.bf16.msra.mxu0 0
        %3638 = vmatprep.subr.bf16.mxu0 0
        %3639 = vmatpush2.bf16.msra.mxu0 0
        %3640 = vmatprep.subr.bf16.mxu0 0
        %3641 = vmatpush2.bf16.msra.mxu0 0
        %3642 = vmatprep.subr.bf16.mxu0 0
        %3643 = vmatpush2.bf16.msra.mxu0 0
        %3644 = vmatprep.subr.bf16.mxu0 0
        %3645 = vmatpush2.bf16.msra.mxu0 0
        %3646 = vmatprep.subr.bf16.mxu0 0
        %3647 = vmatpush2.bf16.msra.mxu0 0
        %3648 = vmatprep.subr.bf16.mxu0 0
        %3649 = vmatpush2.bf16.msra.mxu0 0
        %3650 = vmatprep.mubr.bf16.mxu0 0
        %3651 = vmatmul.mubr.bf16.gmra.mxu0 %v3613
        %v3652 = vpop.f32.mrf.mxu0
        %v3653 = vadd.f32 %v3606, %v3652
        %v3654 = vpop.f32.mrf.mxu0
        %v3655 = vpop.f32.mrf.mxu0
        %v3656 = vadd.f32 %v3609, %v3655
        %v3657 = vpop.f32.mrf.mxu0
        %3658 = vdwg.mxu0
        %v3660 = vsel %vm3563, %v3549, 0
        %v3663 = vsel %vm3567, %v3243, 0
        %3665 = vmatprep.subr.bf16.mxu0 0
        %3666 = vmatpush1.bf16.msra.mxu0 0
        %3667 = vmatprep.subr.bf16.mxu0 0
        %3668 = vmatpush1.bf16.msra.mxu0 0
        %3669 = vmatprep.subr.bf16.mxu0 0
        %3670 = vmatpush1.bf16.msra.mxu0 0
        %3671 = vmatprep.subr.bf16.mxu0 0
        %3672 = vmatpush1.bf16.msra.mxu0 0
        %3673 = vmatprep.subr.bf16.mxu0 0
        %3674 = vmatpush1.bf16.msra.mxu0 0
        %3675 = vmatprep.subr.bf16.mxu0 0
        %3676 = vmatpush1.bf16.msra.mxu0 0
        %3677 = vmatprep.subr.bf16.mxu0 0
        %3678 = vmatpush1.bf16.msra.mxu0 0
        %3679 = vmatprep.subr.bf16.mxu0 0
        %3680 = vmatpush1.bf16.msra.mxu0 %v3663
        %3681 = vmatprep.subr.bf16.mxu0 0
        %3682 = vmatpush2.bf16.msra.mxu0 0
        %3683 = vmatprep.subr.bf16.mxu0 0
        %3684 = vmatpush2.bf16.msra.mxu0 0
        %3685 = vmatprep.subr.bf16.mxu0 0
        %3686 = vmatpush2.bf16.msra.mxu0 0
        %3687 = vmatprep.subr.bf16.mxu0 0
        %3688 = vmatpush2.bf16.msra.mxu0 0
        %3689 = vmatprep.subr.bf16.mxu0 0
        %3690 = vmatpush2.bf16.msra.mxu0 0
        %3691 = vmatprep.subr.bf16.mxu0 0
        %3692 = vmatpush2.bf16.msra.mxu0 0
        %3693 = vmatprep.subr.bf16.mxu0 0
        %3694 = vmatpush2.bf16.msra.mxu0 0
        %3695 = vmatprep.subr.bf16.mxu0 0
        %3696 = vmatpush2.bf16.msra.mxu0 0
        %3697 = vmatprep.mubr.bf16.mxu0 0
        %3698 = vmatmul.mubr.bf16.gmra.mxu0 %v3660
        %v3699 = vpop.f32.mrf.mxu0
        %v3700 = vadd.f32 0.0, %v3699
        %v3701 = vpop.f32.mrf.mxu0
        %v3702 = vpop.f32.mrf.mxu0
        %v3703 = vadd.f32 0.0, %v3702
        %v3704 = vpop.f32.mrf.mxu0
        %3705 = vdwg.mxu0
        %v3706 = vadd.f32 %v3653, %v3700
        %v3707 = vadd.f32 %v3656, %v3703
        %v3709 = vsel %vm3563, %v3550, 0
        %v3712 = vsel %vm3567, %v3244, 0
        %3714 = vmatprep.subr.bf16.mxu0 0
        %3715 = vmatpush1.bf16.msra.mxu0 0
        %3716 = vmatprep.subr.bf16.mxu0 0
        %3717 = vmatpush1.bf16.msra.mxu0 0
        %3718 = vmatprep.subr.bf16.mxu0 0
        %3719 = vmatpush1.bf16.msra.mxu0 0
        %3720 = vmatprep.subr.bf16.mxu0 0
        %3721 = vmatpush1.bf16.msra.mxu0 0
        %3722 = vmatprep.subr.bf16.mxu0 0
        %3723 = vmatpush1.bf16.msra.mxu0 0
        %3724 = vmatprep.subr.bf16.mxu0 0
        %3725 = vmatpush1.bf16.msra.mxu0 0
        %3726 = vmatprep.subr.bf16.mxu0 0
        %3727 = vmatpush1.bf16.msra.mxu0 0
        %3728 = vmatprep.subr.bf16.mxu0 0
        %3729 = vmatpush1.bf16.msra.mxu0 %v3712
        %3730 = vmatprep.subr.bf16.mxu0 0
        %3731 = vmatpush2.bf16.msra.mxu0 0
        %3732 = vmatprep.subr.bf16.mxu0 0
        %3733 = vmatpush2.bf16.msra.mxu0 0
        %3734 = vmatprep.subr.bf16.mxu0 0
        %3735 = vmatpush2.bf16.msra.mxu0 0
        %3736 = vmatprep.subr.bf16.mxu0 0
        %3737 = vmatpush2.bf16.msra.mxu0 0
        %3738 = vmatprep.subr.bf16.mxu0 0
        %3739 = vmatpush2.bf16.msra.mxu0 0
        %3740 = vmatprep.subr.bf16.mxu0 0
        %3741 = vmatpush2.bf16.msra.mxu0 0
        %3742 = vmatprep.subr.bf16.mxu0 0
        %3743 = vmatpush2.bf16.msra.mxu0 0
        %3744 = vmatprep.subr.bf16.mxu0 0
        %3745 = vmatpush2.bf16.msra.mxu0 0
        %3746 = vmatprep.mubr.bf16.mxu0 0
        %3747 = vmatmul.mubr.bf16.gmra.mxu0 %v3709
        %v3748 = vpop.f32.mrf.mxu0
        %v3749 = vadd.f32 0.0, %v3748
        %v3750 = vpop.f32.mrf.mxu0
        %v3751 = vpop.f32.mrf.mxu0
        %v3752 = vadd.f32 0.0, %v3751
        %v3753 = vpop.f32.mrf.mxu0
        %3754 = vdwg.mxu0
        %v3755 = vadd.f32 %v3706, %v3749
        %v3756 = vadd.f32 %v3707, %v3752
        %v3758 = vsel %vm3563, %v3551, 0
        %v3761 = vsel %vm3567, %v3245, 0
        %3763 = vmatprep.subr.bf16.mxu0 0
        %3764 = vmatpush1.bf16.msra.mxu0 0
        %3765 = vmatprep.subr.bf16.mxu0 0
        %3766 = vmatpush1.bf16.msra.mxu0 0
        %3767 = vmatprep.subr.bf16.mxu0 0
        %3768 = vmatpush1.bf16.msra.mxu0 0
        %3769 = vmatprep.subr.bf16.mxu0 0
        %3770 = vmatpush1.bf16.msra.mxu0 0
        %3771 = vmatprep.subr.bf16.mxu0 0
        %3772 = vmatpush1.bf16.msra.mxu0 0
        %3773 = vmatprep.subr.bf16.mxu0 0
        %3774 = vmatpush1.bf16.msra.mxu0 0
        %3775 = vmatprep.subr.bf16.mxu0 0
        %3776 = vmatpush1.bf16.msra.mxu0 0
        %3777 = vmatprep.subr.bf16.mxu0 0
        %3778 = vmatpush1.bf16.msra.mxu0 %v3761
        %3779 = vmatprep.subr.bf16.mxu0 0
        %3780 = vmatpush2.bf16.msra.mxu0 0
        %3781 = vmatprep.subr.bf16.mxu0 0
        %3782 = vmatpush2.bf16.msra.mxu0 0
        %3783 = vmatprep.subr.bf16.mxu0 0
        %3784 = vmatpush2.bf16.msra.mxu0 0
        %3785 = vmatprep.subr.bf16.mxu0 0
        %3786 = vmatpush2.bf16.msra.mxu0 0
        %3787 = vmatprep.subr.bf16.mxu0 0
        %3788 = vmatpush2.bf16.msra.mxu0 0
        %3789 = vmatprep.subr.bf16.mxu0 0
        %3790 = vmatpush2.bf16.msra.mxu0 0
        %3791 = vmatprep.subr.bf16.mxu0 0
        %3792 = vmatpush2.bf16.msra.mxu0 0
        %3793 = vmatprep.subr.bf16.mxu0 0
        %3794 = vmatpush2.bf16.msra.mxu0 0
        %3795 = vmatprep.mubr.bf16.mxu0 0
        %3796 = vmatmul.mubr.bf16.gmra.mxu0 %v3758
        %v3797 = vpop.f32.mrf.mxu0
        %v3798 = vadd.f32 0.0, %v3797
        %v3799 = vpop.f32.mrf.mxu0
        %v3800 = vpop.f32.mrf.mxu0
        %v3801 = vadd.f32 0.0, %v3800
        %v3802 = vpop.f32.mrf.mxu0
        %3803 = vdwg.mxu0
        %v3804 = vadd.f32 %v3755, %v3798
        %v3805 = vadd.f32 %v3756, %v3801
        %v3807 = vsel %vm3563, %v3552, 0
        %v3810 = vsel %vm3567, %v3246, 0
        %3812 = vmatprep.subr.bf16.mxu0 0
        %3813 = vmatpush1.bf16.msra.mxu0 0
        %3814 = vmatprep.subr.bf16.mxu0 0
        %3815 = vmatpush1.bf16.msra.mxu0 0
        %3816 = vmatprep.subr.bf16.mxu0 0
        %3817 = vmatpush1.bf16.msra.mxu0 0
        %3818 = vmatprep.subr.bf16.mxu0 0
        %3819 = vmatpush1.bf16.msra.mxu0 0
        %3820 = vmatprep.subr.bf16.mxu0 0
        %3821 = vmatpush1.bf16.msra.mxu0 0
        %3822 = vmatprep.subr.bf16.mxu0 0
        %3823 = vmatpush1.bf16.msra.mxu0 0
        %3824 = vmatprep.subr.bf16.mxu0 0
        %3825 = vmatpush1.bf16.msra.mxu0 0
        %3826 = vmatprep.subr.bf16.mxu0 0
        %3827 = vmatpush1.bf16.msra.mxu0 %v3810
        %3828 = vmatprep.subr.bf16.mxu0 0
        %3829 = vmatpush2.bf16.msra.mxu0 0
        %3830 = vmatprep.subr.bf16.mxu0 0
        %3831 = vmatpush2.bf16.msra.mxu0 0
        %3832 = vmatprep.subr.bf16.mxu0 0
        %3833 = vmatpush2.bf16.msra.mxu0 0
        %3834 = vmatprep.subr.bf16.mxu0 0
        %3835 = vmatpush2.bf16.msra.mxu0 0
        %3836 = vmatprep.subr.bf16.mxu0 0
        %3837 = vmatpush2.bf16.msra.mxu0 0
        %3838 = vmatprep.subr.bf16.mxu0 0
        %3839 = vmatpush2.bf16.msra.mxu0 0
        %3840 = vmatprep.subr.bf16.mxu0 0
        %3841 = vmatpush2.bf16.msra.mxu0 0
        %3842 = vmatprep.subr.bf16.mxu0 0
        %3843 = vmatpush2.bf16.msra.mxu0 0
        %3844 = vmatprep.mubr.bf16.mxu0 0
        %3845 = vmatmul.mubr.bf16.gmra.mxu0 %v3807
        %v3846 = vpop.f32.mrf.mxu0
        %v3847 = vadd.f32 0.0, %v3846
        %v3848 = vpop.f32.mrf.mxu0
        %v3849 = vpop.f32.mrf.mxu0
        %v3850 = vadd.f32 0.0, %v3849
        %v3851 = vpop.f32.mrf.mxu0
        %3852 = vdwg.mxu0
        %v3853 = vadd.f32 %v3804, %v3847
        %v3854 = vadd.f32 %v3805, %v3850
        %v3856 = vsel %vm3563, %v3553, 0
        %v3859 = vsel %vm3567, %v3247, 0
        %3861 = vmatprep.subr.bf16.mxu0 0
        %3862 = vmatpush1.bf16.msra.mxu0 0
        %3863 = vmatprep.subr.bf16.mxu0 0
        %3864 = vmatpush1.bf16.msra.mxu0 0
        %3865 = vmatprep.subr.bf16.mxu0 0
        %3866 = vmatpush1.bf16.msra.mxu0 0
        %3867 = vmatprep.subr.bf16.mxu0 0
        %3868 = vmatpush1.bf16.msra.mxu0 0
        %3869 = vmatprep.subr.bf16.mxu0 0
        %3870 = vmatpush1.bf16.msra.mxu0 0
        %3871 = vmatprep.subr.bf16.mxu0 0
        %3872 = vmatpush1.bf16.msra.mxu0 0
        %3873 = vmatprep.subr.bf16.mxu0 0
        %3874 = vmatpush1.bf16.msra.mxu0 0
        %3875 = vmatprep.subr.bf16.mxu0 0
        %3876 = vmatpush1.bf16.msra.mxu0 %v3859
        %3877 = vmatprep.subr.bf16.mxu0 0
        %3878 = vmatpush2.bf16.msra.mxu0 0
        %3879 = vmatprep.subr.bf16.mxu0 0
        %3880 = vmatpush2.bf16.msra.mxu0 0
        %3881 = vmatprep.subr.bf16.mxu0 0
        %3882 = vmatpush2.bf16.msra.mxu0 0
        %3883 = vmatprep.subr.bf16.mxu0 0
        %3884 = vmatpush2.bf16.msra.mxu0 0
        %3885 = vmatprep.subr.bf16.mxu0 0
        %3886 = vmatpush2.bf16.msra.mxu0 0
        %3887 = vmatprep.subr.bf16.mxu0 0
        %3888 = vmatpush2.bf16.msra.mxu0 0
        %3889 = vmatprep.subr.bf16.mxu0 0
        %3890 = vmatpush2.bf16.msra.mxu0 0
        %3891 = vmatprep.subr.bf16.mxu0 0
        %3892 = vmatpush2.bf16.msra.mxu0 0
        %3893 = vmatprep.mubr.bf16.mxu0 0
        %3894 = vmatmul.mubr.bf16.gmra.mxu0 %v3856
        %v3895 = vpop.f32.mrf.mxu0
        %v3896 = vadd.f32 0.0, %v3895
        %v3897 = vpop.f32.mrf.mxu0
        %v3898 = vpop.f32.mrf.mxu0
        %v3899 = vadd.f32 0.0, %v3898
        %v3900 = vpop.f32.mrf.mxu0
        %3901 = vdwg.mxu0
        %v3902 = vadd.f32 %v3853, %v3896
        %v3903 = vadd.f32 %v3854, %v3899
        %v3905 = vsel %vm3563, %v3554, 0
        %v3908 = vsel %vm3567, %v3248, 0
        %3910 = vmatprep.subr.bf16.mxu0 0
        %3911 = vmatpush1.bf16.msra.mxu0 0
        %3912 = vmatprep.subr.bf16.mxu0 0
        %3913 = vmatpush1.bf16.msra.mxu0 0
        %3914 = vmatprep.subr.bf16.mxu0 0
        %3915 = vmatpush1.bf16.msra.mxu0 0
        %3916 = vmatprep.subr.bf16.mxu0 0
        %3917 = vmatpush1.bf16.msra.mxu0 0
        %3918 = vmatprep.subr.bf16.mxu0 0
        %3919 = vmatpush1.bf16.msra.mxu0 0
        %3920 = vmatprep.subr.bf16.mxu0 0
        %3921 = vmatpush1.bf16.msra.mxu0 0
        %3922 = vmatprep.subr.bf16.mxu0 0
        %3923 = vmatpush1.bf16.msra.mxu0 0
        %3924 = vmatprep.subr.bf16.mxu0 0
        %3925 = vmatpush1.bf16.msra.mxu0 %v3908
        %3926 = vmatprep.subr.bf16.mxu0 0
        %3927 = vmatpush2.bf16.msra.mxu0 0
        %3928 = vmatprep.subr.bf16.mxu0 0
        %3929 = vmatpush2.bf16.msra.mxu0 0
        %3930 = vmatprep.subr.bf16.mxu0 0
        %3931 = vmatpush2.bf16.msra.mxu0 0
        %3932 = vmatprep.subr.bf16.mxu0 0
        %3933 = vmatpush2.bf16.msra.mxu0 0
        %3934 = vmatprep.subr.bf16.mxu0 0
        %3935 = vmatpush2.bf16.msra.mxu0 0
        %3936 = vmatprep.subr.bf16.mxu0 0
        %3937 = vmatpush2.bf16.msra.mxu0 0
        %3938 = vmatprep.subr.bf16.mxu0 0
        %3939 = vmatpush2.bf16.msra.mxu0 0
        %3940 = vmatprep.subr.bf16.mxu0 0
        %3941 = vmatpush2.bf16.msra.mxu0 0
        %3942 = vmatprep.mubr.bf16.mxu0 0
        %3943 = vmatmul.mubr.bf16.gmra.mxu0 %v3905
        %v3944 = vpop.f32.mrf.mxu0
        %v3945 = vadd.f32 0.0, %v3944
        %v3946 = vpop.f32.mrf.mxu0
        %v3947 = vpop.f32.mrf.mxu0
        %v3948 = vadd.f32 0.0, %v3947
        %v3949 = vpop.f32.mrf.mxu0
        %3950 = vdwg.mxu0
        %v3951 = vadd.f32 %v3902, %v3945
        %v3952 = vadd.f32 %v3903, %v3948
        %v3954 = vsel %vm3563, %v3555, 0
        %v3957 = vsel %vm3567, %v3249, 0
        %3959 = vmatprep.subr.bf16.mxu0 0
        %3960 = vmatpush1.bf16.msra.mxu0 0
        %3961 = vmatprep.subr.bf16.mxu0 0
        %3962 = vmatpush1.bf16.msra.mxu0 0
        %3963 = vmatprep.subr.bf16.mxu0 0
        %3964 = vmatpush1.bf16.msra.mxu0 0
        %3965 = vmatprep.subr.bf16.mxu0 0
        %3966 = vmatpush1.bf16.msra.mxu0 0
        %3967 = vmatprep.subr.bf16.mxu0 0
        %3968 = vmatpush1.bf16.msra.mxu0 0
        %3969 = vmatprep.subr.bf16.mxu0 0
        %3970 = vmatpush1.bf16.msra.mxu0 0
        %3971 = vmatprep.subr.bf16.mxu0 0
        %3972 = vmatpush1.bf16.msra.mxu0 0
        %3973 = vmatprep.subr.bf16.mxu0 0
        %3974 = vmatpush1.bf16.msra.mxu0 %v3957
        %3975 = vmatprep.subr.bf16.mxu0 0
        %3976 = vmatpush2.bf16.msra.mxu0 0
        %3977 = vmatprep.subr.bf16.mxu0 0
        %3978 = vmatpush2.bf16.msra.mxu0 0
        %3979 = vmatprep.subr.bf16.mxu0 0
        %3980 = vmatpush2.bf16.msra.mxu0 0
        %3981 = vmatprep.subr.bf16.mxu0 0
        %3982 = vmatpush2.bf16.msra.mxu0 0
        %3983 = vmatprep.subr.bf16.mxu0 0
        %3984 = vmatpush2.bf16.msra.mxu0 0
        %3985 = vmatprep.subr.bf16.mxu0 0
        %3986 = vmatpush2.bf16.msra.mxu0 0
        %3987 = vmatprep.subr.bf16.mxu0 0
        %3988 = vmatpush2.bf16.msra.mxu0 0
        %3989 = vmatprep.subr.bf16.mxu0 0
        %3990 = vmatpush2.bf16.msra.mxu0 0
        %3991 = vmatprep.mubr.bf16.mxu0 0
        %3992 = vmatmul.mubr.bf16.gmra.mxu0 %v3954
        %v3993 = vpop.f32.mrf.mxu0
        %v3994 = vadd.f32 0.0, %v3993
        %v3995 = vpop.f32.mrf.mxu0
        %v3996 = vpop.f32.mrf.mxu0
        %v3997 = vadd.f32 0.0, %v3996
        %v3998 = vpop.f32.mrf.mxu0
        %3999 = vdwg.mxu0
        %v4000 = vadd.f32 %v3951, %v3994
        %v4001 = vadd.f32 %v3952, %v3997
        %v4003 = vsel %vm3563, %v3556, 0
        %v4006 = vsel %vm3567, %v3250, 0
        %4008 = vmatprep.subr.bf16.mxu0 0
        %4009 = vmatpush1.bf16.msra.mxu0 0
        %4010 = vmatprep.subr.bf16.mxu0 0
        %4011 = vmatpush1.bf16.msra.mxu0 0
        %4012 = vmatprep.subr.bf16.mxu0 0
        %4013 = vmatpush1.bf16.msra.mxu0 0
        %4014 = vmatprep.subr.bf16.mxu0 0
        %4015 = vmatpush1.bf16.msra.mxu0 0
        %4016 = vmatprep.subr.bf16.mxu0 0
        %4017 = vmatpush1.bf16.msra.mxu0 0
        %4018 = vmatprep.subr.bf16.mxu0 0
        %4019 = vmatpush1.bf16.msra.mxu0 0
        %4020 = vmatprep.subr.bf16.mxu0 0
        %4021 = vmatpush1.bf16.msra.mxu0 0
        %4022 = vmatprep.subr.bf16.mxu0 0
        %4023 = vmatpush1.bf16.msra.mxu0 %v4006
        %4024 = vmatprep.subr.bf16.mxu0 0
        %4025 = vmatpush2.bf16.msra.mxu0 0
        %4026 = vmatprep.subr.bf16.mxu0 0
        %4027 = vmatpush2.bf16.msra.mxu0 0
        %4028 = vmatprep.subr.bf16.mxu0 0
        %4029 = vmatpush2.bf16.msra.mxu0 0
        %4030 = vmatprep.subr.bf16.mxu0 0
        %4031 = vmatpush2.bf16.msra.mxu0 0
        %4032 = vmatprep.subr.bf16.mxu0 0
        %4033 = vmatpush2.bf16.msra.mxu0 0
        %4034 = vmatprep.subr.bf16.mxu0 0
        %4035 = vmatpush2.bf16.msra.mxu0 0
        %4036 = vmatprep.subr.bf16.mxu0 0
        %4037 = vmatpush2.bf16.msra.mxu0 0
        %4038 = vmatprep.subr.bf16.mxu0 0
        %4039 = vmatpush2.bf16.msra.mxu0 0
        %4040 = vmatprep.mubr.bf16.mxu0 0
        %4041 = vmatmul.mubr.bf16.gmra.mxu0 %v4003
        %v4042 = vpop.f32.mrf.mxu0
        %v4043 = vadd.f32 0.0, %v4042
        %v4044 = vpop.f32.mrf.mxu0
        %v4045 = vpop.f32.mrf.mxu0
        %v4046 = vadd.f32 0.0, %v4045
        %v4047 = vpop.f32.mrf.mxu0
        %4048 = vdwg.mxu0
        %v4049 = vadd.f32 %v4000, %v4043
        %v4050 = vadd.f32 %v4001, %v4046
        %v4052 = vsel %vm3563, %v3557, 0
        %v4055 = vsel %vm3567, %v3251, 0
        %4057 = vmatprep.subr.bf16.mxu0 0
        %4058 = vmatpush1.bf16.msra.mxu0 0
        %4059 = vmatprep.subr.bf16.mxu0 0
        %4060 = vmatpush1.bf16.msra.mxu0 0
        %4061 = vmatprep.subr.bf16.mxu0 0
        %4062 = vmatpush1.bf16.msra.mxu0 0
        %4063 = vmatprep.subr.bf16.mxu0 0
        %4064 = vmatpush1.bf16.msra.mxu0 0
        %4065 = vmatprep.subr.bf16.mxu0 0
        %4066 = vmatpush1.bf16.msra.mxu0 0
        %4067 = vmatprep.subr.bf16.mxu0 0
        %4068 = vmatpush1.bf16.msra.mxu0 0
        %4069 = vmatprep.subr.bf16.mxu0 0
        %4070 = vmatpush1.bf16.msra.mxu0 0
        %4071 = vmatprep.subr.bf16.mxu0 0
        %4072 = vmatpush1.bf16.msra.mxu0 %v4055
        %4073 = vmatprep.subr.bf16.mxu0 0
        %4074 = vmatpush2.bf16.msra.mxu0 0
        %4075 = vmatprep.subr.bf16.mxu0 0
        %4076 = vmatpush2.bf16.msra.mxu0 0
        %4077 = vmatprep.subr.bf16.mxu0 0
        %4078 = vmatpush2.bf16.msra.mxu0 0
        %4079 = vmatprep.subr.bf16.mxu0 0
        %4080 = vmatpush2.bf16.msra.mxu0 0
        %4081 = vmatprep.subr.bf16.mxu0 0
        %4082 = vmatpush2.bf16.msra.mxu0 0
        %4083 = vmatprep.subr.bf16.mxu0 0
        %4084 = vmatpush2.bf16.msra.mxu0 0
        %4085 = vmatprep.subr.bf16.mxu0 0
        %4086 = vmatpush2.bf16.msra.mxu0 0
        %4087 = vmatprep.subr.bf16.mxu0 0
        %4088 = vmatpush2.bf16.msra.mxu0 0
        %4089 = vmatprep.mubr.bf16.mxu0 0
        %4090 = vmatmul.mubr.bf16.gmra.mxu0 %v4052
        %v4091 = vpop.f32.mrf.mxu0
        %v4092 = vadd.f32 0.0, %v4091
        %v4093 = vpop.f32.mrf.mxu0
        %v4094 = vpop.f32.mrf.mxu0
        %v4095 = vadd.f32 0.0, %v4094
        %v4096 = vpop.f32.mrf.mxu0
        %4097 = vdwg.mxu0
        %v4098 = vadd.f32 %v4049, %v4092
        %v4099 = vadd.f32 %v4050, %v4095
        %v4101 = vsel %vm3563, %v3558, 0
        %v4104 = vsel %vm3567, %v3252, 0
        %4106 = vmatprep.subr.bf16.mxu0 0
        %4107 = vmatpush1.bf16.msra.mxu0 0
        %4108 = vmatprep.subr.bf16.mxu0 0
        %4109 = vmatpush1.bf16.msra.mxu0 0
        %4110 = vmatprep.subr.bf16.mxu0 0
        %4111 = vmatpush1.bf16.msra.mxu0 0
        %4112 = vmatprep.subr.bf16.mxu0 0
        %4113 = vmatpush1.bf16.msra.mxu0 0
        %4114 = vmatprep.subr.bf16.mxu0 0
        %4115 = vmatpush1.bf16.msra.mxu0 0
        %4116 = vmatprep.subr.bf16.mxu0 0
        %4117 = vmatpush1.bf16.msra.mxu0 0
        %4118 = vmatprep.subr.bf16.mxu0 0
        %4119 = vmatpush1.bf16.msra.mxu0 0
        %4120 = vmatprep.subr.bf16.mxu0 0
        %4121 = vmatpush1.bf16.msra.mxu0 %v4104
        %4122 = vmatprep.subr.bf16.mxu0 0
        %4123 = vmatpush2.bf16.msra.mxu0 0
        %4124 = vmatprep.subr.bf16.mxu0 0
        %4125 = vmatpush2.bf16.msra.mxu0 0
        %4126 = vmatprep.subr.bf16.mxu0 0
        %4127 = vmatpush2.bf16.msra.mxu0 0
        %4128 = vmatprep.subr.bf16.mxu0 0
        %4129 = vmatpush2.bf16.msra.mxu0 0
        %4130 = vmatprep.subr.bf16.mxu0 0
        %4131 = vmatpush2.bf16.msra.mxu0 0
        %4132 = vmatprep.subr.bf16.mxu0 0
        %4133 = vmatpush2.bf16.msra.mxu0 0
        %4134 = vmatprep.subr.bf16.mxu0 0
        %4135 = vmatpush2.bf16.msra.mxu0 0
        %4136 = vmatprep.subr.bf16.mxu0 0
        %4137 = vmatpush2.bf16.msra.mxu0 0
        %4138 = vmatprep.mubr.bf16.mxu0 0
        %4139 = vmatmul.mubr.bf16.gmra.mxu0 %v4101
        %v4140 = vpop.f32.mrf.mxu0
        %v4141 = vadd.f32 0.0, %v4140
        %v4142 = vpop.f32.mrf.mxu0
        %v4143 = vpop.f32.mrf.mxu0
        %v4144 = vadd.f32 0.0, %v4143
        %v4145 = vpop.f32.mrf.mxu0
        %4146 = vdwg.mxu0
        %v4147 = vadd.f32 %v4098, %v4141
        %v4148 = vadd.f32 %v4099, %v4144
        %v4150 = vsel %vm3563, %v3559, 0
        %v4153 = vsel %vm3567, %v3253, 0
        %4155 = vmatprep.subr.bf16.mxu0 0
        %4156 = vmatpush1.bf16.msra.mxu0 0
        %4157 = vmatprep.subr.bf16.mxu0 0
        %4158 = vmatpush1.bf16.msra.mxu0 0
        %4159 = vmatprep.subr.bf16.mxu0 0
        %4160 = vmatpush1.bf16.msra.mxu0 0
        %4161 = vmatprep.subr.bf16.mxu0 0
        %4162 = vmatpush1.bf16.msra.mxu0 0
        %4163 = vmatprep.subr.bf16.mxu0 0
        %4164 = vmatpush1.bf16.msra.mxu0 0
        %4165 = vmatprep.subr.bf16.mxu0 0
        %4166 = vmatpush1.bf16.msra.mxu0 0
        %4167 = vmatprep.subr.bf16.mxu0 0
        %4168 = vmatpush1.bf16.msra.mxu0 0
        %4169 = vmatprep.subr.bf16.mxu0 0
        %4170 = vmatpush1.bf16.msra.mxu0 %v4153
        %4171 = vmatprep.subr.bf16.mxu0 0
        %4172 = vmatpush2.bf16.msra.mxu0 0
        %4173 = vmatprep.subr.bf16.mxu0 0
        %4174 = vmatpush2.bf16.msra.mxu0 0
        %4175 = vmatprep.subr.bf16.mxu0 0
        %4176 = vmatpush2.bf16.msra.mxu0 0
        %4177 = vmatprep.subr.bf16.mxu0 0
        %4178 = vmatpush2.bf16.msra.mxu0 0
        %4179 = vmatprep.subr.bf16.mxu0 0
        %4180 = vmatpush2.bf16.msra.mxu0 0
        %4181 = vmatprep.subr.bf16.mxu0 0
        %4182 = vmatpush2.bf16.msra.mxu0 0
        %4183 = vmatprep.subr.bf16.mxu0 0
        %4184 = vmatpush2.bf16.msra.mxu0 0
        %4185 = vmatprep.subr.bf16.mxu0 0
        %4186 = vmatpush2.bf16.msra.mxu0 0
        %4187 = vmatprep.mubr.bf16.mxu0 0
        %4188 = vmatmul.mubr.bf16.gmra.mxu0 %v4150
        %v4189 = vpop.f32.mrf.mxu0
        %v4190 = vadd.f32 0.0, %v4189
        %v4191 = vpop.f32.mrf.mxu0
        %v4192 = vpop.f32.mrf.mxu0
        %v4193 = vadd.f32 0.0, %v4192
        %v4194 = vpop.f32.mrf.mxu0
        %4195 = vdwg.mxu0
        %v4196 = vadd.f32 %v4147, %v4190
        %v4197 = vadd.f32 %v4148, %v4193
        %v4199 = vsel %vm3563, %v3560, 0
        %v4202 = vsel %vm3567, %v3254, 0
        %4204 = vmatprep.subr.bf16.mxu0 0
        %4205 = vmatpush1.bf16.msra.mxu0 0
        %4206 = vmatprep.subr.bf16.mxu0 0
        %4207 = vmatpush1.bf16.msra.mxu0 0
        %4208 = vmatprep.subr.bf16.mxu0 0
        %4209 = vmatpush1.bf16.msra.mxu0 0
        %4210 = vmatprep.subr.bf16.mxu0 0
        %4211 = vmatpush1.bf16.msra.mxu0 0
        %4212 = vmatprep.subr.bf16.mxu0 0
        %4213 = vmatpush1.bf16.msra.mxu0 0
        %4214 = vmatprep.subr.bf16.mxu0 0
        %4215 = vmatpush1.bf16.msra.mxu0 0
        %4216 = vmatprep.subr.bf16.mxu0 0
        %4217 = vmatpush1.bf16.msra.mxu0 0
        %4218 = vmatprep.subr.bf16.mxu0 0
        %4219 = vmatpush1.bf16.msra.mxu0 %v4202
        %4220 = vmatprep.subr.bf16.mxu0 0
        %4221 = vmatpush2.bf16.msra.mxu0 0
        %4222 = vmatprep.subr.bf16.mxu0 0
        %4223 = vmatpush2.bf16.msra.mxu0 0
        %4224 = vmatprep.subr.bf16.mxu0 0
        %4225 = vmatpush2.bf16.msra.mxu0 0
        %4226 = vmatprep.subr.bf16.mxu0 0
        %4227 = vmatpush2.bf16.msra.mxu0 0
        %4228 = vmatprep.subr.bf16.mxu0 0
        %4229 = vmatpush2.bf16.msra.mxu0 0
        %4230 = vmatprep.subr.bf16.mxu0 0
        %4231 = vmatpush2.bf16.msra.mxu0 0
        %4232 = vmatprep.subr.bf16.mxu0 0
        %4233 = vmatpush2.bf16.msra.mxu0 0
        %4234 = vmatprep.subr.bf16.mxu0 0
        %4235 = vmatpush2.bf16.msra.mxu0 0
        %4236 = vmatprep.mubr.bf16.mxu0 0
        %4237 = vmatmul.mubr.bf16.gmra.mxu0 %v4199
        %v4238 = vpop.f32.mrf.mxu0
        %v4239 = vadd.f32 0.0, %v4238
        %v4240 = vpop.f32.mrf.mxu0
        %v4241 = vpop.f32.mrf.mxu0
        %v4242 = vadd.f32 0.0, %v4241
        %v4243 = vpop.f32.mrf.mxu0
        %4244 = vdwg.mxu0
        %v4245 = vadd.f32 %v4196, %v4239
        %v4246 = vadd.f32 %v4197, %v4242
        %v4248 = vsel %vm3563, %v3561, 0
        %v4251 = vsel %vm3567, %v3255, 0
        %4253 = vmatprep.subr.bf16.mxu0 0
        %4254 = vmatpush1.bf16.msra.mxu0 0
        %4255 = vmatprep.subr.bf16.mxu0 0
        %4256 = vmatpush1.bf16.msra.mxu0 0
        %4257 = vmatprep.subr.bf16.mxu0 0
        %4258 = vmatpush1.bf16.msra.mxu0 0
        %4259 = vmatprep.subr.bf16.mxu0 0
        %4260 = vmatpush1.bf16.msra.mxu0 0
        %4261 = vmatprep.subr.bf16.mxu0 0
        %4262 = vmatpush1.bf16.msra.mxu0 0
        %4263 = vmatprep.subr.bf16.mxu0 0
        %4264 = vmatpush1.bf16.msra.mxu0 0
        %4265 = vmatprep.subr.bf16.mxu0 0
        %4266 = vmatpush1.bf16.msra.mxu0 0
        %4267 = vmatprep.subr.bf16.mxu0 0
        %4268 = vmatpush1.bf16.msra.mxu0 %v4251
        %4269 = vmatprep.subr.bf16.mxu0 0
        %4270 = vmatpush2.bf16.msra.mxu0 0
        %4271 = vmatprep.subr.bf16.mxu0 0
        %4272 = vmatpush2.bf16.msra.mxu0 0
        %4273 = vmatprep.subr.bf16.mxu0 0
        %4274 = vmatpush2.bf16.msra.mxu0 0
        %4275 = vmatprep.subr.bf16.mxu0 0
        %4276 = vmatpush2.bf16.msra.mxu0 0
        %4277 = vmatprep.subr.bf16.mxu0 0
        %4278 = vmatpush2.bf16.msra.mxu0 0
        %4279 = vmatprep.subr.bf16.mxu0 0
        %4280 = vmatpush2.bf16.msra.mxu0 0
        %4281 = vmatprep.subr.bf16.mxu0 0
        %4282 = vmatpush2.bf16.msra.mxu0 0
        %4283 = vmatprep.subr.bf16.mxu0 0
        %4284 = vmatpush2.bf16.msra.mxu0 0
        %4285 = vmatprep.mubr.bf16.mxu0 0
        %4286 = vmatmul.mubr.bf16.gmra.mxu0 %v4248
        %v4287 = vpop.f32.mrf.mxu0
        %v4288 = vadd.f32 0.0, %v4287
        %v4289 = vpop.f32.mrf.mxu0
        %v4290 = vpop.f32.mrf.mxu0
        %v4291 = vadd.f32 0.0, %v4290
        %v4292 = vpop.f32.mrf.mxu0
        %4293 = vdwg.mxu0
        %v4294 = vadd.f32 %v4245, %v4288
        %v4295 = vadd.f32 %v4246, %v4291
        %v4297 = vsel %vm3563, %v3562, 0
        %v4300 = vsel %vm3567, %v3256, 0
        %4302 = vmatprep.subr.bf16.mxu0 0
        %4303 = vmatpush1.bf16.msra.mxu0 0
        %4304 = vmatprep.subr.bf16.mxu0 0
        %4305 = vmatpush1.bf16.msra.mxu0 0
        %4306 = vmatprep.subr.bf16.mxu0 0
        %4307 = vmatpush1.bf16.msra.mxu0 0
        %4308 = vmatprep.subr.bf16.mxu0 0
        %4309 = vmatpush1.bf16.msra.mxu0 0
        %4310 = vmatprep.subr.bf16.mxu0 0
        %4311 = vmatpush1.bf16.msra.mxu0 0
        %4312 = vmatprep.subr.bf16.mxu0 0
        %4313 = vmatpush1.bf16.msra.mxu0 0
        %4314 = vmatprep.subr.bf16.mxu0 0
        %4315 = vmatpush1.bf16.msra.mxu0 0
        %4316 = vmatprep.subr.bf16.mxu0 0
        %4317 = vmatpush1.bf16.msra.mxu0 %v4300
        %4318 = vmatprep.subr.bf16.mxu0 0
        %4319 = vmatpush2.bf16.msra.mxu0 0
        %4320 = vmatprep.subr.bf16.mxu0 0
        %4321 = vmatpush2.bf16.msra.mxu0 0
        %4322 = vmatprep.subr.bf16.mxu0 0
        %4323 = vmatpush2.bf16.msra.mxu0 0
        %4324 = vmatprep.subr.bf16.mxu0 0
        %4325 = vmatpush2.bf16.msra.mxu0 0
        %4326 = vmatprep.subr.bf16.mxu0 0
        %4327 = vmatpush2.bf16.msra.mxu0 0
        %4328 = vmatprep.subr.bf16.mxu0 0
        %4329 = vmatpush2.bf16.msra.mxu0 0
        %4330 = vmatprep.subr.bf16.mxu0 0
        %4331 = vmatpush2.bf16.msra.mxu0 0
        %4332 = vmatprep.subr.bf16.mxu0 0
        %4333 = vmatpush2.bf16.msra.mxu0 0
        %4334 = vmatprep.mubr.bf16.mxu0 0
        %4335 = vmatmul.mubr.bf16.gmra.mxu0 %v4297
        %v4336 = vpop.f32.mrf.mxu0
        %v4337 = vadd.f32 0.0, %v4336
        %v4338 = vpop.f32.mrf.mxu0
        %v4339 = vpop.f32.mrf.mxu0
        %v4340 = vadd.f32 0.0, %v4339
        %v4341 = vpop.f32.mrf.mxu0
        %4342 = vdwg.mxu0
        %v4343 = vadd.f32 %v4294, %v4337
        %v4344 = vadd.f32 %v4295, %v4340
        %vm4345 = vcmp.ge.f32.partialorder %v4343, 0.0
        %vm4346 = vcmp.ge.f32.partialorder %v4344, 0.0
        %v4347 = vmul.f32 %v4343, 0.2
        %v4348 = vmul.f32 %v4344, 0.2
        %v4349 = vsel %vm4345, %v4343, %v4347
        %v4350 = vsel %vm4346, %v4344, %v4348
        %v4351 = vld [vmem:[%s5] sm:$0xff]
        %v4352 = vld [vmem:[%s5 + $0x8] sm:$0xff]
        %v4353 = vmul.f32 %v4349, %v4351
        %v4354 = vmul.f32 %v4350, %v4352
        %vm4355 = vcmask 130048
        %v4356 = vsel %vm4355, %v4353, 0.0
        %4357 = vadd.xlane.f32.xlu0 %v4356
        %v4358 = vpop.xlane.xlu0 %4357
        %v4359 = vsel %vm4355, %v4354, 0.0
        %4360 = vadd.xlane.f32.xlu0 %v4359
        %v4361 = vpop.xlane.xlu0 %4360
        %v4362 = vadd.f32 %v4358, %v4361
        %v4363 = vrot.slane %v4362, 4
        %v4364 = vadd.f32 %v4362, %v4363
        %v4365 = vrot.slane %v4364, 2
        %v4366 = vadd.f32 %v4364, %v4365
        %v4367 = vrot.slane %v4366, 1
        %v4368 = vadd.f32 %v4366, %v4367
        %vm4369 = vcmask 0
        %4370 = vst.msk [vmem:[%s262] sm:$0x1] %vm4369, %v4368
        %p4371 = scmp.lt.s32.totalorder %s18, 1
        %s4372 = scalar_select %p4371, %s18, 1
        %s4373 = scalar_lea.vmem %s6, %s4372
        // Predicated region
        $region49: #{tpu_custom_call.1} parent=43 // pred_check
          %p4374 = pneg %p167
        $region50: #{tpu_custom_call.1} parent=43 // pred_check_branch
          %4376 = sbr.rel (%p4374) target = $region52
        $region51: #{tpu_custom_call.1} parent=43 // pred_region
          _
        $region52: #{tpu_custom_call.1} parent=43 // pred_fallthru
          _
      $region44: #{tpu_custom_call.1} parent=5 // pred_fallthru
        _
      %p4377 = scmp.le.s32.totalorder 2, %s13
      // Predicated region
      $region53: #{tpu_custom_call.1} parent=5 // pred_check
        %p4378 = pneg %p4377
      $region54: #{tpu_custom_call.1} parent=5 // pred_check_branch
        %4380 = sbr.rel (%p4378) target = $region56
      $region55: #{tpu_custom_call.1} parent=5 // pred_region
        %s4381 = ssub.s32 %s13, 2
        // Predicated region
        $region57: #{tpu_custom_call.1} parent=55 // pred_check
          %p4382 = pneg %p173
        $region58: #{tpu_custom_call.1} parent=55 // pred_check_branch
          %4384 = sbr.rel (%p4382) target = $region60
        $region59: #{tpu_custom_call.1} parent=55 // pred_region
          %p4385 = scmp.lt.s32.totalorder %s19, 1
          %s4386 = scalar_select %p4385, %s19, 1
          %s4387 = scalar_lea.vmem %s6, %s4386
        $region60: #{tpu_custom_call.1} parent=55 // pred_fallthru
          _
      $region56: #{tpu_custom_call.1} parent=5 // pred_fallthru
        _
    $region6: #{tpu_custom_call.1} parent=1 // loop_footer
      %s17 = sadd.s32 1, %s13
    $region7: #{tpu_custom_call.1} parent=1 // loop_footer_branch
      %12 = sbr.rel target = $region3
    $region8: #{tpu_custom_call.1} parent=1 // loop_exit
      _
    %4388 = vsyncpa [#allocation3], 1
    %s4389 = scalar_lea.sflag [#allocation3], 1
    %4390 = vsyncpa %s4389, 1

</llo_original>
